<compile_context>
chip_gen: v7x
topology: tpu7x:2x2x1
jax: 0.10.0
libtpu: 0.0.40
codegen_flags: <defaults>
</compile_context>

<pallas_src>
import jax
import jax.numpy as jnp
from jax.experimental import pallas as pl
from jax.experimental.pallas import tpu as pltpu

LN_EPS = 1e-5  # nn.TransformerEncoderLayer default layer_norm_eps


def _encoder_kernel(x_ref, wattn_hbm, w1_hbm, w2_hbm, small_ref, out_ref,
                    wa_buf, w1_buf, w2_buf, sem):
    """Single grid step.  Weights stay in HBM and are manually double-buffered
    into VMEM one layer ahead of the (statically unrolled) layer loop."""
    B, D = x_ref.shape
    L = small_ref.shape[0]
    FF = w1_buf.shape[-1]

    def fetch(layer, slot):
        pltpu.make_async_copy(wattn_hbm.at[layer], wa_buf.at[slot],
                              sem.at[0, slot]).start()
        pltpu.make_async_copy(w1_hbm.at[layer], w1_buf.at[slot],
                              sem.at[1, slot]).start()
        pltpu.make_async_copy(w2_hbm.at[layer], w2_buf.at[slot],
                              sem.at[2, slot]).start()

    def wait(slot):
        pltpu.make_async_copy(wattn_hbm.at[0], wa_buf.at[slot],
                              sem.at[0, slot]).wait()
        pltpu.make_async_copy(w1_hbm.at[0], w1_buf.at[slot],
                              sem.at[1, slot]).wait()
        pltpu.make_async_copy(w2_hbm.at[0], w2_buf.at[slot],
                              sem.at[2, slot]).wait()

    fetch(0, 0)                                   # prime layer 0

    h = x_ref[...].astype(jnp.float32)            # (B, D) activations in f32

    for l in range(L):                            # static unroll (L is small)
        slot = l & 1
        wait(slot)                                # layer l weights resident
        if l + 1 < L:
            fetch(l + 1, 1 - slot)                # prefetch next layer || compute

        sm = small_ref[l]                         # (8, P) packed small params
        b_attn = sm[0:1, :D]
        b1     = sm[1:2, :FF]
        b2     = sm[2:3, :D]
        g1     = sm[3:4, :D]
        bn1    = sm[4:5, :D]
        g2     = sm[5:6, :D]
        bn2    = sm[6:7, :D]

        # ---- self-attention block (seq_len == 1): out_proj∘v_proj fused ----
        attn = jnp.dot(h.astype(jnp.bfloat16), wa_buf[slot],
                       preferred_element_type=jnp.float32) + b_attn

        # residual + LayerNorm1 (dropout omitted: eval semantics)
        z = h + attn
        mu = jnp.mean(z, axis=-1, keepdims=True)
        var = jnp.mean(jnp.square(z - mu), axis=-1, keepdims=True)
        h = (z - mu) * jax.lax.rsqrt(var + LN_EPS) * g1 + bn1

        # ---- feed-forward: linear2(relu(linear1(h))) ----
        f = jnp.dot(h.astype(jnp.bfloat16), w1_buf[slot],
                    preferred_element_type=jnp.float32) + b1
        f = jnp.maximum(f, 0.0)
        f = jnp.dot(f.astype(jnp.bfloat16), w2_buf[slot],
                    preferred_element_type=jnp.float32) + b2

        # residual + LayerNorm2
        z2 = h + f
        mu2 = jnp.mean(z2, axis=-1, keepdims=True)
        var2 = jnp.mean(jnp.square(z2 - mu2), axis=-1, keepdims=True)
        h = (z2 - mu2) * jax.lax.rsqrt(var2 + LN_EPS) * g2 + bn2

    out_ref[...] = h.astype(out_ref.dtype)


def transformer_encoder(x, fused_params):
    """x: (B, D) == the (B, 1, D) sequence with the length-1 axis folded away.
    fused_params: output of prepare_params().  Eval/inference semantics only
    (dropout is identity).  The seq_len==1 softmax collapse is baked in."""
    assert x.ndim == 2, "kernel assumes sequence length == 1; pass x as (B, D)"
    w_attn, w1t, w2t, small = fused_params
    B, D = x.shape
    L, _, FF = w1t.shape
    P = small.shape[-1]

    return pl.pallas_call(
        _encoder_kernel,
        out_shape=jax.ShapeDtypeStruct((B, D), x.dtype),
        grid=(1,),
        in_specs=[
            pl.BlockSpec((B, D), lambda i: (0, 0)),        # x (auto VMEM)
            pl.BlockSpec(memory_space=pl.ANY),             # fused attn W (HBM, bf16)
            pl.BlockSpec(memory_space=pl.ANY),             # linear1 W (HBM, bf16)
            pl.BlockSpec(memory_space=pl.ANY),             # linear2 W (HBM, bf16)
            pl.BlockSpec((L, 8, P), lambda i: (0, 0, 0)),  # packed biases / LN (f32)
        ],
        out_specs=pl.BlockSpec((B, D), lambda i: (0, 0)),
        scratch_shapes=[
            pltpu.VMEM((2, D, D), jnp.bfloat16),           # attn weight double buffer
            pltpu.VMEM((2, D, FF), jnp.bfloat16),          # linear1 double buffer
            pltpu.VMEM((2, FF, D), jnp.bfloat16),          # linear2 double buffer
            pltpu.SemaphoreType.DMA((3, 2)),
        ],
        compiler_params=pltpu.CompilerParams(
            dimension_semantics=("arbitrary",)),
    )(x, w_attn, w1t, w2t, small)


def prepare_params(params):
    """Host-side prep: drop Q/K rows, fold out_proj into v_proj (in f32),
    pre-transpose to x @ W orientation, cast weights to bf16, and pack the
    small 1-D params into one f32 array."""
    wqkv, bqkv, wo, bo, w1, b1, w2, b2, g1, bn1, g2, bn2 = params
    L, _, D = wqkv.shape
    FF = w1.shape[1]

    wv = wqkv[:, 2 * D:3 * D, :]                 # (L, D, D)  V rows only
    bv = bqkv[:, 0, 2 * D:3 * D]                 # (L, D)
    # attn_out = (x @ Wv.T + bv) @ Wo.T + bo == x @ W_attn + b_attn  (f32 fuse)
    w_attn = jnp.einsum('lvd,lov->ldo', wv, wo)            # (L, D, D) f32
    b_attn = jnp.einsum('lv,lov->lo', bv, wo) + bo[:, 0]   # (L, D)    f32

    w1t = jnp.swapaxes(w1, 1, 2)                 # (L, D, FF)
    w2t = jnp.swapaxes(w2, 1, 2)                 # (L, FF, D)

    P = max(D, FF)

    def pad(v):
        return jnp.pad(v, ((0, 0), (0, P - v.shape[-1])))

    small = jnp.stack([
        pad(b_attn), pad(b1[:, 0]), pad(b2[:, 0]),
        pad(g1[:, 0]), pad(bn1[:, 0]), pad(g2[:, 0]), pad(bn2[:, 0]),
        jnp.zeros((L, P), jnp.float32),
    ], axis=1)                                   # (L, 8, P) f32

    return (w_attn.astype(jnp.bfloat16),
            w1t.astype(jnp.bfloat16),
            w2t.astype(jnp.bfloat16),
            small)


def init_params(key, D, FF, L):
    """Deterministic synthetic parameters with PyTorch-like shapes/init."""
    def u(k, shape, bound):
        return jax.random.uniform(k, shape, jnp.float32, -bound, bound)

    ks = jax.random.split(key, 8)
    sD = 1.0 / jnp.sqrt(D)
    sF = 1.0 / jnp.sqrt(FF)
    wqkv = u(ks[0], (L, 3 * D, D), sD)     # MHA in_proj_weight
    bqkv = u(ks[1], (L, 1, 3 * D), sD)     # MHA in_proj_bias
    wo = u(ks[2], (L, D, D), sD)           # MHA out_proj.weight
    bo = u(ks[3], (L, 1, D), sD)           # MHA out_proj.bias
    w1 = u(ks[4], (L, FF, D), sD)          # linear1.weight
    b1 = u(ks[5], (L, 1, FF), sD)          # linear1.bias
    w2 = u(ks[6], (L, D, FF), sF)          # linear2.weight
    b2 = u(ks[7], (L, 1, D), sF)           # linear2.bias
    g1 = jnp.ones((L, 1, D), jnp.float32)  # norm1.weight
    bn1 = jnp.zeros((L, 1, D), jnp.float32)
    g2 = jnp.ones((L, 1, D), jnp.float32)  # norm2.weight
    bn2 = jnp.zeros((L, 1, D), jnp.float32)
    return (wqkv, bqkv, wo, bo, w1, b1, w2, b2, g1, bn1, g2, bn2)


def reference(x, params):
    """Pure-JAX f32 reference of the same (eval-mode, seq_len=1) forward, using
    the original un-fused PyTorch-layout weights (tests the host-side fusion).
    The kernel uses bf16 weights, so the comparison tolerance is loosened."""
    wqkv, bqkv, wo, bo, w1, b1, w2, b2, g1, bn1, g2, bn2 = params
    D = x.shape[-1]

    def ln(z, g, b):
        mu = jnp.mean(z, -1, keepdims=True)
        var = jnp.mean(jnp.square(z - mu), -1, keepdims=True)
        return (z - mu) * jax.lax.rsqrt(var + LN_EPS) * g + b

    h = x
    for l in range(wqkv.shape[0]):
        v = h @ wqkv[l, 2 * D:3 * D].T + bqkv[l, 0, 2 * D:3 * D]
        attn = v @ wo[l].T + bo[l, 0]
        h = ln(h + attn, g1[l, 0], bn1[l, 0])
        f = jnp.maximum(h @ w1[l].T + b1[l, 0], 0.0) @ w2[l].T + b2[l, 0]
        h = ln(h + f, g2[l, 0], bn2[l, 0])
    return h


if __name__ == "__main__":
    # Module defaults: feature_dim=128, ff_dim=256, num_layers=6, num_heads=8
    # (heads cancel out since seq_len == 1).  Small batch of 8.
    B, D, FF, L = 8, 128, 256, 6

    key = jax.random.PRNGKey(0)
    kx, kp = jax.random.split(key)
    x = jax.random.normal(kx, (B, D), jnp.float32)
    params = init_params(kp, D, FF, L)
    fused = prepare_params(params)

    out = jax.block_until_ready(transformer_encoder(x, fused))
    ref = jax.block_until_ready(reference(x, params))

    assert out.shape == (B, D) and out.dtype == jnp.float32
    # bf16 weights in the kernel vs f32 reference -> loosened tolerance.
    assert jnp.allclose(out, ref, rtol=5e-2, atol=5e-2), "mismatch vs reference"
    print("KERNEL_OK")
</pallas_src>

<mosaic_0001>
module attributes {stable_mosaic.version = 11 : i64} {
  func.func @_encoder_kernel(%arg0: i32, %arg1: memref<8x128xf32, #tpu.memory_space<vmem>>, %arg2: memref<6x128x128xbf16, #tpu.memory_space<any>>, %arg3: memref<6x128x256xbf16, #tpu.memory_space<any>>, %arg4: memref<6x256x128xbf16, #tpu.memory_space<any>>, %arg5: memref<6x8x256xf32, #tpu.memory_space<vmem>>, %arg6: memref<8x128xf32, #tpu.memory_space<vmem>>, %arg7: memref<2x128x128xbf16, #tpu.memory_space<vmem>>, %arg8: memref<2x128x256xbf16, #tpu.memory_space<vmem>>, %arg9: memref<2x256x128xbf16, #tpu.memory_space<vmem>>, %arg10: memref<3x2x!tpu.dma_semaphore, #tpu.memory_space<semaphore_mem>>) attributes {dimension_semantics = [#tpu.dimension_semantics<arbitrary>], iteration_bounds = array<i64: 1>, scalar_prefetch = 0 : i64, scratch_operands = 4 : i64, tpu.core_type = #tpu.core_type<tc>, window_params = [{pipeline_mode = #tpu.pipeline_mode<synchronous>, transform_indices = @transform_0, window_bounds = array<i64: 8, 128>}, {}, {}, {}, {pipeline_mode = #tpu.pipeline_mode<synchronous>, transform_indices = @transform_4, window_bounds = array<i64: 6, 8, 256>}, {pipeline_mode = #tpu.pipeline_mode<synchronous>, transform_indices = @transform_5, window_bounds = array<i64: 8, 128>}]} {
    %c0_i32 = arith.constant 0 : i32
    %c0_i32_0 = arith.constant 0 : i32
    %c0_i32_1 = arith.constant 0 : i32
    %c0_i32_2 = arith.constant 0 : i32
    %c0_i32_3 = arith.constant 0 : i32
    %c0_i32_4 = arith.constant 0 : i32
    %0 = tpu.memref_slice %arg2[%c0_i32, %c0_i32_3, %c0_i32_4] : memref<6x128x128xbf16, #tpu.memory_space<any>> -> memref<1x128x128xbf16, #tpu.memory_space<any>>
    %1 = tpu.memref_squeeze %0 : memref<1x128x128xbf16, #tpu.memory_space<any>> -> memref<128x128xbf16, #tpu.memory_space<any>>
    %c0_i32_5 = arith.constant 0 : i32
    %c0_i32_6 = arith.constant 0 : i32
    %2 = tpu.memref_slice %arg7[%c0_i32_0, %c0_i32_5, %c0_i32_6] : memref<2x128x128xbf16, #tpu.memory_space<vmem>> -> memref<1x128x128xbf16, #tpu.memory_space<vmem>>
    %3 = tpu.memref_squeeze %2 : memref<1x128x128xbf16, #tpu.memory_space<vmem>> -> memref<128x128xbf16, #tpu.memory_space<vmem>>
    %4 = tpu.memref_slice %arg10[%c0_i32_1, %c0_i32_2] : memref<3x2x!tpu.dma_semaphore, #tpu.memory_space<semaphore_mem>> -> memref<1x1x!tpu.dma_semaphore, #tpu.memory_space<semaphore_mem>>
    %5 = tpu.memref_squeeze %4 : memref<1x1x!tpu.dma_semaphore, #tpu.memory_space<semaphore_mem>> -> memref<!tpu.dma_semaphore, #tpu.memory_space<semaphore_mem>>
    tpu.enqueue_dma source(%1 : memref<128x128xbf16, #tpu.memory_space<any>>) target(%3 : memref<128x128xbf16, #tpu.memory_space<vmem>>) target_semaphore(%5 : memref<!tpu.dma_semaphore, #tpu.memory_space<semaphore_mem>>)
    %c0_i32_7 = arith.constant 0 : i32
    %c0_i32_8 = arith.constant 0 : i32
    %c1_i32 = arith.constant 1 : i32
    %c0_i32_9 = arith.constant 0 : i32
    %c0_i32_10 = arith.constant 0 : i32
    %c0_i32_11 = arith.constant 0 : i32
    %6 = tpu.memref_slice %arg3[%c0_i32_7, %c0_i32_10, %c0_i32_11] : memref<6x128x256xbf16, #tpu.memory_space<any>> -> memref<1x128x256xbf16, #tpu.memory_space<any>>
    %7 = tpu.memref_squeeze %6 : memref<1x128x256xbf16, #tpu.memory_space<any>> -> memref<128x256xbf16, #tpu.memory_space<any>>
    %c0_i32_12 = arith.constant 0 : i32
    %c0_i32_13 = arith.constant 0 : i32
    %8 = tpu.memref_slice %arg8[%c0_i32_8, %c0_i32_12, %c0_i32_13] : memref<2x128x256xbf16, #tpu.memory_space<vmem>> -> memref<1x128x256xbf16, #tpu.memory_space<vmem>>
    %9 = tpu.memref_squeeze %8 : memref<1x128x256xbf16, #tpu.memory_space<vmem>> -> memref<128x256xbf16, #tpu.memory_space<vmem>>
    %10 = tpu.memref_slice %arg10[%c1_i32, %c0_i32_9] : memref<3x2x!tpu.dma_semaphore, #tpu.memory_space<semaphore_mem>> -> memref<1x1x!tpu.dma_semaphore, #tpu.memory_space<semaphore_mem>>
    %11 = tpu.memref_squeeze %10 : memref<1x1x!tpu.dma_semaphore, #tpu.memory_space<semaphore_mem>> -> memref<!tpu.dma_semaphore, #tpu.memory_space<semaphore_mem>>
    tpu.enqueue_dma source(%7 : memref<128x256xbf16, #tpu.memory_space<any>>) target(%9 : memref<128x256xbf16, #tpu.memory_space<vmem>>) target_semaphore(%11 : memref<!tpu.dma_semaphore, #tpu.memory_space<semaphore_mem>>)
    %c0_i32_14 = arith.constant 0 : i32
    %c0_i32_15 = arith.constant 0 : i32
    %c2_i32 = arith.constant 2 : i32
    %c0_i32_16 = arith.constant 0 : i32
    %c0_i32_17 = arith.constant 0 : i32
    %c0_i32_18 = arith.constant 0 : i32
    %12 = tpu.memref_slice %arg4[%c0_i32_14, %c0_i32_17, %c0_i32_18] : memref<6x256x128xbf16, #tpu.memory_space<any>> -> memref<1x256x128xbf16, #tpu.memory_space<any>>
    %13 = tpu.memref_squeeze %12 : memref<1x256x128xbf16, #tpu.memory_space<any>> -> memref<256x128xbf16, #tpu.memory_space<any>>
    %c0_i32_19 = arith.constant 0 : i32
    %c0_i32_20 = arith.constant 0 : i32
    %14 = tpu.memref_slice %arg9[%c0_i32_15, %c0_i32_19, %c0_i32_20] : memref<2x256x128xbf16, #tpu.memory_space<vmem>> -> memref<1x256x128xbf16, #tpu.memory_space<vmem>>
    %15 = tpu.memref_squeeze %14 : memref<1x256x128xbf16, #tpu.memory_space<vmem>> -> memref<256x128xbf16, #tpu.memory_space<vmem>>
    %16 = tpu.memref_slice %arg10[%c2_i32, %c0_i32_16] : memref<3x2x!tpu.dma_semaphore, #tpu.memory_space<semaphore_mem>> -> memref<1x1x!tpu.dma_semaphore, #tpu.memory_space<semaphore_mem>>
    %17 = tpu.memref_squeeze %16 : memref<1x1x!tpu.dma_semaphore, #tpu.memory_space<semaphore_mem>> -> memref<!tpu.dma_semaphore, #tpu.memory_space<semaphore_mem>>
    tpu.enqueue_dma source(%13 : memref<256x128xbf16, #tpu.memory_space<any>>) target(%15 : memref<256x128xbf16, #tpu.memory_space<vmem>>) target_semaphore(%17 : memref<!tpu.dma_semaphore, #tpu.memory_space<semaphore_mem>>)
    %c0 = arith.constant 0 : index
    %c0_21 = arith.constant 0 : index
    %18 = vector.load %arg1[%c0, %c0_21] : memref<8x128xf32, #tpu.memory_space<vmem>>, vector<8x128xf32>
    %c0_i32_22 = arith.constant 0 : i32
    %c0_i32_23 = arith.constant 0 : i32
    %c0_i32_24 = arith.constant 0 : i32
    %c0_i32_25 = arith.constant 0 : i32
    %c0_i32_26 = arith.constant 0 : i32
    %c0_i32_27 = arith.constant 0 : i32
    %19 = tpu.memref_slice %arg2[%c0_i32_22, %c0_i32_26, %c0_i32_27] : memref<6x128x128xbf16, #tpu.memory_space<any>> -> memref<1x128x128xbf16, #tpu.memory_space<any>>
    %20 = tpu.memref_squeeze %19 : memref<1x128x128xbf16, #tpu.memory_space<any>> -> memref<128x128xbf16, #tpu.memory_space<any>>
    %c0_i32_28 = arith.constant 0 : i32
    %c0_i32_29 = arith.constant 0 : i32
    %21 = tpu.memref_slice %arg7[%c0_i32_23, %c0_i32_28, %c0_i32_29] : memref<2x128x128xbf16, #tpu.memory_space<vmem>> -> memref<1x128x128xbf16, #tpu.memory_space<vmem>>
    %22 = tpu.memref_squeeze %21 : memref<1x128x128xbf16, #tpu.memory_space<vmem>> -> memref<128x128xbf16, #tpu.memory_space<vmem>>
    %23 = tpu.memref_slice %arg10[%c0_i32_24, %c0_i32_25] : memref<3x2x!tpu.dma_semaphore, #tpu.memory_space<semaphore_mem>> -> memref<1x1x!tpu.dma_semaphore, #tpu.memory_space<semaphore_mem>>
    %24 = tpu.memref_squeeze %23 : memref<1x1x!tpu.dma_semaphore, #tpu.memory_space<semaphore_mem>> -> memref<!tpu.dma_semaphore, #tpu.memory_space<semaphore_mem>>
    tpu.wait_dma2 semaphore(%24 : memref<!tpu.dma_semaphore, #tpu.memory_space<semaphore_mem>>) src(%20 : memref<128x128xbf16, #tpu.memory_space<any>>) dst(%22 : memref<128x128xbf16, #tpu.memory_space<vmem>>)
    %c0_i32_30 = arith.constant 0 : i32
    %c0_i32_31 = arith.constant 0 : i32
    %c1_i32_32 = arith.constant 1 : i32
    %c0_i32_33 = arith.constant 0 : i32
    %c0_i32_34 = arith.constant 0 : i32
    %c0_i32_35 = arith.constant 0 : i32
    %25 = tpu.memref_slice %arg3[%c0_i32_30, %c0_i32_34, %c0_i32_35] : memref<6x128x256xbf16, #tpu.memory_space<any>> -> memref<1x128x256xbf16, #tpu.memory_space<any>>
    %26 = tpu.memref_squeeze %25 : memref<1x128x256xbf16, #tpu.memory_space<any>> -> memref<128x256xbf16, #tpu.memory_space<any>>
    %c0_i32_36 = arith.constant 0 : i32
    %c0_i32_37 = arith.constant 0 : i32
    %27 = tpu.memref_slice %arg8[%c0_i32_31, %c0_i32_36, %c0_i32_37] : memref<2x128x256xbf16, #tpu.memory_space<vmem>> -> memref<1x128x256xbf16, #tpu.memory_space<vmem>>
    %28 = tpu.memref_squeeze %27 : memref<1x128x256xbf16, #tpu.memory_space<vmem>> -> memref<128x256xbf16, #tpu.memory_space<vmem>>
    %29 = tpu.memref_slice %arg10[%c1_i32_32, %c0_i32_33] : memref<3x2x!tpu.dma_semaphore, #tpu.memory_space<semaphore_mem>> -> memref<1x1x!tpu.dma_semaphore, #tpu.memory_space<semaphore_mem>>
    %30 = tpu.memref_squeeze %29 : memref<1x1x!tpu.dma_semaphore, #tpu.memory_space<semaphore_mem>> -> memref<!tpu.dma_semaphore, #tpu.memory_space<semaphore_mem>>
    tpu.wait_dma2 semaphore(%30 : memref<!tpu.dma_semaphore, #tpu.memory_space<semaphore_mem>>) src(%26 : memref<128x256xbf16, #tpu.memory_space<any>>) dst(%28 : memref<128x256xbf16, #tpu.memory_space<vmem>>)
    %c0_i32_38 = arith.constant 0 : i32
    %c0_i32_39 = arith.constant 0 : i32
    %c2_i32_40 = arith.constant 2 : i32
    %c0_i32_41 = arith.constant 0 : i32
    %c0_i32_42 = arith.constant 0 : i32
    %c0_i32_43 = arith.constant 0 : i32
    %31 = tpu.memref_slice %arg4[%c0_i32_38, %c0_i32_42, %c0_i32_43] : memref<6x256x128xbf16, #tpu.memory_space<any>> -> memref<1x256x128xbf16, #tpu.memory_space<any>>
    %32 = tpu.memref_squeeze %31 : memref<1x256x128xbf16, #tpu.memory_space<any>> -> memref<256x128xbf16, #tpu.memory_space<any>>
    %c0_i32_44 = arith.constant 0 : i32
    %c0_i32_45 = arith.constant 0 : i32
    %33 = tpu.memref_slice %arg9[%c0_i32_39, %c0_i32_44, %c0_i32_45] : memref<2x256x128xbf16, #tpu.memory_space<vmem>> -> memref<1x256x128xbf16, #tpu.memory_space<vmem>>
    %34 = tpu.memref_squeeze %33 : memref<1x256x128xbf16, #tpu.memory_space<vmem>> -> memref<256x128xbf16, #tpu.memory_space<vmem>>
    %35 = tpu.memref_slice %arg10[%c2_i32_40, %c0_i32_41] : memref<3x2x!tpu.dma_semaphore, #tpu.memory_space<semaphore_mem>> -> memref<1x1x!tpu.dma_semaphore, #tpu.memory_space<semaphore_mem>>
    %36 = tpu.memref_squeeze %35 : memref<1x1x!tpu.dma_semaphore, #tpu.memory_space<semaphore_mem>> -> memref<!tpu.dma_semaphore, #tpu.memory_space<semaphore_mem>>
    tpu.wait_dma2 semaphore(%36 : memref<!tpu.dma_semaphore, #tpu.memory_space<semaphore_mem>>) src(%32 : memref<256x128xbf16, #tpu.memory_space<any>>) dst(%34 : memref<256x128xbf16, #tpu.memory_space<vmem>>)
    %c1_i32_46 = arith.constant 1 : i32
    %c1_i32_47 = arith.constant 1 : i32
    %c0_i32_48 = arith.constant 0 : i32
    %c1_i32_49 = arith.constant 1 : i32
    %c0_i32_50 = arith.constant 0 : i32
    %c0_i32_51 = arith.constant 0 : i32
    %37 = tpu.memref_slice %arg2[%c1_i32_46, %c0_i32_50, %c0_i32_51] : memref<6x128x128xbf16, #tpu.memory_space<any>> -> memref<1x128x128xbf16, #tpu.memory_space<any>>
    %38 = tpu.memref_squeeze %37 : memref<1x128x128xbf16, #tpu.memory_space<any>> -> memref<128x128xbf16, #tpu.memory_space<any>>
    %c0_i32_52 = arith.constant 0 : i32
    %c0_i32_53 = arith.constant 0 : i32
    %39 = tpu.memref_slice %arg7[%c1_i32_47, %c0_i32_52, %c0_i32_53] : memref<2x128x128xbf16, #tpu.memory_space<vmem>> -> memref<1x128x128xbf16, #tpu.memory_space<vmem>>
    %40 = tpu.memref_squeeze %39 : memref<1x128x128xbf16, #tpu.memory_space<vmem>> -> memref<128x128xbf16, #tpu.memory_space<vmem>>
    %41 = tpu.memref_slice %arg10[%c0_i32_48, %c1_i32_49] : memref<3x2x!tpu.dma_semaphore, #tpu.memory_space<semaphore_mem>> -> memref<1x1x!tpu.dma_semaphore, #tpu.memory_space<semaphore_mem>>
    %42 = tpu.memref_squeeze %41 : memref<1x1x!tpu.dma_semaphore, #tpu.memory_space<semaphore_mem>> -> memref<!tpu.dma_semaphore, #tpu.memory_space<semaphore_mem>>
    tpu.enqueue_dma source(%38 : memref<128x128xbf16, #tpu.memory_space<any>>) target(%40 : memref<128x128xbf16, #tpu.memory_space<vmem>>) target_semaphore(%42 : memref<!tpu.dma_semaphore, #tpu.memory_space<semaphore_mem>>)
    %c1_i32_54 = arith.constant 1 : i32
    %c1_i32_55 = arith.constant 1 : i32
    %c1_i32_56 = arith.constant 1 : i32
    %c1_i32_57 = arith.constant 1 : i32
    %c0_i32_58 = arith.constant 0 : i32
    %c0_i32_59 = arith.constant 0 : i32
    %43 = tpu.memref_slice %arg3[%c1_i32_54, %c0_i32_58, %c0_i32_59] : memref<6x128x256xbf16, #tpu.memory_space<any>> -> memref<1x128x256xbf16, #tpu.memory_space<any>>
    %44 = tpu.memref_squeeze %43 : memref<1x128x256xbf16, #tpu.memory_space<any>> -> memref<128x256xbf16, #tpu.memory_space<any>>
    %c0_i32_60 = arith.constant 0 : i32
    %c0_i32_61 = arith.constant 0 : i32
    %45 = tpu.memref_slice %arg8[%c1_i32_55, %c0_i32_60, %c0_i32_61] : memref<2x128x256xbf16, #tpu.memory_space<vmem>> -> memref<1x128x256xbf16, #tpu.memory_space<vmem>>
    %46 = tpu.memref_squeeze %45 : memref<1x128x256xbf16, #tpu.memory_space<vmem>> -> memref<128x256xbf16, #tpu.memory_space<vmem>>
    %47 = tpu.memref_slice %arg10[%c1_i32_56, %c1_i32_57] : memref<3x2x!tpu.dma_semaphore, #tpu.memory_space<semaphore_mem>> -> memref<1x1x!tpu.dma_semaphore, #tpu.memory_space<semaphore_mem>>
    %48 = tpu.memref_squeeze %47 : memref<1x1x!tpu.dma_semaphore, #tpu.memory_space<semaphore_mem>> -> memref<!tpu.dma_semaphore, #tpu.memory_space<semaphore_mem>>
    tpu.enqueue_dma source(%44 : memref<128x256xbf16, #tpu.memory_space<any>>) target(%46 : memref<128x256xbf16, #tpu.memory_space<vmem>>) target_semaphore(%48 : memref<!tpu.dma_semaphore, #tpu.memory_space<semaphore_mem>>)
    %c1_i32_62 = arith.constant 1 : i32
    %c1_i32_63 = arith.constant 1 : i32
    %c2_i32_64 = arith.constant 2 : i32
    %c1_i32_65 = arith.constant 1 : i32
    %c0_i32_66 = arith.constant 0 : i32
    %c0_i32_67 = arith.constant 0 : i32
    %49 = tpu.memref_slice %arg4[%c1_i32_62, %c0_i32_66, %c0_i32_67] : memref<6x256x128xbf16, #tpu.memory_space<any>> -> memref<1x256x128xbf16, #tpu.memory_space<any>>
    %50 = tpu.memref_squeeze %49 : memref<1x256x128xbf16, #tpu.memory_space<any>> -> memref<256x128xbf16, #tpu.memory_space<any>>
    %c0_i32_68 = arith.constant 0 : i32
    %c0_i32_69 = arith.constant 0 : i32
    %51 = tpu.memref_slice %arg9[%c1_i32_63, %c0_i32_68, %c0_i32_69] : memref<2x256x128xbf16, #tpu.memory_space<vmem>> -> memref<1x256x128xbf16, #tpu.memory_space<vmem>>
    %52 = tpu.memref_squeeze %51 : memref<1x256x128xbf16, #tpu.memory_space<vmem>> -> memref<256x128xbf16, #tpu.memory_space<vmem>>
    %53 = tpu.memref_slice %arg10[%c2_i32_64, %c1_i32_65] : memref<3x2x!tpu.dma_semaphore, #tpu.memory_space<semaphore_mem>> -> memref<1x1x!tpu.dma_semaphore, #tpu.memory_space<semaphore_mem>>
    %54 = tpu.memref_squeeze %53 : memref<1x1x!tpu.dma_semaphore, #tpu.memory_space<semaphore_mem>> -> memref<!tpu.dma_semaphore, #tpu.memory_space<semaphore_mem>>
    tpu.enqueue_dma source(%50 : memref<256x128xbf16, #tpu.memory_space<any>>) target(%52 : memref<256x128xbf16, #tpu.memory_space<vmem>>) target_semaphore(%54 : memref<!tpu.dma_semaphore, #tpu.memory_space<semaphore_mem>>)
    %c0_70 = arith.constant 0 : index
    %c0_71 = arith.constant 0 : index
    %c0_72 = arith.constant 0 : index
    %55 = vector.load %arg5[%c0_70, %c0_71, %c0_72] : memref<6x8x256xf32, #tpu.memory_space<vmem>>, vector<1x8x256xf32>
    %56 = vector.shape_cast %55 : vector<1x8x256xf32> to vector<8x256xf32>
    %57 = vector.extract_strided_slice %56 {offsets = [0, 0], sizes = [1, 128], strides = [1, 1]} : vector<8x256xf32> to vector<1x128xf32>
    %58 = vector.extract_strided_slice %56 {offsets = [1, 0], sizes = [1, 256], strides = [1, 1]} : vector<8x256xf32> to vector<1x256xf32>
    %59 = vector.extract_strided_slice %56 {offsets = [2, 0], sizes = [1, 128], strides = [1, 1]} : vector<8x256xf32> to vector<1x128xf32>
    %60 = vector.extract_strided_slice %56 {offsets = [3, 0], sizes = [1, 128], strides = [1, 1]} : vector<8x256xf32> to vector<1x128xf32>
    %61 = vector.extract_strided_slice %56 {offsets = [4, 0], sizes = [1, 128], strides = [1, 1]} : vector<8x256xf32> to vector<1x128xf32>
    %62 = vector.extract_strided_slice %56 {offsets = [5, 0], sizes = [1, 128], strides = [1, 1]} : vector<8x256xf32> to vector<1x128xf32>
    %63 = vector.extract_strided_slice %56 {offsets = [6, 0], sizes = [1, 128], strides = [1, 1]} : vector<8x256xf32> to vector<1x128xf32>
    %64 = arith.truncf %18 : vector<8x128xf32> to vector<8x128xbf16>
    %c0_73 = arith.constant 0 : index
    %c0_74 = arith.constant 0 : index
    %c0_75 = arith.constant 0 : index
    %65 = vector.load %arg7[%c0_73, %c0_74, %c0_75] : memref<2x128x128xbf16, #tpu.memory_space<vmem>>, vector<1x128x128xbf16>
    %66 = vector.shape_cast %65 : vector<1x128x128xbf16> to vector<128x128xbf16>
    %cst = arith.constant dense<0.000000e+00> : vector<8x128xf32>
    %67 = tpu.matmul %64, %66, %cst {dimension_numbers = #tpu.dot_dimension_numbers<[1], [0], [0], [1], [0, 0, 1, 1], [], []>} : vector<8x128xbf16>, vector<128x128xbf16>, vector<8x128xf32> -> vector<8x128xf32>
    %68 = vector.broadcast %57 : vector<1x128xf32> to vector<8x128xf32>
    %69 = arith.addf %67, %68 : vector<8x128xf32>
    %70 = arith.addf %18, %69 : vector<8x128xf32>
    %cst_76 = arith.constant dense<0.000000e+00> : vector<8xf32>
    %71 = vector.multi_reduction <add>, %70, %cst_76 [1] : vector<8x128xf32> to vector<8xf32>
    %72 = vector.shape_cast %71 : vector<8xf32> to vector<8x1xf32>
    %cst_77 = arith.constant 1.280000e+02 : f32
    %73 = vector.broadcast %cst_77 : f32 to vector<8x1xf32>
    %74 = arith.divf %72, %73 : vector<8x1xf32>
    %75 = vector.broadcast %74 : vector<8x1xf32> to vector<8x128xf32>
    %76 = arith.subf %70, %75 : vector<8x128xf32>
    %77 = arith.mulf %76, %76 : vector<8x128xf32>
    %cst_78 = arith.constant dense<0.000000e+00> : vector<8xf32>
    %78 = vector.multi_reduction <add>, %77, %cst_78 [1] : vector<8x128xf32> to vector<8xf32>
    %79 = vector.shape_cast %78 : vector<8xf32> to vector<8x1xf32>
    %cst_79 = arith.constant 1.280000e+02 : f32
    %80 = vector.broadcast %cst_79 : f32 to vector<8x1xf32>
    %81 = arith.divf %79, %80 : vector<8x1xf32>
    %82 = vector.broadcast %74 : vector<8x1xf32> to vector<8x128xf32>
    %83 = arith.subf %70, %82 : vector<8x128xf32>
    %cst_80 = arith.constant 9.99999974E-6 : f32
    %84 = vector.broadcast %cst_80 : f32 to vector<8x1xf32>
    %85 = arith.addf %81, %84 : vector<8x1xf32>
    %86 = math.rsqrt %85 : vector<8x1xf32>
    %87 = vector.broadcast %86 : vector<8x1xf32> to vector<8x128xf32>
    %88 = arith.mulf %83, %87 : vector<8x128xf32>
    %89 = vector.broadcast %60 : vector<1x128xf32> to vector<8x128xf32>
    %90 = arith.mulf %88, %89 : vector<8x128xf32>
    %91 = vector.broadcast %61 : vector<1x128xf32> to vector<8x128xf32>
    %92 = arith.addf %90, %91 : vector<8x128xf32>
    %93 = arith.truncf %92 : vector<8x128xf32> to vector<8x128xbf16>
    %c0_81 = arith.constant 0 : index
    %c0_82 = arith.constant 0 : index
    %c0_83 = arith.constant 0 : index
    %94 = vector.load %arg8[%c0_81, %c0_82, %c0_83] : memref<2x128x256xbf16, #tpu.memory_space<vmem>>, vector<1x128x256xbf16>
    %95 = vector.shape_cast %94 : vector<1x128x256xbf16> to vector<128x256xbf16>
    %cst_84 = arith.constant dense<0.000000e+00> : vector<8x256xf32>
    %96 = tpu.matmul %93, %95, %cst_84 {dimension_numbers = #tpu.dot_dimension_numbers<[1], [0], [0], [1], [0, 0, 1, 1], [], []>} : vector<8x128xbf16>, vector<128x256xbf16>, vector<8x256xf32> -> vector<8x256xf32>
    %97 = vector.broadcast %58 : vector<1x256xf32> to vector<8x256xf32>
    %98 = arith.addf %96, %97 : vector<8x256xf32>
    %cst_85 = arith.constant 0.000000e+00 : f32
    %99 = vector.broadcast %cst_85 : f32 to vector<8x256xf32>
    %100 = arith.maximumf %98, %99 : vector<8x256xf32>
    %101 = arith.truncf %100 : vector<8x256xf32> to vector<8x256xbf16>
    %c0_86 = arith.constant 0 : index
    %c0_87 = arith.constant 0 : index
    %c0_88 = arith.constant 0 : index
    %102 = vector.load %arg9[%c0_86, %c0_87, %c0_88] : memref<2x256x128xbf16, #tpu.memory_space<vmem>>, vector<1x256x128xbf16>
    %103 = vector.shape_cast %102 : vector<1x256x128xbf16> to vector<256x128xbf16>
    %cst_89 = arith.constant dense<0.000000e+00> : vector<8x128xf32>
    %104 = tpu.matmul %101, %103, %cst_89 {dimension_numbers = #tpu.dot_dimension_numbers<[1], [0], [0], [1], [0, 0, 1, 1], [], []>} : vector<8x256xbf16>, vector<256x128xbf16>, vector<8x128xf32> -> vector<8x128xf32>
    %105 = vector.broadcast %59 : vector<1x128xf32> to vector<8x128xf32>
    %106 = arith.addf %104, %105 : vector<8x128xf32>
    %107 = arith.addf %92, %106 : vector<8x128xf32>
    %cst_90 = arith.constant dense<0.000000e+00> : vector<8xf32>
    %108 = vector.multi_reduction <add>, %107, %cst_90 [1] : vector<8x128xf32> to vector<8xf32>
    %109 = vector.shape_cast %108 : vector<8xf32> to vector<8x1xf32>
    %cst_91 = arith.constant 1.280000e+02 : f32
    %110 = vector.broadcast %cst_91 : f32 to vector<8x1xf32>
    %111 = arith.divf %109, %110 : vector<8x1xf32>
    %112 = vector.broadcast %111 : vector<8x1xf32> to vector<8x128xf32>
    %113 = arith.subf %107, %112 : vector<8x128xf32>
    %114 = arith.mulf %113, %113 : vector<8x128xf32>
    %cst_92 = arith.constant dense<0.000000e+00> : vector<8xf32>
    %115 = vector.multi_reduction <add>, %114, %cst_92 [1] : vector<8x128xf32> to vector<8xf32>
    %116 = vector.shape_cast %115 : vector<8xf32> to vector<8x1xf32>
    %cst_93 = arith.constant 1.280000e+02 : f32
    %117 = vector.broadcast %cst_93 : f32 to vector<8x1xf32>
    %118 = arith.divf %116, %117 : vector<8x1xf32>
    %119 = vector.broadcast %111 : vector<8x1xf32> to vector<8x128xf32>
    %120 = arith.subf %107, %119 : vector<8x128xf32>
    %cst_94 = arith.constant 9.99999974E-6 : f32
    %121 = vector.broadcast %cst_94 : f32 to vector<8x1xf32>
    %122 = arith.addf %118, %121 : vector<8x1xf32>
    %123 = math.rsqrt %122 : vector<8x1xf32>
    %124 = vector.broadcast %123 : vector<8x1xf32> to vector<8x128xf32>
    %125 = arith.mulf %120, %124 : vector<8x128xf32>
    %126 = vector.broadcast %62 : vector<1x128xf32> to vector<8x128xf32>
    %127 = arith.mulf %125, %126 : vector<8x128xf32>
    %128 = vector.broadcast %63 : vector<1x128xf32> to vector<8x128xf32>
    %129 = arith.addf %127, %128 : vector<8x128xf32>
    %c0_i32_95 = arith.constant 0 : i32
    %c1_i32_96 = arith.constant 1 : i32
    %c0_i32_97 = arith.constant 0 : i32
    %c1_i32_98 = arith.constant 1 : i32
    %c0_i32_99 = arith.constant 0 : i32
    %c0_i32_100 = arith.constant 0 : i32
    %130 = tpu.memref_slice %arg2[%c0_i32_95, %c0_i32_99, %c0_i32_100] : memref<6x128x128xbf16, #tpu.memory_space<any>> -> memref<1x128x128xbf16, #tpu.memory_space<any>>
    %131 = tpu.memref_squeeze %130 : memref<1x128x128xbf16, #tpu.memory_space<any>> -> memref<128x128xbf16, #tpu.memory_space<any>>
    %c0_i32_101 = arith.constant 0 : i32
    %c0_i32_102 = arith.constant 0 : i32
    %132 = tpu.memref_slice %arg7[%c1_i32_96, %c0_i32_101, %c0_i32_102] : memref<2x128x128xbf16, #tpu.memory_space<vmem>> -> memref<1x128x128xbf16, #tpu.memory_space<vmem>>
    %133 = tpu.memref_squeeze %132 : memref<1x128x128xbf16, #tpu.memory_space<vmem>> -> memref<128x128xbf16, #tpu.memory_space<vmem>>
    %134 = tpu.memref_slice %arg10[%c0_i32_97, %c1_i32_98] : memref<3x2x!tpu.dma_semaphore, #tpu.memory_space<semaphore_mem>> -> memref<1x1x!tpu.dma_semaphore, #tpu.memory_space<semaphore_mem>>
    %135 = tpu.memref_squeeze %134 : memref<1x1x!tpu.dma_semaphore, #tpu.memory_space<semaphore_mem>> -> memref<!tpu.dma_semaphore, #tpu.memory_space<semaphore_mem>>
    tpu.wait_dma2 semaphore(%135 : memref<!tpu.dma_semaphore, #tpu.memory_space<semaphore_mem>>) src(%131 : memref<128x128xbf16, #tpu.memory_space<any>>) dst(%133 : memref<128x128xbf16, #tpu.memory_space<vmem>>)
    %c0_i32_103 = arith.constant 0 : i32
    %c1_i32_104 = arith.constant 1 : i32
    %c1_i32_105 = arith.constant 1 : i32
    %c1_i32_106 = arith.constant 1 : i32
    %c0_i32_107 = arith.constant 0 : i32
    %c0_i32_108 = arith.constant 0 : i32
    %136 = tpu.memref_slice %arg3[%c0_i32_103, %c0_i32_107, %c0_i32_108] : memref<6x128x256xbf16, #tpu.memory_space<any>> -> memref<1x128x256xbf16, #tpu.memory_space<any>>
    %137 = tpu.memref_squeeze %136 : memref<1x128x256xbf16, #tpu.memory_space<any>> -> memref<128x256xbf16, #tpu.memory_space<any>>
    %c0_i32_109 = arith.constant 0 : i32
    %c0_i32_110 = arith.constant 0 : i32
    %138 = tpu.memref_slice %arg8[%c1_i32_104, %c0_i32_109, %c0_i32_110] : memref<2x128x256xbf16, #tpu.memory_space<vmem>> -> memref<1x128x256xbf16, #tpu.memory_space<vmem>>
    %139 = tpu.memref_squeeze %138 : memref<1x128x256xbf16, #tpu.memory_space<vmem>> -> memref<128x256xbf16, #tpu.memory_space<vmem>>
    %140 = tpu.memref_slice %arg10[%c1_i32_105, %c1_i32_106] : memref<3x2x!tpu.dma_semaphore, #tpu.memory_space<semaphore_mem>> -> memref<1x1x!tpu.dma_semaphore, #tpu.memory_space<semaphore_mem>>
    %141 = tpu.memref_squeeze %140 : memref<1x1x!tpu.dma_semaphore, #tpu.memory_space<semaphore_mem>> -> memref<!tpu.dma_semaphore, #tpu.memory_space<semaphore_mem>>
    tpu.wait_dma2 semaphore(%141 : memref<!tpu.dma_semaphore, #tpu.memory_space<semaphore_mem>>) src(%137 : memref<128x256xbf16, #tpu.memory_space<any>>) dst(%139 : memref<128x256xbf16, #tpu.memory_space<vmem>>)
    %c0_i32_111 = arith.constant 0 : i32
    %c1_i32_112 = arith.constant 1 : i32
    %c2_i32_113 = arith.constant 2 : i32
    %c1_i32_114 = arith.constant 1 : i32
    %c0_i32_115 = arith.constant 0 : i32
    %c0_i32_116 = arith.constant 0 : i32
    %142 = tpu.memref_slice %arg4[%c0_i32_111, %c0_i32_115, %c0_i32_116] : memref<6x256x128xbf16, #tpu.memory_space<any>> -> memref<1x256x128xbf16, #tpu.memory_space<any>>
    %143 = tpu.memref_squeeze %142 : memref<1x256x128xbf16, #tpu.memory_space<any>> -> memref<256x128xbf16, #tpu.memory_space<any>>
    %c0_i32_117 = arith.constant 0 : i32
    %c0_i32_118 = arith.constant 0 : i32
    %144 = tpu.memref_slice %arg9[%c1_i32_112, %c0_i32_117, %c0_i32_118] : memref<2x256x128xbf16, #tpu.memory_space<vmem>> -> memref<1x256x128xbf16, #tpu.memory_space<vmem>>
    %145 = tpu.memref_squeeze %144 : memref<1x256x128xbf16, #tpu.memory_space<vmem>> -> memref<256x128xbf16, #tpu.memory_space<vmem>>
    %146 = tpu.memref_slice %arg10[%c2_i32_113, %c1_i32_114] : memref<3x2x!tpu.dma_semaphore, #tpu.memory_space<semaphore_mem>> -> memref<1x1x!tpu.dma_semaphore, #tpu.memory_space<semaphore_mem>>
    %147 = tpu.memref_squeeze %146 : memref<1x1x!tpu.dma_semaphore, #tpu.memory_space<semaphore_mem>> -> memref<!tpu.dma_semaphore, #tpu.memory_space<semaphore_mem>>
    tpu.wait_dma2 semaphore(%147 : memref<!tpu.dma_semaphore, #tpu.memory_space<semaphore_mem>>) src(%143 : memref<256x128xbf16, #tpu.memory_space<any>>) dst(%145 : memref<256x128xbf16, #tpu.memory_space<vmem>>)
    %c2_i32_119 = arith.constant 2 : i32
    %c0_i32_120 = arith.constant 0 : i32
    %c0_i32_121 = arith.constant 0 : i32
    %c0_i32_122 = arith.constant 0 : i32
    %c0_i32_123 = arith.constant 0 : i32
    %c0_i32_124 = arith.constant 0 : i32
    %148 = tpu.memref_slice %arg2[%c2_i32_119, %c0_i32_123, %c0_i32_124] : memref<6x128x128xbf16, #tpu.memory_space<any>> -> memref<1x128x128xbf16, #tpu.memory_space<any>>
    %149 = tpu.memref_squeeze %148 : memref<1x128x128xbf16, #tpu.memory_space<any>> -> memref<128x128xbf16, #tpu.memory_space<any>>
    %c0_i32_125 = arith.constant 0 : i32
    %c0_i32_126 = arith.constant 0 : i32
    %150 = tpu.memref_slice %arg7[%c0_i32_120, %c0_i32_125, %c0_i32_126] : memref<2x128x128xbf16, #tpu.memory_space<vmem>> -> memref<1x128x128xbf16, #tpu.memory_space<vmem>>
    %151 = tpu.memref_squeeze %150 : memref<1x128x128xbf16, #tpu.memory_space<vmem>> -> memref<128x128xbf16, #tpu.memory_space<vmem>>
    %152 = tpu.memref_slice %arg10[%c0_i32_121, %c0_i32_122] : memref<3x2x!tpu.dma_semaphore, #tpu.memory_space<semaphore_mem>> -> memref<1x1x!tpu.dma_semaphore, #tpu.memory_space<semaphore_mem>>
    %153 = tpu.memref_squeeze %152 : memref<1x1x!tpu.dma_semaphore, #tpu.memory_space<semaphore_mem>> -> memref<!tpu.dma_semaphore, #tpu.memory_space<semaphore_mem>>
    tpu.enqueue_dma source(%149 : memref<128x128xbf16, #tpu.memory_space<any>>) target(%151 : memref<128x128xbf16, #tpu.memory_space<vmem>>) target_semaphore(%153 : memref<!tpu.dma_semaphore, #tpu.memory_space<semaphore_mem>>)
    %c2_i32_127 = arith.constant 2 : i32
    %c0_i32_128 = arith.constant 0 : i32
    %c1_i32_129 = arith.constant 1 : i32
    %c0_i32_130 = arith.constant 0 : i32
    %c0_i32_131 = arith.constant 0 : i32
    %c0_i32_132 = arith.constant 0 : i32
    %154 = tpu.memref_slice %arg3[%c2_i32_127, %c0_i32_131, %c0_i32_132] : memref<6x128x256xbf16, #tpu.memory_space<any>> -> memref<1x128x256xbf16, #tpu.memory_space<any>>
    %155 = tpu.memref_squeeze %154 : memref<1x128x256xbf16, #tpu.memory_space<any>> -> memref<128x256xbf16, #tpu.memory_space<any>>
    %c0_i32_133 = arith.constant 0 : i32
    %c0_i32_134 = arith.constant 0 : i32
    %156 = tpu.memref_slice %arg8[%c0_i32_128, %c0_i32_133, %c0_i32_134] : memref<2x128x256xbf16, #tpu.memory_space<vmem>> -> memref<1x128x256xbf16, #tpu.memory_space<vmem>>
    %157 = tpu.memref_squeeze %156 : memref<1x128x256xbf16, #tpu.memory_space<vmem>> -> memref<128x256xbf16, #tpu.memory_space<vmem>>
    %158 = tpu.memref_slice %arg10[%c1_i32_129, %c0_i32_130] : memref<3x2x!tpu.dma_semaphore, #tpu.memory_space<semaphore_mem>> -> memref<1x1x!tpu.dma_semaphore, #tpu.memory_space<semaphore_mem>>
    %159 = tpu.memref_squeeze %158 : memref<1x1x!tpu.dma_semaphore, #tpu.memory_space<semaphore_mem>> -> memref<!tpu.dma_semaphore, #tpu.memory_space<semaphore_mem>>
    tpu.enqueue_dma source(%155 : memref<128x256xbf16, #tpu.memory_space<any>>) target(%157 : memref<128x256xbf16, #tpu.memory_space<vmem>>) target_semaphore(%159 : memref<!tpu.dma_semaphore, #tpu.memory_space<semaphore_mem>>)
    %c2_i32_135 = arith.constant 2 : i32
    %c0_i32_136 = arith.constant 0 : i32
    %c2_i32_137 = arith.constant 2 : i32
    %c0_i32_138 = arith.constant 0 : i32
    %c0_i32_139 = arith.constant 0 : i32
    %c0_i32_140 = arith.constant 0 : i32
    %160 = tpu.memref_slice %arg4[%c2_i32_135, %c0_i32_139, %c0_i32_140] : memref<6x256x128xbf16, #tpu.memory_space<any>> -> memref<1x256x128xbf16, #tpu.memory_space<any>>
    %161 = tpu.memref_squeeze %160 : memref<1x256x128xbf16, #tpu.memory_space<any>> -> memref<256x128xbf16, #tpu.memory_space<any>>
    %c0_i32_141 = arith.constant 0 : i32
    %c0_i32_142 = arith.constant 0 : i32
    %162 = tpu.memref_slice %arg9[%c0_i32_136, %c0_i32_141, %c0_i32_142] : memref<2x256x128xbf16, #tpu.memory_space<vmem>> -> memref<1x256x128xbf16, #tpu.memory_space<vmem>>
    %163 = tpu.memref_squeeze %162 : memref<1x256x128xbf16, #tpu.memory_space<vmem>> -> memref<256x128xbf16, #tpu.memory_space<vmem>>
    %164 = tpu.memref_slice %arg10[%c2_i32_137, %c0_i32_138] : memref<3x2x!tpu.dma_semaphore, #tpu.memory_space<semaphore_mem>> -> memref<1x1x!tpu.dma_semaphore, #tpu.memory_space<semaphore_mem>>
    %165 = tpu.memref_squeeze %164 : memref<1x1x!tpu.dma_semaphore, #tpu.memory_space<semaphore_mem>> -> memref<!tpu.dma_semaphore, #tpu.memory_space<semaphore_mem>>
    tpu.enqueue_dma source(%161 : memref<256x128xbf16, #tpu.memory_space<any>>) target(%163 : memref<256x128xbf16, #tpu.memory_space<vmem>>) target_semaphore(%165 : memref<!tpu.dma_semaphore, #tpu.memory_space<semaphore_mem>>)
    %c1 = arith.constant 1 : index
    %c0_143 = arith.constant 0 : index
    %c0_144 = arith.constant 0 : index
    %166 = vector.load %arg5[%c1, %c0_143, %c0_144] : memref<6x8x256xf32, #tpu.memory_space<vmem>>, vector<1x8x256xf32>
    %167 = vector.shape_cast %166 : vector<1x8x256xf32> to vector<8x256xf32>
    %168 = vector.extract_strided_slice %167 {offsets = [0, 0], sizes = [1, 128], strides = [1, 1]} : vector<8x256xf32> to vector<1x128xf32>
    %169 = vector.extract_strided_slice %167 {offsets = [1, 0], sizes = [1, 256], strides = [1, 1]} : vector<8x256xf32> to vector<1x256xf32>
    %170 = vector.extract_strided_slice %167 {offsets = [2, 0], sizes = [1, 128], strides = [1, 1]} : vector<8x256xf32> to vector<1x128xf32>
    %171 = vector.extract_strided_slice %167 {offsets = [3, 0], sizes = [1, 128], strides = [1, 1]} : vector<8x256xf32> to vector<1x128xf32>
    %172 = vector.extract_strided_slice %167 {offsets = [4, 0], sizes = [1, 128], strides = [1, 1]} : vector<8x256xf32> to vector<1x128xf32>
    %173 = vector.extract_strided_slice %167 {offsets = [5, 0], sizes = [1, 128], strides = [1, 1]} : vector<8x256xf32> to vector<1x128xf32>
    %174 = vector.extract_strided_slice %167 {offsets = [6, 0], sizes = [1, 128], strides = [1, 1]} : vector<8x256xf32> to vector<1x128xf32>
    %175 = arith.truncf %129 : vector<8x128xf32> to vector<8x128xbf16>
    %c1_145 = arith.constant 1 : index
    %c0_146 = arith.constant 0 : index
    %c0_147 = arith.constant 0 : index
    %176 = vector.load %arg7[%c1_145, %c0_146, %c0_147] : memref<2x128x128xbf16, #tpu.memory_space<vmem>>, vector<1x128x128xbf16>
    %177 = vector.shape_cast %176 : vector<1x128x128xbf16> to vector<128x128xbf16>
    %cst_148 = arith.constant dense<0.000000e+00> : vector<8x128xf32>
    %178 = tpu.matmul %175, %177, %cst_148 {dimension_numbers = #tpu.dot_dimension_numbers<[1], [0], [0], [1], [0, 0, 1, 1], [], []>} : vector<8x128xbf16>, vector<128x128xbf16>, vector<8x128xf32> -> vector<8x128xf32>
    %179 = vector.broadcast %168 : vector<1x128xf32> to vector<8x128xf32>
    %180 = arith.addf %178, %179 : vector<8x128xf32>
    %181 = arith.addf %129, %180 : vector<8x128xf32>
    %cst_149 = arith.constant dense<0.000000e+00> : vector<8xf32>
    %182 = vector.multi_reduction <add>, %181, %cst_149 [1] : vector<8x128xf32> to vector<8xf32>
    %183 = vector.shape_cast %182 : vector<8xf32> to vector<8x1xf32>
    %cst_150 = arith.constant 1.280000e+02 : f32
    %184 = vector.broadcast %cst_150 : f32 to vector<8x1xf32>
    %185 = arith.divf %183, %184 : vector<8x1xf32>
    %186 = vector.broadcast %185 : vector<8x1xf32> to vector<8x128xf32>
    %187 = arith.subf %181, %186 : vector<8x128xf32>
    %188 = arith.mulf %187, %187 : vector<8x128xf32>
    %cst_151 = arith.constant dense<0.000000e+00> : vector<8xf32>
    %189 = vector.multi_reduction <add>, %188, %cst_151 [1] : vector<8x128xf32> to vector<8xf32>
    %190 = vector.shape_cast %189 : vector<8xf32> to vector<8x1xf32>
    %cst_152 = arith.constant 1.280000e+02 : f32
    %191 = vector.broadcast %cst_152 : f32 to vector<8x1xf32>
    %192 = arith.divf %190, %191 : vector<8x1xf32>
    %193 = vector.broadcast %185 : vector<8x1xf32> to vector<8x128xf32>
    %194 = arith.subf %181, %193 : vector<8x128xf32>
    %cst_153 = arith.constant 9.99999974E-6 : f32
    %195 = vector.broadcast %cst_153 : f32 to vector<8x1xf32>
    %196 = arith.addf %192, %195 : vector<8x1xf32>
    %197 = math.rsqrt %196 : vector<8x1xf32>
    %198 = vector.broadcast %197 : vector<8x1xf32> to vector<8x128xf32>
    %199 = arith.mulf %194, %198 : vector<8x128xf32>
    %200 = vector.broadcast %171 : vector<1x128xf32> to vector<8x128xf32>
    %201 = arith.mulf %199, %200 : vector<8x128xf32>
    %202 = vector.broadcast %172 : vector<1x128xf32> to vector<8x128xf32>
    %203 = arith.addf %201, %202 : vector<8x128xf32>
    %204 = arith.truncf %203 : vector<8x128xf32> to vector<8x128xbf16>
    %c1_154 = arith.constant 1 : index
    %c0_155 = arith.constant 0 : index
    %c0_156 = arith.constant 0 : index
    %205 = vector.load %arg8[%c1_154, %c0_155, %c0_156] : memref<2x128x256xbf16, #tpu.memory_space<vmem>>, vector<1x128x256xbf16>
    %206 = vector.shape_cast %205 : vector<1x128x256xbf16> to vector<128x256xbf16>
    %cst_157 = arith.constant dense<0.000000e+00> : vector<8x256xf32>
    %207 = tpu.matmul %204, %206, %cst_157 {dimension_numbers = #tpu.dot_dimension_numbers<[1], [0], [0], [1], [0, 0, 1, 1], [], []>} : vector<8x128xbf16>, vector<128x256xbf16>, vector<8x256xf32> -> vector<8x256xf32>
    %208 = vector.broadcast %169 : vector<1x256xf32> to vector<8x256xf32>
    %209 = arith.addf %207, %208 : vector<8x256xf32>
    %cst_158 = arith.constant 0.000000e+00 : f32
    %210 = vector.broadcast %cst_158 : f32 to vector<8x256xf32>
    %211 = arith.maximumf %209, %210 : vector<8x256xf32>
    %212 = arith.truncf %211 : vector<8x256xf32> to vector<8x256xbf16>
    %c1_159 = arith.constant 1 : index
    %c0_160 = arith.constant 0 : index
    %c0_161 = arith.constant 0 : index
    %213 = vector.load %arg9[%c1_159, %c0_160, %c0_161] : memref<2x256x128xbf16, #tpu.memory_space<vmem>>, vector<1x256x128xbf16>
    %214 = vector.shape_cast %213 : vector<1x256x128xbf16> to vector<256x128xbf16>
    %cst_162 = arith.constant dense<0.000000e+00> : vector<8x128xf32>
    %215 = tpu.matmul %212, %214, %cst_162 {dimension_numbers = #tpu.dot_dimension_numbers<[1], [0], [0], [1], [0, 0, 1, 1], [], []>} : vector<8x256xbf16>, vector<256x128xbf16>, vector<8x128xf32> -> vector<8x128xf32>
    %216 = vector.broadcast %170 : vector<1x128xf32> to vector<8x128xf32>
    %217 = arith.addf %215, %216 : vector<8x128xf32>
    %218 = arith.addf %203, %217 : vector<8x128xf32>
    %cst_163 = arith.constant dense<0.000000e+00> : vector<8xf32>
    %219 = vector.multi_reduction <add>, %218, %cst_163 [1] : vector<8x128xf32> to vector<8xf32>
    %220 = vector.shape_cast %219 : vector<8xf32> to vector<8x1xf32>
    %cst_164 = arith.constant 1.280000e+02 : f32
    %221 = vector.broadcast %cst_164 : f32 to vector<8x1xf32>
    %222 = arith.divf %220, %221 : vector<8x1xf32>
    %223 = vector.broadcast %222 : vector<8x1xf32> to vector<8x128xf32>
    %224 = arith.subf %218, %223 : vector<8x128xf32>
    %225 = arith.mulf %224, %224 : vector<8x128xf32>
    %cst_165 = arith.constant dense<0.000000e+00> : vector<8xf32>
    %226 = vector.multi_reduction <add>, %225, %cst_165 [1] : vector<8x128xf32> to vector<8xf32>
    %227 = vector.shape_cast %226 : vector<8xf32> to vector<8x1xf32>
    %cst_166 = arith.constant 1.280000e+02 : f32
    %228 = vector.broadcast %cst_166 : f32 to vector<8x1xf32>
    %229 = arith.divf %227, %228 : vector<8x1xf32>
    %230 = vector.broadcast %222 : vector<8x1xf32> to vector<8x128xf32>
    %231 = arith.subf %218, %230 : vector<8x128xf32>
    %cst_167 = arith.constant 9.99999974E-6 : f32
    %232 = vector.broadcast %cst_167 : f32 to vector<8x1xf32>
    %233 = arith.addf %229, %232 : vector<8x1xf32>
    %234 = math.rsqrt %233 : vector<8x1xf32>
    %235 = vector.broadcast %234 : vector<8x1xf32> to vector<8x128xf32>
    %236 = arith.mulf %231, %235 : vector<8x128xf32>
    %237 = vector.broadcast %173 : vector<1x128xf32> to vector<8x128xf32>
    %238 = arith.mulf %236, %237 : vector<8x128xf32>
    %239 = vector.broadcast %174 : vector<1x128xf32> to vector<8x128xf32>
    %240 = arith.addf %238, %239 : vector<8x128xf32>
    %c0_i32_168 = arith.constant 0 : i32
    %c0_i32_169 = arith.constant 0 : i32
    %c0_i32_170 = arith.constant 0 : i32
    %c0_i32_171 = arith.constant 0 : i32
    %c0_i32_172 = arith.constant 0 : i32
    %c0_i32_173 = arith.constant 0 : i32
    %241 = tpu.memref_slice %arg2[%c0_i32_168, %c0_i32_172, %c0_i32_173] : memref<6x128x128xbf16, #tpu.memory_space<any>> -> memref<1x128x128xbf16, #tpu.memory_space<any>>
    %242 = tpu.memref_squeeze %241 : memref<1x128x128xbf16, #tpu.memory_space<any>> -> memref<128x128xbf16, #tpu.memory_space<any>>
    %c0_i32_174 = arith.constant 0 : i32
    %c0_i32_175 = arith.constant 0 : i32
    %243 = tpu.memref_slice %arg7[%c0_i32_169, %c0_i32_174, %c0_i32_175] : memref<2x128x128xbf16, #tpu.memory_space<vmem>> -> memref<1x128x128xbf16, #tpu.memory_space<vmem>>
    %244 = tpu.memref_squeeze %243 : memref<1x128x128xbf16, #tpu.memory_space<vmem>> -> memref<128x128xbf16, #tpu.memory_space<vmem>>
    %245 = tpu.memref_slice %arg10[%c0_i32_170, %c0_i32_171] : memref<3x2x!tpu.dma_semaphore, #tpu.memory_space<semaphore_mem>> -> memref<1x1x!tpu.dma_semaphore, #tpu.memory_space<semaphore_mem>>
    %246 = tpu.memref_squeeze %245 : memref<1x1x!tpu.dma_semaphore, #tpu.memory_space<semaphore_mem>> -> memref<!tpu.dma_semaphore, #tpu.memory_space<semaphore_mem>>
    tpu.wait_dma2 semaphore(%246 : memref<!tpu.dma_semaphore, #tpu.memory_space<semaphore_mem>>) src(%242 : memref<128x128xbf16, #tpu.memory_space<any>>) dst(%244 : memref<128x128xbf16, #tpu.memory_space<vmem>>)
    %c0_i32_176 = arith.constant 0 : i32
    %c0_i32_177 = arith.constant 0 : i32
    %c1_i32_178 = arith.constant 1 : i32
    %c0_i32_179 = arith.constant 0 : i32
    %c0_i32_180 = arith.constant 0 : i32
    %c0_i32_181 = arith.constant 0 : i32
    %247 = tpu.memref_slice %arg3[%c0_i32_176, %c0_i32_180, %c0_i32_181] : memref<6x128x256xbf16, #tpu.memory_space<any>> -> memref<1x128x256xbf16, #tpu.memory_space<any>>
    %248 = tpu.memref_squeeze %247 : memref<1x128x256xbf16, #tpu.memory_space<any>> -> memref<128x256xbf16, #tpu.memory_space<any>>
    %c0_i32_182 = arith.constant 0 : i32
    %c0_i32_183 = arith.constant 0 : i32
    %249 = tpu.memref_slice %arg8[%c0_i32_177, %c0_i32_182, %c0_i32_183] : memref<2x128x256xbf16, #tpu.memory_space<vmem>> -> memref<1x128x256xbf16, #tpu.memory_space<vmem>>
    %250 = tpu.memref_squeeze %249 : memref<1x128x256xbf16, #tpu.memory_space<vmem>> -> memref<128x256xbf16, #tpu.memory_space<vmem>>
    %251 = tpu.memref_slice %arg10[%c1_i32_178, %c0_i32_179] : memref<3x2x!tpu.dma_semaphore, #tpu.memory_space<semaphore_mem>> -> memref<1x1x!tpu.dma_semaphore, #tpu.memory_space<semaphore_mem>>
    %252 = tpu.memref_squeeze %251 : memref<1x1x!tpu.dma_semaphore, #tpu.memory_space<semaphore_mem>> -> memref<!tpu.dma_semaphore, #tpu.memory_space<semaphore_mem>>
    tpu.wait_dma2 semaphore(%252 : memref<!tpu.dma_semaphore, #tpu.memory_space<semaphore_mem>>) src(%248 : memref<128x256xbf16, #tpu.memory_space<any>>) dst(%250 : memref<128x256xbf16, #tpu.memory_space<vmem>>)
    %c0_i32_184 = arith.constant 0 : i32
    %c0_i32_185 = arith.constant 0 : i32
    %c2_i32_186 = arith.constant 2 : i32
    %c0_i32_187 = arith.constant 0 : i32
    %c0_i32_188 = arith.constant 0 : i32
    %c0_i32_189 = arith.constant 0 : i32
    %253 = tpu.memref_slice %arg4[%c0_i32_184, %c0_i32_188, %c0_i32_189] : memref<6x256x128xbf16, #tpu.memory_space<any>> -> memref<1x256x128xbf16, #tpu.memory_space<any>>
    %254 = tpu.memref_squeeze %253 : memref<1x256x128xbf16, #tpu.memory_space<any>> -> memref<256x128xbf16, #tpu.memory_space<any>>
    %c0_i32_190 = arith.constant 0 : i32
    %c0_i32_191 = arith.constant 0 : i32
    %255 = tpu.memref_slice %arg9[%c0_i32_185, %c0_i32_190, %c0_i32_191] : memref<2x256x128xbf16, #tpu.memory_space<vmem>> -> memref<1x256x128xbf16, #tpu.memory_space<vmem>>
    %256 = tpu.memref_squeeze %255 : memref<1x256x128xbf16, #tpu.memory_space<vmem>> -> memref<256x128xbf16, #tpu.memory_space<vmem>>
    %257 = tpu.memref_slice %arg10[%c2_i32_186, %c0_i32_187] : memref<3x2x!tpu.dma_semaphore, #tpu.memory_space<semaphore_mem>> -> memref<1x1x!tpu.dma_semaphore, #tpu.memory_space<semaphore_mem>>
    %258 = tpu.memref_squeeze %257 : memref<1x1x!tpu.dma_semaphore, #tpu.memory_space<semaphore_mem>> -> memref<!tpu.dma_semaphore, #tpu.memory_space<semaphore_mem>>
    tpu.wait_dma2 semaphore(%258 : memref<!tpu.dma_semaphore, #tpu.memory_space<semaphore_mem>>) src(%254 : memref<256x128xbf16, #tpu.memory_space<any>>) dst(%256 : memref<256x128xbf16, #tpu.memory_space<vmem>>)
    %c3_i32 = arith.constant 3 : i32
    %c1_i32_192 = arith.constant 1 : i32
    %c0_i32_193 = arith.constant 0 : i32
    %c1_i32_194 = arith.constant 1 : i32
    %c0_i32_195 = arith.constant 0 : i32
    %c0_i32_196 = arith.constant 0 : i32
    %259 = tpu.memref_slice %arg2[%c3_i32, %c0_i32_195, %c0_i32_196] : memref<6x128x128xbf16, #tpu.memory_space<any>> -> memref<1x128x128xbf16, #tpu.memory_space<any>>
    %260 = tpu.memref_squeeze %259 : memref<1x128x128xbf16, #tpu.memory_space<any>> -> memref<128x128xbf16, #tpu.memory_space<any>>
    %c0_i32_197 = arith.constant 0 : i32
    %c0_i32_198 = arith.constant 0 : i32
    %261 = tpu.memref_slice %arg7[%c1_i32_192, %c0_i32_197, %c0_i32_198] : memref<2x128x128xbf16, #tpu.memory_space<vmem>> -> memref<1x128x128xbf16, #tpu.memory_space<vmem>>
    %262 = tpu.memref_squeeze %261 : memref<1x128x128xbf16, #tpu.memory_space<vmem>> -> memref<128x128xbf16, #tpu.memory_space<vmem>>
    %263 = tpu.memref_slice %arg10[%c0_i32_193, %c1_i32_194] : memref<3x2x!tpu.dma_semaphore, #tpu.memory_space<semaphore_mem>> -> memref<1x1x!tpu.dma_semaphore, #tpu.memory_space<semaphore_mem>>
    %264 = tpu.memref_squeeze %263 : memref<1x1x!tpu.dma_semaphore, #tpu.memory_space<semaphore_mem>> -> memref<!tpu.dma_semaphore, #tpu.memory_space<semaphore_mem>>
    tpu.enqueue_dma source(%260 : memref<128x128xbf16, #tpu.memory_space<any>>) target(%262 : memref<128x128xbf16, #tpu.memory_space<vmem>>) target_semaphore(%264 : memref<!tpu.dma_semaphore, #tpu.memory_space<semaphore_mem>>)
    %c3_i32_199 = arith.constant 3 : i32
    %c1_i32_200 = arith.constant 1 : i32
    %c1_i32_201 = arith.constant 1 : i32
    %c1_i32_202 = arith.constant 1 : i32
    %c0_i32_203 = arith.constant 0 : i32
    %c0_i32_204 = arith.constant 0 : i32
    %265 = tpu.memref_slice %arg3[%c3_i32_199, %c0_i32_203, %c0_i32_204] : memref<6x128x256xbf16, #tpu.memory_space<any>> -> memref<1x128x256xbf16, #tpu.memory_space<any>>
    %266 = tpu.memref_squeeze %265 : memref<1x128x256xbf16, #tpu.memory_space<any>> -> memref<128x256xbf16, #tpu.memory_space<any>>
    %c0_i32_205 = arith.constant 0 : i32
    %c0_i32_206 = arith.constant 0 : i32
    %267 = tpu.memref_slice %arg8[%c1_i32_200, %c0_i32_205, %c0_i32_206] : memref<2x128x256xbf16, #tpu.memory_space<vmem>> -> memref<1x128x256xbf16, #tpu.memory_space<vmem>>
    %268 = tpu.memref_squeeze %267 : memref<1x128x256xbf16, #tpu.memory_space<vmem>> -> memref<128x256xbf16, #tpu.memory_space<vmem>>
    %269 = tpu.memref_slice %arg10[%c1_i32_201, %c1_i32_202] : memref<3x2x!tpu.dma_semaphore, #tpu.memory_space<semaphore_mem>> -> memref<1x1x!tpu.dma_semaphore, #tpu.memory_space<semaphore_mem>>
    %270 = tpu.memref_squeeze %269 : memref<1x1x!tpu.dma_semaphore, #tpu.memory_space<semaphore_mem>> -> memref<!tpu.dma_semaphore, #tpu.memory_space<semaphore_mem>>
    tpu.enqueue_dma source(%266 : memref<128x256xbf16, #tpu.memory_space<any>>) target(%268 : memref<128x256xbf16, #tpu.memory_space<vmem>>) target_semaphore(%270 : memref<!tpu.dma_semaphore, #tpu.memory_space<semaphore_mem>>)
    %c3_i32_207 = arith.constant 3 : i32
    %c1_i32_208 = arith.constant 1 : i32
    %c2_i32_209 = arith.constant 2 : i32
    %c1_i32_210 = arith.constant 1 : i32
    %c0_i32_211 = arith.constant 0 : i32
    %c0_i32_212 = arith.constant 0 : i32
    %271 = tpu.memref_slice %arg4[%c3_i32_207, %c0_i32_211, %c0_i32_212] : memref<6x256x128xbf16, #tpu.memory_space<any>> -> memref<1x256x128xbf16, #tpu.memory_space<any>>
    %272 = tpu.memref_squeeze %271 : memref<1x256x128xbf16, #tpu.memory_space<any>> -> memref<256x128xbf16, #tpu.memory_space<any>>
    %c0_i32_213 = arith.constant 0 : i32
    %c0_i32_214 = arith.constant 0 : i32
    %273 = tpu.memref_slice %arg9[%c1_i32_208, %c0_i32_213, %c0_i32_214] : memref<2x256x128xbf16, #tpu.memory_space<vmem>> -> memref<1x256x128xbf16, #tpu.memory_space<vmem>>
    %274 = tpu.memref_squeeze %273 : memref<1x256x128xbf16, #tpu.memory_space<vmem>> -> memref<256x128xbf16, #tpu.memory_space<vmem>>
    %275 = tpu.memref_slice %arg10[%c2_i32_209, %c1_i32_210] : memref<3x2x!tpu.dma_semaphore, #tpu.memory_space<semaphore_mem>> -> memref<1x1x!tpu.dma_semaphore, #tpu.memory_space<semaphore_mem>>
    %276 = tpu.memref_squeeze %275 : memref<1x1x!tpu.dma_semaphore, #tpu.memory_space<semaphore_mem>> -> memref<!tpu.dma_semaphore, #tpu.memory_space<semaphore_mem>>
    tpu.enqueue_dma source(%272 : memref<256x128xbf16, #tpu.memory_space<any>>) target(%274 : memref<256x128xbf16, #tpu.memory_space<vmem>>) target_semaphore(%276 : memref<!tpu.dma_semaphore, #tpu.memory_space<semaphore_mem>>)
    %c2 = arith.constant 2 : index
    %c0_215 = arith.constant 0 : index
    %c0_216 = arith.constant 0 : index
    %277 = vector.load %arg5[%c2, %c0_215, %c0_216] : memref<6x8x256xf32, #tpu.memory_space<vmem>>, vector<1x8x256xf32>
    %278 = vector.shape_cast %277 : vector<1x8x256xf32> to vector<8x256xf32>
    %279 = vector.extract_strided_slice %278 {offsets = [0, 0], sizes = [1, 128], strides = [1, 1]} : vector<8x256xf32> to vector<1x128xf32>
    %280 = vector.extract_strided_slice %278 {offsets = [1, 0], sizes = [1, 256], strides = [1, 1]} : vector<8x256xf32> to vector<1x256xf32>
    %281 = vector.extract_strided_slice %278 {offsets = [2, 0], sizes = [1, 128], strides = [1, 1]} : vector<8x256xf32> to vector<1x128xf32>
    %282 = vector.extract_strided_slice %278 {offsets = [3, 0], sizes = [1, 128], strides = [1, 1]} : vector<8x256xf32> to vector<1x128xf32>
    %283 = vector.extract_strided_slice %278 {offsets = [4, 0], sizes = [1, 128], strides = [1, 1]} : vector<8x256xf32> to vector<1x128xf32>
    %284 = vector.extract_strided_slice %278 {offsets = [5, 0], sizes = [1, 128], strides = [1, 1]} : vector<8x256xf32> to vector<1x128xf32>
    %285 = vector.extract_strided_slice %278 {offsets = [6, 0], sizes = [1, 128], strides = [1, 1]} : vector<8x256xf32> to vector<1x128xf32>
    %286 = arith.truncf %240 : vector<8x128xf32> to vector<8x128xbf16>
    %c0_217 = arith.constant 0 : index
    %c0_218 = arith.constant 0 : index
    %c0_219 = arith.constant 0 : index
    %287 = vector.load %arg7[%c0_217, %c0_218, %c0_219] : memref<2x128x128xbf16, #tpu.memory_space<vmem>>, vector<1x128x128xbf16>
    %288 = vector.shape_cast %287 : vector<1x128x128xbf16> to vector<128x128xbf16>
    %cst_220 = arith.constant dense<0.000000e+00> : vector<8x128xf32>
    %289 = tpu.matmul %286, %288, %cst_220 {dimension_numbers = #tpu.dot_dimension_numbers<[1], [0], [0], [1], [0, 0, 1, 1], [], []>} : vector<8x128xbf16>, vector<128x128xbf16>, vector<8x128xf32> -> vector<8x128xf32>
    %290 = vector.broadcast %279 : vector<1x128xf32> to vector<8x128xf32>
    %291 = arith.addf %289, %290 : vector<8x128xf32>
    %292 = arith.addf %240, %291 : vector<8x128xf32>
    %cst_221 = arith.constant dense<0.000000e+00> : vector<8xf32>
    %293 = vector.multi_reduction <add>, %292, %cst_221 [1] : vector<8x128xf32> to vector<8xf32>
    %294 = vector.shape_cast %293 : vector<8xf32> to vector<8x1xf32>
    %cst_222 = arith.constant 1.280000e+02 : f32
    %295 = vector.broadcast %cst_222 : f32 to vector<8x1xf32>
    %296 = arith.divf %294, %295 : vector<8x1xf32>
    %297 = vector.broadcast %296 : vector<8x1xf32> to vector<8x128xf32>
    %298 = arith.subf %292, %297 : vector<8x128xf32>
    %299 = arith.mulf %298, %298 : vector<8x128xf32>
    %cst_223 = arith.constant dense<0.000000e+00> : vector<8xf32>
    %300 = vector.multi_reduction <add>, %299, %cst_223 [1] : vector<8x128xf32> to vector<8xf32>
    %301 = vector.shape_cast %300 : vector<8xf32> to vector<8x1xf32>
    %cst_224 = arith.constant 1.280000e+02 : f32
    %302 = vector.broadcast %cst_224 : f32 to vector<8x1xf32>
    %303 = arith.divf %301, %302 : vector<8x1xf32>
    %304 = vector.broadcast %296 : vector<8x1xf32> to vector<8x128xf32>
    %305 = arith.subf %292, %304 : vector<8x128xf32>
    %cst_225 = arith.constant 9.99999974E-6 : f32
    %306 = vector.broadcast %cst_225 : f32 to vector<8x1xf32>
    %307 = arith.addf %303, %306 : vector<8x1xf32>
    %308 = math.rsqrt %307 : vector<8x1xf32>
    %309 = vector.broadcast %308 : vector<8x1xf32> to vector<8x128xf32>
    %310 = arith.mulf %305, %309 : vector<8x128xf32>
    %311 = vector.broadcast %282 : vector<1x128xf32> to vector<8x128xf32>
    %312 = arith.mulf %310, %311 : vector<8x128xf32>
    %313 = vector.broadcast %283 : vector<1x128xf32> to vector<8x128xf32>
    %314 = arith.addf %312, %313 : vector<8x128xf32>
    %315 = arith.truncf %314 : vector<8x128xf32> to vector<8x128xbf16>
    %c0_226 = arith.constant 0 : index
    %c0_227 = arith.constant 0 : index
    %c0_228 = arith.constant 0 : index
    %316 = vector.load %arg8[%c0_226, %c0_227, %c0_228] : memref<2x128x256xbf16, #tpu.memory_space<vmem>>, vector<1x128x256xbf16>
    %317 = vector.shape_cast %316 : vector<1x128x256xbf16> to vector<128x256xbf16>
    %cst_229 = arith.constant dense<0.000000e+00> : vector<8x256xf32>
    %318 = tpu.matmul %315, %317, %cst_229 {dimension_numbers = #tpu.dot_dimension_numbers<[1], [0], [0], [1], [0, 0, 1, 1], [], []>} : vector<8x128xbf16>, vector<128x256xbf16>, vector<8x256xf32> -> vector<8x256xf32>
    %319 = vector.broadcast %280 : vector<1x256xf32> to vector<8x256xf32>
    %320 = arith.addf %318, %319 : vector<8x256xf32>
    %cst_230 = arith.constant 0.000000e+00 : f32
    %321 = vector.broadcast %cst_230 : f32 to vector<8x256xf32>
    %322 = arith.maximumf %320, %321 : vector<8x256xf32>
    %323 = arith.truncf %322 : vector<8x256xf32> to vector<8x256xbf16>
    %c0_231 = arith.constant 0 : index
    %c0_232 = arith.constant 0 : index
    %c0_233 = arith.constant 0 : index
    %324 = vector.load %arg9[%c0_231, %c0_232, %c0_233] : memref<2x256x128xbf16, #tpu.memory_space<vmem>>, vector<1x256x128xbf16>
    %325 = vector.shape_cast %324 : vector<1x256x128xbf16> to vector<256x128xbf16>
    %cst_234 = arith.constant dense<0.000000e+00> : vector<8x128xf32>
    %326 = tpu.matmul %323, %325, %cst_234 {dimension_numbers = #tpu.dot_dimension_numbers<[1], [0], [0], [1], [0, 0, 1, 1], [], []>} : vector<8x256xbf16>, vector<256x128xbf16>, vector<8x128xf32> -> vector<8x128xf32>
    %327 = vector.broadcast %281 : vector<1x128xf32> to vector<8x128xf32>
    %328 = arith.addf %326, %327 : vector<8x128xf32>
    %329 = arith.addf %314, %328 : vector<8x128xf32>
    %cst_235 = arith.constant dense<0.000000e+00> : vector<8xf32>
    %330 = vector.multi_reduction <add>, %329, %cst_235 [1] : vector<8x128xf32> to vector<8xf32>
    %331 = vector.shape_cast %330 : vector<8xf32> to vector<8x1xf32>
    %cst_236 = arith.constant 1.280000e+02 : f32
    %332 = vector.broadcast %cst_236 : f32 to vector<8x1xf32>
    %333 = arith.divf %331, %332 : vector<8x1xf32>
    %334 = vector.broadcast %333 : vector<8x1xf32> to vector<8x128xf32>
    %335 = arith.subf %329, %334 : vector<8x128xf32>
    %336 = arith.mulf %335, %335 : vector<8x128xf32>
    %cst_237 = arith.constant dense<0.000000e+00> : vector<8xf32>
    %337 = vector.multi_reduction <add>, %336, %cst_237 [1] : vector<8x128xf32> to vector<8xf32>
    %338 = vector.shape_cast %337 : vector<8xf32> to vector<8x1xf32>
    %cst_238 = arith.constant 1.280000e+02 : f32
    %339 = vector.broadcast %cst_238 : f32 to vector<8x1xf32>
    %340 = arith.divf %338, %339 : vector<8x1xf32>
    %341 = vector.broadcast %333 : vector<8x1xf32> to vector<8x128xf32>
    %342 = arith.subf %329, %341 : vector<8x128xf32>
    %cst_239 = arith.constant 9.99999974E-6 : f32
    %343 = vector.broadcast %cst_239 : f32 to vector<8x1xf32>
    %344 = arith.addf %340, %343 : vector<8x1xf32>
    %345 = math.rsqrt %344 : vector<8x1xf32>
    %346 = vector.broadcast %345 : vector<8x1xf32> to vector<8x128xf32>
    %347 = arith.mulf %342, %346 : vector<8x128xf32>
    %348 = vector.broadcast %284 : vector<1x128xf32> to vector<8x128xf32>
    %349 = arith.mulf %347, %348 : vector<8x128xf32>
    %350 = vector.broadcast %285 : vector<1x128xf32> to vector<8x128xf32>
    %351 = arith.addf %349, %350 : vector<8x128xf32>
    %c0_i32_240 = arith.constant 0 : i32
    %c1_i32_241 = arith.constant 1 : i32
    %c0_i32_242 = arith.constant 0 : i32
    %c1_i32_243 = arith.constant 1 : i32
    %c0_i32_244 = arith.constant 0 : i32
    %c0_i32_245 = arith.constant 0 : i32
    %352 = tpu.memref_slice %arg2[%c0_i32_240, %c0_i32_244, %c0_i32_245] : memref<6x128x128xbf16, #tpu.memory_space<any>> -> memref<1x128x128xbf16, #tpu.memory_space<any>>
    %353 = tpu.memref_squeeze %352 : memref<1x128x128xbf16, #tpu.memory_space<any>> -> memref<128x128xbf16, #tpu.memory_space<any>>
    %c0_i32_246 = arith.constant 0 : i32
    %c0_i32_247 = arith.constant 0 : i32
    %354 = tpu.memref_slice %arg7[%c1_i32_241, %c0_i32_246, %c0_i32_247] : memref<2x128x128xbf16, #tpu.memory_space<vmem>> -> memref<1x128x128xbf16, #tpu.memory_space<vmem>>
    %355 = tpu.memref_squeeze %354 : memref<1x128x128xbf16, #tpu.memory_space<vmem>> -> memref<128x128xbf16, #tpu.memory_space<vmem>>
    %356 = tpu.memref_slice %arg10[%c0_i32_242, %c1_i32_243] : memref<3x2x!tpu.dma_semaphore, #tpu.memory_space<semaphore_mem>> -> memref<1x1x!tpu.dma_semaphore, #tpu.memory_space<semaphore_mem>>
    %357 = tpu.memref_squeeze %356 : memref<1x1x!tpu.dma_semaphore, #tpu.memory_space<semaphore_mem>> -> memref<!tpu.dma_semaphore, #tpu.memory_space<semaphore_mem>>
    tpu.wait_dma2 semaphore(%357 : memref<!tpu.dma_semaphore, #tpu.memory_space<semaphore_mem>>) src(%353 : memref<128x128xbf16, #tpu.memory_space<any>>) dst(%355 : memref<128x128xbf16, #tpu.memory_space<vmem>>)
    %c0_i32_248 = arith.constant 0 : i32
    %c1_i32_249 = arith.constant 1 : i32
    %c1_i32_250 = arith.constant 1 : i32
    %c1_i32_251 = arith.constant 1 : i32
    %c0_i32_252 = arith.constant 0 : i32
    %c0_i32_253 = arith.constant 0 : i32
    %358 = tpu.memref_slice %arg3[%c0_i32_248, %c0_i32_252, %c0_i32_253] : memref<6x128x256xbf16, #tpu.memory_space<any>> -> memref<1x128x256xbf16, #tpu.memory_space<any>>
    %359 = tpu.memref_squeeze %358 : memref<1x128x256xbf16, #tpu.memory_space<any>> -> memref<128x256xbf16, #tpu.memory_space<any>>
    %c0_i32_254 = arith.constant 0 : i32
    %c0_i32_255 = arith.constant 0 : i32
    %360 = tpu.memref_slice %arg8[%c1_i32_249, %c0_i32_254, %c0_i32_255] : memref<2x128x256xbf16, #tpu.memory_space<vmem>> -> memref<1x128x256xbf16, #tpu.memory_space<vmem>>
    %361 = tpu.memref_squeeze %360 : memref<1x128x256xbf16, #tpu.memory_space<vmem>> -> memref<128x256xbf16, #tpu.memory_space<vmem>>
    %362 = tpu.memref_slice %arg10[%c1_i32_250, %c1_i32_251] : memref<3x2x!tpu.dma_semaphore, #tpu.memory_space<semaphore_mem>> -> memref<1x1x!tpu.dma_semaphore, #tpu.memory_space<semaphore_mem>>
    %363 = tpu.memref_squeeze %362 : memref<1x1x!tpu.dma_semaphore, #tpu.memory_space<semaphore_mem>> -> memref<!tpu.dma_semaphore, #tpu.memory_space<semaphore_mem>>
    tpu.wait_dma2 semaphore(%363 : memref<!tpu.dma_semaphore, #tpu.memory_space<semaphore_mem>>) src(%359 : memref<128x256xbf16, #tpu.memory_space<any>>) dst(%361 : memref<128x256xbf16, #tpu.memory_space<vmem>>)
    %c0_i32_256 = arith.constant 0 : i32
    %c1_i32_257 = arith.constant 1 : i32
    %c2_i32_258 = arith.constant 2 : i32
    %c1_i32_259 = arith.constant 1 : i32
    %c0_i32_260 = arith.constant 0 : i32
    %c0_i32_261 = arith.constant 0 : i32
    %364 = tpu.memref_slice %arg4[%c0_i32_256, %c0_i32_260, %c0_i32_261] : memref<6x256x128xbf16, #tpu.memory_space<any>> -> memref<1x256x128xbf16, #tpu.memory_space<any>>
    %365 = tpu.memref_squeeze %364 : memref<1x256x128xbf16, #tpu.memory_space<any>> -> memref<256x128xbf16, #tpu.memory_space<any>>
    %c0_i32_262 = arith.constant 0 : i32
    %c0_i32_263 = arith.constant 0 : i32
    %366 = tpu.memref_slice %arg9[%c1_i32_257, %c0_i32_262, %c0_i32_263] : memref<2x256x128xbf16, #tpu.memory_space<vmem>> -> memref<1x256x128xbf16, #tpu.memory_space<vmem>>
    %367 = tpu.memref_squeeze %366 : memref<1x256x128xbf16, #tpu.memory_space<vmem>> -> memref<256x128xbf16, #tpu.memory_space<vmem>>
    %368 = tpu.memref_slice %arg10[%c2_i32_258, %c1_i32_259] : memref<3x2x!tpu.dma_semaphore, #tpu.memory_space<semaphore_mem>> -> memref<1x1x!tpu.dma_semaphore, #tpu.memory_space<semaphore_mem>>
    %369 = tpu.memref_squeeze %368 : memref<1x1x!tpu.dma_semaphore, #tpu.memory_space<semaphore_mem>> -> memref<!tpu.dma_semaphore, #tpu.memory_space<semaphore_mem>>
    tpu.wait_dma2 semaphore(%369 : memref<!tpu.dma_semaphore, #tpu.memory_space<semaphore_mem>>) src(%365 : memref<256x128xbf16, #tpu.memory_space<any>>) dst(%367 : memref<256x128xbf16, #tpu.memory_space<vmem>>)
    %c4_i32 = arith.constant 4 : i32
    %c0_i32_264 = arith.constant 0 : i32
    %c0_i32_265 = arith.constant 0 : i32
    %c0_i32_266 = arith.constant 0 : i32
    %c0_i32_267 = arith.constant 0 : i32
    %c0_i32_268 = arith.constant 0 : i32
    %370 = tpu.memref_slice %arg2[%c4_i32, %c0_i32_267, %c0_i32_268] : memref<6x128x128xbf16, #tpu.memory_space<any>> -> memref<1x128x128xbf16, #tpu.memory_space<any>>
    %371 = tpu.memref_squeeze %370 : memref<1x128x128xbf16, #tpu.memory_space<any>> -> memref<128x128xbf16, #tpu.memory_space<any>>
    %c0_i32_269 = arith.constant 0 : i32
    %c0_i32_270 = arith.constant 0 : i32
    %372 = tpu.memref_slice %arg7[%c0_i32_264, %c0_i32_269, %c0_i32_270] : memref<2x128x128xbf16, #tpu.memory_space<vmem>> -> memref<1x128x128xbf16, #tpu.memory_space<vmem>>
    %373 = tpu.memref_squeeze %372 : memref<1x128x128xbf16, #tpu.memory_space<vmem>> -> memref<128x128xbf16, #tpu.memory_space<vmem>>
    %374 = tpu.memref_slice %arg10[%c0_i32_265, %c0_i32_266] : memref<3x2x!tpu.dma_semaphore, #tpu.memory_space<semaphore_mem>> -> memref<1x1x!tpu.dma_semaphore, #tpu.memory_space<semaphore_mem>>
    %375 = tpu.memref_squeeze %374 : memref<1x1x!tpu.dma_semaphore, #tpu.memory_space<semaphore_mem>> -> memref<!tpu.dma_semaphore, #tpu.memory_space<semaphore_mem>>
    tpu.enqueue_dma source(%371 : memref<128x128xbf16, #tpu.memory_space<any>>) target(%373 : memref<128x128xbf16, #tpu.memory_space<vmem>>) target_semaphore(%375 : memref<!tpu.dma_semaphore, #tpu.memory_space<semaphore_mem>>)
    %c4_i32_271 = arith.constant 4 : i32
    %c0_i32_272 = arith.constant 0 : i32
    %c1_i32_273 = arith.constant 1 : i32
    %c0_i32_274 = arith.constant 0 : i32
    %c0_i32_275 = arith.constant 0 : i32
    %c0_i32_276 = arith.constant 0 : i32
    %376 = tpu.memref_slice %arg3[%c4_i32_271, %c0_i32_275, %c0_i32_276] : memref<6x128x256xbf16, #tpu.memory_space<any>> -> memref<1x128x256xbf16, #tpu.memory_space<any>>
    %377 = tpu.memref_squeeze %376 : memref<1x128x256xbf16, #tpu.memory_space<any>> -> memref<128x256xbf16, #tpu.memory_space<any>>
    %c0_i32_277 = arith.constant 0 : i32
    %c0_i32_278 = arith.constant 0 : i32
    %378 = tpu.memref_slice %arg8[%c0_i32_272, %c0_i32_277, %c0_i32_278] : memref<2x128x256xbf16, #tpu.memory_space<vmem>> -> memref<1x128x256xbf16, #tpu.memory_space<vmem>>
    %379 = tpu.memref_squeeze %378 : memref<1x128x256xbf16, #tpu.memory_space<vmem>> -> memref<128x256xbf16, #tpu.memory_space<vmem>>
    %380 = tpu.memref_slice %arg10[%c1_i32_273, %c0_i32_274] : memref<3x2x!tpu.dma_semaphore, #tpu.memory_space<semaphore_mem>> -> memref<1x1x!tpu.dma_semaphore, #tpu.memory_space<semaphore_mem>>
    %381 = tpu.memref_squeeze %380 : memref<1x1x!tpu.dma_semaphore, #tpu.memory_space<semaphore_mem>> -> memref<!tpu.dma_semaphore, #tpu.memory_space<semaphore_mem>>
    tpu.enqueue_dma source(%377 : memref<128x256xbf16, #tpu.memory_space<any>>) target(%379 : memref<128x256xbf16, #tpu.memory_space<vmem>>) target_semaphore(%381 : memref<!tpu.dma_semaphore, #tpu.memory_space<semaphore_mem>>)
    %c4_i32_279 = arith.constant 4 : i32
    %c0_i32_280 = arith.constant 0 : i32
    %c2_i32_281 = arith.constant 2 : i32
    %c0_i32_282 = arith.constant 0 : i32
    %c0_i32_283 = arith.constant 0 : i32
    %c0_i32_284 = arith.constant 0 : i32
    %382 = tpu.memref_slice %arg4[%c4_i32_279, %c0_i32_283, %c0_i32_284] : memref<6x256x128xbf16, #tpu.memory_space<any>> -> memref<1x256x128xbf16, #tpu.memory_space<any>>
    %383 = tpu.memref_squeeze %382 : memref<1x256x128xbf16, #tpu.memory_space<any>> -> memref<256x128xbf16, #tpu.memory_space<any>>
    %c0_i32_285 = arith.constant 0 : i32
    %c0_i32_286 = arith.constant 0 : i32
    %384 = tpu.memref_slice %arg9[%c0_i32_280, %c0_i32_285, %c0_i32_286] : memref<2x256x128xbf16, #tpu.memory_space<vmem>> -> memref<1x256x128xbf16, #tpu.memory_space<vmem>>
    %385 = tpu.memref_squeeze %384 : memref<1x256x128xbf16, #tpu.memory_space<vmem>> -> memref<256x128xbf16, #tpu.memory_space<vmem>>
    %386 = tpu.memref_slice %arg10[%c2_i32_281, %c0_i32_282] : memref<3x2x!tpu.dma_semaphore, #tpu.memory_space<semaphore_mem>> -> memref<1x1x!tpu.dma_semaphore, #tpu.memory_space<semaphore_mem>>
    %387 = tpu.memref_squeeze %386 : memref<1x1x!tpu.dma_semaphore, #tpu.memory_space<semaphore_mem>> -> memref<!tpu.dma_semaphore, #tpu.memory_space<semaphore_mem>>
    tpu.enqueue_dma source(%383 : memref<256x128xbf16, #tpu.memory_space<any>>) target(%385 : memref<256x128xbf16, #tpu.memory_space<vmem>>) target_semaphore(%387 : memref<!tpu.dma_semaphore, #tpu.memory_space<semaphore_mem>>)
    %c3 = arith.constant 3 : index
    %c0_287 = arith.constant 0 : index
    %c0_288 = arith.constant 0 : index
    %388 = vector.load %arg5[%c3, %c0_287, %c0_288] : memref<6x8x256xf32, #tpu.memory_space<vmem>>, vector<1x8x256xf32>
    %389 = vector.shape_cast %388 : vector<1x8x256xf32> to vector<8x256xf32>
    %390 = vector.extract_strided_slice %389 {offsets = [0, 0], sizes = [1, 128], strides = [1, 1]} : vector<8x256xf32> to vector<1x128xf32>
    %391 = vector.extract_strided_slice %389 {offsets = [1, 0], sizes = [1, 256], strides = [1, 1]} : vector<8x256xf32> to vector<1x256xf32>
    %392 = vector.extract_strided_slice %389 {offsets = [2, 0], sizes = [1, 128], strides = [1, 1]} : vector<8x256xf32> to vector<1x128xf32>
    %393 = vector.extract_strided_slice %389 {offsets = [3, 0], sizes = [1, 128], strides = [1, 1]} : vector<8x256xf32> to vector<1x128xf32>
    %394 = vector.extract_strided_slice %389 {offsets = [4, 0], sizes = [1, 128], strides = [1, 1]} : vector<8x256xf32> to vector<1x128xf32>
    %395 = vector.extract_strided_slice %389 {offsets = [5, 0], sizes = [1, 128], strides = [1, 1]} : vector<8x256xf32> to vector<1x128xf32>
    %396 = vector.extract_strided_slice %389 {offsets = [6, 0], sizes = [1, 128], strides = [1, 1]} : vector<8x256xf32> to vector<1x128xf32>
    %397 = arith.truncf %351 : vector<8x128xf32> to vector<8x128xbf16>
    %c1_289 = arith.constant 1 : index
    %c0_290 = arith.constant 0 : index
    %c0_291 = arith.constant 0 : index
    %398 = vector.load %arg7[%c1_289, %c0_290, %c0_291] : memref<2x128x128xbf16, #tpu.memory_space<vmem>>, vector<1x128x128xbf16>
    %399 = vector.shape_cast %398 : vector<1x128x128xbf16> to vector<128x128xbf16>
    %cst_292 = arith.constant dense<0.000000e+00> : vector<8x128xf32>
    %400 = tpu.matmul %397, %399, %cst_292 {dimension_numbers = #tpu.dot_dimension_numbers<[1], [0], [0], [1], [0, 0, 1, 1], [], []>} : vector<8x128xbf16>, vector<128x128xbf16>, vector<8x128xf32> -> vector<8x128xf32>
    %401 = vector.broadcast %390 : vector<1x128xf32> to vector<8x128xf32>
    %402 = arith.addf %400, %401 : vector<8x128xf32>
    %403 = arith.addf %351, %402 : vector<8x128xf32>
    %cst_293 = arith.constant dense<0.000000e+00> : vector<8xf32>
    %404 = vector.multi_reduction <add>, %403, %cst_293 [1] : vector<8x128xf32> to vector<8xf32>
    %405 = vector.shape_cast %404 : vector<8xf32> to vector<8x1xf32>
    %cst_294 = arith.constant 1.280000e+02 : f32
    %406 = vector.broadcast %cst_294 : f32 to vector<8x1xf32>
    %407 = arith.divf %405, %406 : vector<8x1xf32>
    %408 = vector.broadcast %407 : vector<8x1xf32> to vector<8x128xf32>
    %409 = arith.subf %403, %408 : vector<8x128xf32>
    %410 = arith.mulf %409, %409 : vector<8x128xf32>
    %cst_295 = arith.constant dense<0.000000e+00> : vector<8xf32>
    %411 = vector.multi_reduction <add>, %410, %cst_295 [1] : vector<8x128xf32> to vector<8xf32>
    %412 = vector.shape_cast %411 : vector<8xf32> to vector<8x1xf32>
    %cst_296 = arith.constant 1.280000e+02 : f32
    %413 = vector.broadcast %cst_296 : f32 to vector<8x1xf32>
    %414 = arith.divf %412, %413 : vector<8x1xf32>
    %415 = vector.broadcast %407 : vector<8x1xf32> to vector<8x128xf32>
    %416 = arith.subf %403, %415 : vector<8x128xf32>
    %cst_297 = arith.constant 9.99999974E-6 : f32
    %417 = vector.broadcast %cst_297 : f32 to vector<8x1xf32>
    %418 = arith.addf %414, %417 : vector<8x1xf32>
    %419 = math.rsqrt %418 : vector<8x1xf32>
    %420 = vector.broadcast %419 : vector<8x1xf32> to vector<8x128xf32>
    %421 = arith.mulf %416, %420 : vector<8x128xf32>
    %422 = vector.broadcast %393 : vector<1x128xf32> to vector<8x128xf32>
    %423 = arith.mulf %421, %422 : vector<8x128xf32>
    %424 = vector.broadcast %394 : vector<1x128xf32> to vector<8x128xf32>
    %425 = arith.addf %423, %424 : vector<8x128xf32>
    %426 = arith.truncf %425 : vector<8x128xf32> to vector<8x128xbf16>
    %c1_298 = arith.constant 1 : index
    %c0_299 = arith.constant 0 : index
    %c0_300 = arith.constant 0 : index
    %427 = vector.load %arg8[%c1_298, %c0_299, %c0_300] : memref<2x128x256xbf16, #tpu.memory_space<vmem>>, vector<1x128x256xbf16>
    %428 = vector.shape_cast %427 : vector<1x128x256xbf16> to vector<128x256xbf16>
    %cst_301 = arith.constant dense<0.000000e+00> : vector<8x256xf32>
    %429 = tpu.matmul %426, %428, %cst_301 {dimension_numbers = #tpu.dot_dimension_numbers<[1], [0], [0], [1], [0, 0, 1, 1], [], []>} : vector<8x128xbf16>, vector<128x256xbf16>, vector<8x256xf32> -> vector<8x256xf32>
    %430 = vector.broadcast %391 : vector<1x256xf32> to vector<8x256xf32>
    %431 = arith.addf %429, %430 : vector<8x256xf32>
    %cst_302 = arith.constant 0.000000e+00 : f32
    %432 = vector.broadcast %cst_302 : f32 to vector<8x256xf32>
    %433 = arith.maximumf %431, %432 : vector<8x256xf32>
    %434 = arith.truncf %433 : vector<8x256xf32> to vector<8x256xbf16>
    %c1_303 = arith.constant 1 : index
    %c0_304 = arith.constant 0 : index
    %c0_305 = arith.constant 0 : index
    %435 = vector.load %arg9[%c1_303, %c0_304, %c0_305] : memref<2x256x128xbf16, #tpu.memory_space<vmem>>, vector<1x256x128xbf16>
    %436 = vector.shape_cast %435 : vector<1x256x128xbf16> to vector<256x128xbf16>
    %cst_306 = arith.constant dense<0.000000e+00> : vector<8x128xf32>
    %437 = tpu.matmul %434, %436, %cst_306 {dimension_numbers = #tpu.dot_dimension_numbers<[1], [0], [0], [1], [0, 0, 1, 1], [], []>} : vector<8x256xbf16>, vector<256x128xbf16>, vector<8x128xf32> -> vector<8x128xf32>
    %438 = vector.broadcast %392 : vector<1x128xf32> to vector<8x128xf32>
    %439 = arith.addf %437, %438 : vector<8x128xf32>
    %440 = arith.addf %425, %439 : vector<8x128xf32>
    %cst_307 = arith.constant dense<0.000000e+00> : vector<8xf32>
    %441 = vector.multi_reduction <add>, %440, %cst_307 [1] : vector<8x128xf32> to vector<8xf32>
    %442 = vector.shape_cast %441 : vector<8xf32> to vector<8x1xf32>
    %cst_308 = arith.constant 1.280000e+02 : f32
    %443 = vector.broadcast %cst_308 : f32 to vector<8x1xf32>
    %444 = arith.divf %442, %443 : vector<8x1xf32>
    %445 = vector.broadcast %444 : vector<8x1xf32> to vector<8x128xf32>
    %446 = arith.subf %440, %445 : vector<8x128xf32>
    %447 = arith.mulf %446, %446 : vector<8x128xf32>
    %cst_309 = arith.constant dense<0.000000e+00> : vector<8xf32>
    %448 = vector.multi_reduction <add>, %447, %cst_309 [1] : vector<8x128xf32> to vector<8xf32>
    %449 = vector.shape_cast %448 : vector<8xf32> to vector<8x1xf32>
    %cst_310 = arith.constant 1.280000e+02 : f32
    %450 = vector.broadcast %cst_310 : f32 to vector<8x1xf32>
    %451 = arith.divf %449, %450 : vector<8x1xf32>
    %452 = vector.broadcast %444 : vector<8x1xf32> to vector<8x128xf32>
    %453 = arith.subf %440, %452 : vector<8x128xf32>
    %cst_311 = arith.constant 9.99999974E-6 : f32
    %454 = vector.broadcast %cst_311 : f32 to vector<8x1xf32>
    %455 = arith.addf %451, %454 : vector<8x1xf32>
    %456 = math.rsqrt %455 : vector<8x1xf32>
    %457 = vector.broadcast %456 : vector<8x1xf32> to vector<8x128xf32>
    %458 = arith.mulf %453, %457 : vector<8x128xf32>
    %459 = vector.broadcast %395 : vector<1x128xf32> to vector<8x128xf32>
    %460 = arith.mulf %458, %459 : vector<8x128xf32>
    %461 = vector.broadcast %396 : vector<1x128xf32> to vector<8x128xf32>
    %462 = arith.addf %460, %461 : vector<8x128xf32>
    %c0_i32_312 = arith.constant 0 : i32
    %c0_i32_313 = arith.constant 0 : i32
    %c0_i32_314 = arith.constant 0 : i32
    %c0_i32_315 = arith.constant 0 : i32
    %c0_i32_316 = arith.constant 0 : i32
    %c0_i32_317 = arith.constant 0 : i32
    %463 = tpu.memref_slice %arg2[%c0_i32_312, %c0_i32_316, %c0_i32_317] : memref<6x128x128xbf16, #tpu.memory_space<any>> -> memref<1x128x128xbf16, #tpu.memory_space<any>>
    %464 = tpu.memref_squeeze %463 : memref<1x128x128xbf16, #tpu.memory_space<any>> -> memref<128x128xbf16, #tpu.memory_space<any>>
    %c0_i32_318 = arith.constant 0 : i32
    %c0_i32_319 = arith.constant 0 : i32
    %465 = tpu.memref_slice %arg7[%c0_i32_313, %c0_i32_318, %c0_i32_319] : memref<2x128x128xbf16, #tpu.memory_space<vmem>> -> memref<1x128x128xbf16, #tpu.memory_space<vmem>>
    %466 = tpu.memref_squeeze %465 : memref<1x128x128xbf16, #tpu.memory_space<vmem>> -> memref<128x128xbf16, #tpu.memory_space<vmem>>
    %467 = tpu.memref_slice %arg10[%c0_i32_314, %c0_i32_315] : memref<3x2x!tpu.dma_semaphore, #tpu.memory_space<semaphore_mem>> -> memref<1x1x!tpu.dma_semaphore, #tpu.memory_space<semaphore_mem>>
    %468 = tpu.memref_squeeze %467 : memref<1x1x!tpu.dma_semaphore, #tpu.memory_space<semaphore_mem>> -> memref<!tpu.dma_semaphore, #tpu.memory_space<semaphore_mem>>
    tpu.wait_dma2 semaphore(%468 : memref<!tpu.dma_semaphore, #tpu.memory_space<semaphore_mem>>) src(%464 : memref<128x128xbf16, #tpu.memory_space<any>>) dst(%466 : memref<128x128xbf16, #tpu.memory_space<vmem>>)
    %c0_i32_320 = arith.constant 0 : i32
    %c0_i32_321 = arith.constant 0 : i32
    %c1_i32_322 = arith.constant 1 : i32
    %c0_i32_323 = arith.constant 0 : i32
    %c0_i32_324 = arith.constant 0 : i32
    %c0_i32_325 = arith.constant 0 : i32
    %469 = tpu.memref_slice %arg3[%c0_i32_320, %c0_i32_324, %c0_i32_325] : memref<6x128x256xbf16, #tpu.memory_space<any>> -> memref<1x128x256xbf16, #tpu.memory_space<any>>
    %470 = tpu.memref_squeeze %469 : memref<1x128x256xbf16, #tpu.memory_space<any>> -> memref<128x256xbf16, #tpu.memory_space<any>>
    %c0_i32_326 = arith.constant 0 : i32
    %c0_i32_327 = arith.constant 0 : i32
    %471 = tpu.memref_slice %arg8[%c0_i32_321, %c0_i32_326, %c0_i32_327] : memref<2x128x256xbf16, #tpu.memory_space<vmem>> -> memref<1x128x256xbf16, #tpu.memory_space<vmem>>
    %472 = tpu.memref_squeeze %471 : memref<1x128x256xbf16, #tpu.memory_space<vmem>> -> memref<128x256xbf16, #tpu.memory_space<vmem>>
    %473 = tpu.memref_slice %arg10[%c1_i32_322, %c0_i32_323] : memref<3x2x!tpu.dma_semaphore, #tpu.memory_space<semaphore_mem>> -> memref<1x1x!tpu.dma_semaphore, #tpu.memory_space<semaphore_mem>>
    %474 = tpu.memref_squeeze %473 : memref<1x1x!tpu.dma_semaphore, #tpu.memory_space<semaphore_mem>> -> memref<!tpu.dma_semaphore, #tpu.memory_space<semaphore_mem>>
    tpu.wait_dma2 semaphore(%474 : memref<!tpu.dma_semaphore, #tpu.memory_space<semaphore_mem>>) src(%470 : memref<128x256xbf16, #tpu.memory_space<any>>) dst(%472 : memref<128x256xbf16, #tpu.memory_space<vmem>>)
    %c0_i32_328 = arith.constant 0 : i32
    %c0_i32_329 = arith.constant 0 : i32
    %c2_i32_330 = arith.constant 2 : i32
    %c0_i32_331 = arith.constant 0 : i32
    %c0_i32_332 = arith.constant 0 : i32
    %c0_i32_333 = arith.constant 0 : i32
    %475 = tpu.memref_slice %arg4[%c0_i32_328, %c0_i32_332, %c0_i32_333] : memref<6x256x128xbf16, #tpu.memory_space<any>> -> memref<1x256x128xbf16, #tpu.memory_space<any>>
    %476 = tpu.memref_squeeze %475 : memref<1x256x128xbf16, #tpu.memory_space<any>> -> memref<256x128xbf16, #tpu.memory_space<any>>
    %c0_i32_334 = arith.constant 0 : i32
    %c0_i32_335 = arith.constant 0 : i32
    %477 = tpu.memref_slice %arg9[%c0_i32_329, %c0_i32_334, %c0_i32_335] : memref<2x256x128xbf16, #tpu.memory_space<vmem>> -> memref<1x256x128xbf16, #tpu.memory_space<vmem>>
    %478 = tpu.memref_squeeze %477 : memref<1x256x128xbf16, #tpu.memory_space<vmem>> -> memref<256x128xbf16, #tpu.memory_space<vmem>>
    %479 = tpu.memref_slice %arg10[%c2_i32_330, %c0_i32_331] : memref<3x2x!tpu.dma_semaphore, #tpu.memory_space<semaphore_mem>> -> memref<1x1x!tpu.dma_semaphore, #tpu.memory_space<semaphore_mem>>
    %480 = tpu.memref_squeeze %479 : memref<1x1x!tpu.dma_semaphore, #tpu.memory_space<semaphore_mem>> -> memref<!tpu.dma_semaphore, #tpu.memory_space<semaphore_mem>>
    tpu.wait_dma2 semaphore(%480 : memref<!tpu.dma_semaphore, #tpu.memory_space<semaphore_mem>>) src(%476 : memref<256x128xbf16, #tpu.memory_space<any>>) dst(%478 : memref<256x128xbf16, #tpu.memory_space<vmem>>)
    %c5_i32 = arith.constant 5 : i32
    %c1_i32_336 = arith.constant 1 : i32
    %c0_i32_337 = arith.constant 0 : i32
    %c1_i32_338 = arith.constant 1 : i32
    %c0_i32_339 = arith.constant 0 : i32
    %c0_i32_340 = arith.constant 0 : i32
    %481 = tpu.memref_slice %arg2[%c5_i32, %c0_i32_339, %c0_i32_340] : memref<6x128x128xbf16, #tpu.memory_space<any>> -> memref<1x128x128xbf16, #tpu.memory_space<any>>
    %482 = tpu.memref_squeeze %481 : memref<1x128x128xbf16, #tpu.memory_space<any>> -> memref<128x128xbf16, #tpu.memory_space<any>>
    %c0_i32_341 = arith.constant 0 : i32
    %c0_i32_342 = arith.constant 0 : i32
    %483 = tpu.memref_slice %arg7[%c1_i32_336, %c0_i32_341, %c0_i32_342] : memref<2x128x128xbf16, #tpu.memory_space<vmem>> -> memref<1x128x128xbf16, #tpu.memory_space<vmem>>
    %484 = tpu.memref_squeeze %483 : memref<1x128x128xbf16, #tpu.memory_space<vmem>> -> memref<128x128xbf16, #tpu.memory_space<vmem>>
    %485 = tpu.memref_slice %arg10[%c0_i32_337, %c1_i32_338] : memref<3x2x!tpu.dma_semaphore, #tpu.memory_space<semaphore_mem>> -> memref<1x1x!tpu.dma_semaphore, #tpu.memory_space<semaphore_mem>>
    %486 = tpu.memref_squeeze %485 : memref<1x1x!tpu.dma_semaphore, #tpu.memory_space<semaphore_mem>> -> memref<!tpu.dma_semaphore, #tpu.memory_space<semaphore_mem>>
    tpu.enqueue_dma source(%482 : memref<128x128xbf16, #tpu.memory_space<any>>) target(%484 : memref<128x128xbf16, #tpu.memory_space<vmem>>) target_semaphore(%486 : memref<!tpu.dma_semaphore, #tpu.memory_space<semaphore_mem>>)
    %c5_i32_343 = arith.constant 5 : i32
    %c1_i32_344 = arith.constant 1 : i32
    %c1_i32_345 = arith.constant 1 : i32
    %c1_i32_346 = arith.constant 1 : i32
    %c0_i32_347 = arith.constant 0 : i32
    %c0_i32_348 = arith.constant 0 : i32
    %487 = tpu.memref_slice %arg3[%c5_i32_343, %c0_i32_347, %c0_i32_348] : memref<6x128x256xbf16, #tpu.memory_space<any>> -> memref<1x128x256xbf16, #tpu.memory_space<any>>
    %488 = tpu.memref_squeeze %487 : memref<1x128x256xbf16, #tpu.memory_space<any>> -> memref<128x256xbf16, #tpu.memory_space<any>>
    %c0_i32_349 = arith.constant 0 : i32
    %c0_i32_350 = arith.constant 0 : i32
    %489 = tpu.memref_slice %arg8[%c1_i32_344, %c0_i32_349, %c0_i32_350] : memref<2x128x256xbf16, #tpu.memory_space<vmem>> -> memref<1x128x256xbf16, #tpu.memory_space<vmem>>
    %490 = tpu.memref_squeeze %489 : memref<1x128x256xbf16, #tpu.memory_space<vmem>> -> memref<128x256xbf16, #tpu.memory_space<vmem>>
    %491 = tpu.memref_slice %arg10[%c1_i32_345, %c1_i32_346] : memref<3x2x!tpu.dma_semaphore, #tpu.memory_space<semaphore_mem>> -> memref<1x1x!tpu.dma_semaphore, #tpu.memory_space<semaphore_mem>>
    %492 = tpu.memref_squeeze %491 : memref<1x1x!tpu.dma_semaphore, #tpu.memory_space<semaphore_mem>> -> memref<!tpu.dma_semaphore, #tpu.memory_space<semaphore_mem>>
    tpu.enqueue_dma source(%488 : memref<128x256xbf16, #tpu.memory_space<any>>) target(%490 : memref<128x256xbf16, #tpu.memory_space<vmem>>) target_semaphore(%492 : memref<!tpu.dma_semaphore, #tpu.memory_space<semaphore_mem>>)
    %c5_i32_351 = arith.constant 5 : i32
    %c1_i32_352 = arith.constant 1 : i32
    %c2_i32_353 = arith.constant 2 : i32
    %c1_i32_354 = arith.constant 1 : i32
    %c0_i32_355 = arith.constant 0 : i32
    %c0_i32_356 = arith.constant 0 : i32
    %493 = tpu.memref_slice %arg4[%c5_i32_351, %c0_i32_355, %c0_i32_356] : memref<6x256x128xbf16, #tpu.memory_space<any>> -> memref<1x256x128xbf16, #tpu.memory_space<any>>
    %494 = tpu.memref_squeeze %493 : memref<1x256x128xbf16, #tpu.memory_space<any>> -> memref<256x128xbf16, #tpu.memory_space<any>>
    %c0_i32_357 = arith.constant 0 : i32
    %c0_i32_358 = arith.constant 0 : i32
    %495 = tpu.memref_slice %arg9[%c1_i32_352, %c0_i32_357, %c0_i32_358] : memref<2x256x128xbf16, #tpu.memory_space<vmem>> -> memref<1x256x128xbf16, #tpu.memory_space<vmem>>
    %496 = tpu.memref_squeeze %495 : memref<1x256x128xbf16, #tpu.memory_space<vmem>> -> memref<256x128xbf16, #tpu.memory_space<vmem>>
    %497 = tpu.memref_slice %arg10[%c2_i32_353, %c1_i32_354] : memref<3x2x!tpu.dma_semaphore, #tpu.memory_space<semaphore_mem>> -> memref<1x1x!tpu.dma_semaphore, #tpu.memory_space<semaphore_mem>>
    %498 = tpu.memref_squeeze %497 : memref<1x1x!tpu.dma_semaphore, #tpu.memory_space<semaphore_mem>> -> memref<!tpu.dma_semaphore, #tpu.memory_space<semaphore_mem>>
    tpu.enqueue_dma source(%494 : memref<256x128xbf16, #tpu.memory_space<any>>) target(%496 : memref<256x128xbf16, #tpu.memory_space<vmem>>) target_semaphore(%498 : memref<!tpu.dma_semaphore, #tpu.memory_space<semaphore_mem>>)
    %c4 = arith.constant 4 : index
    %c0_359 = arith.constant 0 : index
    %c0_360 = arith.constant 0 : index
    %499 = vector.load %arg5[%c4, %c0_359, %c0_360] : memref<6x8x256xf32, #tpu.memory_space<vmem>>, vector<1x8x256xf32>
    %500 = vector.shape_cast %499 : vector<1x8x256xf32> to vector<8x256xf32>
    %501 = vector.extract_strided_slice %500 {offsets = [0, 0], sizes = [1, 128], strides = [1, 1]} : vector<8x256xf32> to vector<1x128xf32>
    %502 = vector.extract_strided_slice %500 {offsets = [1, 0], sizes = [1, 256], strides = [1, 1]} : vector<8x256xf32> to vector<1x256xf32>
    %503 = vector.extract_strided_slice %500 {offsets = [2, 0], sizes = [1, 128], strides = [1, 1]} : vector<8x256xf32> to vector<1x128xf32>
    %504 = vector.extract_strided_slice %500 {offsets = [3, 0], sizes = [1, 128], strides = [1, 1]} : vector<8x256xf32> to vector<1x128xf32>
    %505 = vector.extract_strided_slice %500 {offsets = [4, 0], sizes = [1, 128], strides = [1, 1]} : vector<8x256xf32> to vector<1x128xf32>
    %506 = vector.extract_strided_slice %500 {offsets = [5, 0], sizes = [1, 128], strides = [1, 1]} : vector<8x256xf32> to vector<1x128xf32>
    %507 = vector.extract_strided_slice %500 {offsets = [6, 0], sizes = [1, 128], strides = [1, 1]} : vector<8x256xf32> to vector<1x128xf32>
    %508 = arith.truncf %462 : vector<8x128xf32> to vector<8x128xbf16>
    %c0_361 = arith.constant 0 : index
    %c0_362 = arith.constant 0 : index
    %c0_363 = arith.constant 0 : index
    %509 = vector.load %arg7[%c0_361, %c0_362, %c0_363] : memref<2x128x128xbf16, #tpu.memory_space<vmem>>, vector<1x128x128xbf16>
    %510 = vector.shape_cast %509 : vector<1x128x128xbf16> to vector<128x128xbf16>
    %cst_364 = arith.constant dense<0.000000e+00> : vector<8x128xf32>
    %511 = tpu.matmul %508, %510, %cst_364 {dimension_numbers = #tpu.dot_dimension_numbers<[1], [0], [0], [1], [0, 0, 1, 1], [], []>} : vector<8x128xbf16>, vector<128x128xbf16>, vector<8x128xf32> -> vector<8x128xf32>
    %512 = vector.broadcast %501 : vector<1x128xf32> to vector<8x128xf32>
    %513 = arith.addf %511, %512 : vector<8x128xf32>
    %514 = arith.addf %462, %513 : vector<8x128xf32>
    %cst_365 = arith.constant dense<0.000000e+00> : vector<8xf32>
    %515 = vector.multi_reduction <add>, %514, %cst_365 [1] : vector<8x128xf32> to vector<8xf32>
    %516 = vector.shape_cast %515 : vector<8xf32> to vector<8x1xf32>
    %cst_366 = arith.constant 1.280000e+02 : f32
    %517 = vector.broadcast %cst_366 : f32 to vector<8x1xf32>
    %518 = arith.divf %516, %517 : vector<8x1xf32>
    %519 = vector.broadcast %518 : vector<8x1xf32> to vector<8x128xf32>
    %520 = arith.subf %514, %519 : vector<8x128xf32>
    %521 = arith.mulf %520, %520 : vector<8x128xf32>
    %cst_367 = arith.constant dense<0.000000e+00> : vector<8xf32>
    %522 = vector.multi_reduction <add>, %521, %cst_367 [1] : vector<8x128xf32> to vector<8xf32>
    %523 = vector.shape_cast %522 : vector<8xf32> to vector<8x1xf32>
    %cst_368 = arith.constant 1.280000e+02 : f32
    %524 = vector.broadcast %cst_368 : f32 to vector<8x1xf32>
    %525 = arith.divf %523, %524 : vector<8x1xf32>
    %526 = vector.broadcast %518 : vector<8x1xf32> to vector<8x128xf32>
    %527 = arith.subf %514, %526 : vector<8x128xf32>
    %cst_369 = arith.constant 9.99999974E-6 : f32
    %528 = vector.broadcast %cst_369 : f32 to vector<8x1xf32>
    %529 = arith.addf %525, %528 : vector<8x1xf32>
    %530 = math.rsqrt %529 : vector<8x1xf32>
    %531 = vector.broadcast %530 : vector<8x1xf32> to vector<8x128xf32>
    %532 = arith.mulf %527, %531 : vector<8x128xf32>
    %533 = vector.broadcast %504 : vector<1x128xf32> to vector<8x128xf32>
    %534 = arith.mulf %532, %533 : vector<8x128xf32>
    %535 = vector.broadcast %505 : vector<1x128xf32> to vector<8x128xf32>
    %536 = arith.addf %534, %535 : vector<8x128xf32>
    %537 = arith.truncf %536 : vector<8x128xf32> to vector<8x128xbf16>
    %c0_370 = arith.constant 0 : index
    %c0_371 = arith.constant 0 : index
    %c0_372 = arith.constant 0 : index
    %538 = vector.load %arg8[%c0_370, %c0_371, %c0_372] : memref<2x128x256xbf16, #tpu.memory_space<vmem>>, vector<1x128x256xbf16>
    %539 = vector.shape_cast %538 : vector<1x128x256xbf16> to vector<128x256xbf16>
    %cst_373 = arith.constant dense<0.000000e+00> : vector<8x256xf32>
    %540 = tpu.matmul %537, %539, %cst_373 {dimension_numbers = #tpu.dot_dimension_numbers<[1], [0], [0], [1], [0, 0, 1, 1], [], []>} : vector<8x128xbf16>, vector<128x256xbf16>, vector<8x256xf32> -> vector<8x256xf32>
    %541 = vector.broadcast %502 : vector<1x256xf32> to vector<8x256xf32>
    %542 = arith.addf %540, %541 : vector<8x256xf32>
    %cst_374 = arith.constant 0.000000e+00 : f32
    %543 = vector.broadcast %cst_374 : f32 to vector<8x256xf32>
    %544 = arith.maximumf %542, %543 : vector<8x256xf32>
    %545 = arith.truncf %544 : vector<8x256xf32> to vector<8x256xbf16>
    %c0_375 = arith.constant 0 : index
    %c0_376 = arith.constant 0 : index
    %c0_377 = arith.constant 0 : index
    %546 = vector.load %arg9[%c0_375, %c0_376, %c0_377] : memref<2x256x128xbf16, #tpu.memory_space<vmem>>, vector<1x256x128xbf16>
    %547 = vector.shape_cast %546 : vector<1x256x128xbf16> to vector<256x128xbf16>
    %cst_378 = arith.constant dense<0.000000e+00> : vector<8x128xf32>
    %548 = tpu.matmul %545, %547, %cst_378 {dimension_numbers = #tpu.dot_dimension_numbers<[1], [0], [0], [1], [0, 0, 1, 1], [], []>} : vector<8x256xbf16>, vector<256x128xbf16>, vector<8x128xf32> -> vector<8x128xf32>
    %549 = vector.broadcast %503 : vector<1x128xf32> to vector<8x128xf32>
    %550 = arith.addf %548, %549 : vector<8x128xf32>
    %551 = arith.addf %536, %550 : vector<8x128xf32>
    %cst_379 = arith.constant dense<0.000000e+00> : vector<8xf32>
    %552 = vector.multi_reduction <add>, %551, %cst_379 [1] : vector<8x128xf32> to vector<8xf32>
    %553 = vector.shape_cast %552 : vector<8xf32> to vector<8x1xf32>
    %cst_380 = arith.constant 1.280000e+02 : f32
    %554 = vector.broadcast %cst_380 : f32 to vector<8x1xf32>
    %555 = arith.divf %553, %554 : vector<8x1xf32>
    %556 = vector.broadcast %555 : vector<8x1xf32> to vector<8x128xf32>
    %557 = arith.subf %551, %556 : vector<8x128xf32>
    %558 = arith.mulf %557, %557 : vector<8x128xf32>
    %cst_381 = arith.constant dense<0.000000e+00> : vector<8xf32>
    %559 = vector.multi_reduction <add>, %558, %cst_381 [1] : vector<8x128xf32> to vector<8xf32>
    %560 = vector.shape_cast %559 : vector<8xf32> to vector<8x1xf32>
    %cst_382 = arith.constant 1.280000e+02 : f32
    %561 = vector.broadcast %cst_382 : f32 to vector<8x1xf32>
    %562 = arith.divf %560, %561 : vector<8x1xf32>
    %563 = vector.broadcast %555 : vector<8x1xf32> to vector<8x128xf32>
    %564 = arith.subf %551, %563 : vector<8x128xf32>
    %cst_383 = arith.constant 9.99999974E-6 : f32
    %565 = vector.broadcast %cst_383 : f32 to vector<8x1xf32>
    %566 = arith.addf %562, %565 : vector<8x1xf32>
    %567 = math.rsqrt %566 : vector<8x1xf32>
    %568 = vector.broadcast %567 : vector<8x1xf32> to vector<8x128xf32>
    %569 = arith.mulf %564, %568 : vector<8x128xf32>
    %570 = vector.broadcast %506 : vector<1x128xf32> to vector<8x128xf32>
    %571 = arith.mulf %569, %570 : vector<8x128xf32>
    %572 = vector.broadcast %507 : vector<1x128xf32> to vector<8x128xf32>
    %573 = arith.addf %571, %572 : vector<8x128xf32>
    %c0_i32_384 = arith.constant 0 : i32
    %c1_i32_385 = arith.constant 1 : i32
    %c0_i32_386 = arith.constant 0 : i32
    %c1_i32_387 = arith.constant 1 : i32
    %c0_i32_388 = arith.constant 0 : i32
    %c0_i32_389 = arith.constant 0 : i32
    %574 = tpu.memref_slice %arg2[%c0_i32_384, %c0_i32_388, %c0_i32_389] : memref<6x128x128xbf16, #tpu.memory_space<any>> -> memref<1x128x128xbf16, #tpu.memory_space<any>>
    %575 = tpu.memref_squeeze %574 : memref<1x128x128xbf16, #tpu.memory_space<any>> -> memref<128x128xbf16, #tpu.memory_space<any>>
    %c0_i32_390 = arith.constant 0 : i32
    %c0_i32_391 = arith.constant 0 : i32
    %576 = tpu.memref_slice %arg7[%c1_i32_385, %c0_i32_390, %c0_i32_391] : memref<2x128x128xbf16, #tpu.memory_space<vmem>> -> memref<1x128x128xbf16, #tpu.memory_space<vmem>>
    %577 = tpu.memref_squeeze %576 : memref<1x128x128xbf16, #tpu.memory_space<vmem>> -> memref<128x128xbf16, #tpu.memory_space<vmem>>
    %578 = tpu.memref_slice %arg10[%c0_i32_386, %c1_i32_387] : memref<3x2x!tpu.dma_semaphore, #tpu.memory_space<semaphore_mem>> -> memref<1x1x!tpu.dma_semaphore, #tpu.memory_space<semaphore_mem>>
    %579 = tpu.memref_squeeze %578 : memref<1x1x!tpu.dma_semaphore, #tpu.memory_space<semaphore_mem>> -> memref<!tpu.dma_semaphore, #tpu.memory_space<semaphore_mem>>
    tpu.wait_dma2 semaphore(%579 : memref<!tpu.dma_semaphore, #tpu.memory_space<semaphore_mem>>) src(%575 : memref<128x128xbf16, #tpu.memory_space<any>>) dst(%577 : memref<128x128xbf16, #tpu.memory_space<vmem>>)
    %c0_i32_392 = arith.constant 0 : i32
    %c1_i32_393 = arith.constant 1 : i32
    %c1_i32_394 = arith.constant 1 : i32
    %c1_i32_395 = arith.constant 1 : i32
    %c0_i32_396 = arith.constant 0 : i32
    %c0_i32_397 = arith.constant 0 : i32
    %580 = tpu.memref_slice %arg3[%c0_i32_392, %c0_i32_396, %c0_i32_397] : memref<6x128x256xbf16, #tpu.memory_space<any>> -> memref<1x128x256xbf16, #tpu.memory_space<any>>
    %581 = tpu.memref_squeeze %580 : memref<1x128x256xbf16, #tpu.memory_space<any>> -> memref<128x256xbf16, #tpu.memory_space<any>>
    %c0_i32_398 = arith.constant 0 : i32
    %c0_i32_399 = arith.constant 0 : i32
    %582 = tpu.memref_slice %arg8[%c1_i32_393, %c0_i32_398, %c0_i32_399] : memref<2x128x256xbf16, #tpu.memory_space<vmem>> -> memref<1x128x256xbf16, #tpu.memory_space<vmem>>
    %583 = tpu.memref_squeeze %582 : memref<1x128x256xbf16, #tpu.memory_space<vmem>> -> memref<128x256xbf16, #tpu.memory_space<vmem>>
    %584 = tpu.memref_slice %arg10[%c1_i32_394, %c1_i32_395] : memref<3x2x!tpu.dma_semaphore, #tpu.memory_space<semaphore_mem>> -> memref<1x1x!tpu.dma_semaphore, #tpu.memory_space<semaphore_mem>>
    %585 = tpu.memref_squeeze %584 : memref<1x1x!tpu.dma_semaphore, #tpu.memory_space<semaphore_mem>> -> memref<!tpu.dma_semaphore, #tpu.memory_space<semaphore_mem>>
    tpu.wait_dma2 semaphore(%585 : memref<!tpu.dma_semaphore, #tpu.memory_space<semaphore_mem>>) src(%581 : memref<128x256xbf16, #tpu.memory_space<any>>) dst(%583 : memref<128x256xbf16, #tpu.memory_space<vmem>>)
    %c0_i32_400 = arith.constant 0 : i32
    %c1_i32_401 = arith.constant 1 : i32
    %c2_i32_402 = arith.constant 2 : i32
    %c1_i32_403 = arith.constant 1 : i32
    %c0_i32_404 = arith.constant 0 : i32
    %c0_i32_405 = arith.constant 0 : i32
    %586 = tpu.memref_slice %arg4[%c0_i32_400, %c0_i32_404, %c0_i32_405] : memref<6x256x128xbf16, #tpu.memory_space<any>> -> memref<1x256x128xbf16, #tpu.memory_space<any>>
    %587 = tpu.memref_squeeze %586 : memref<1x256x128xbf16, #tpu.memory_space<any>> -> memref<256x128xbf16, #tpu.memory_space<any>>
    %c0_i32_406 = arith.constant 0 : i32
    %c0_i32_407 = arith.constant 0 : i32
    %588 = tpu.memref_slice %arg9[%c1_i32_401, %c0_i32_406, %c0_i32_407] : memref<2x256x128xbf16, #tpu.memory_space<vmem>> -> memref<1x256x128xbf16, #tpu.memory_space<vmem>>
    %589 = tpu.memref_squeeze %588 : memref<1x256x128xbf16, #tpu.memory_space<vmem>> -> memref<256x128xbf16, #tpu.memory_space<vmem>>
    %590 = tpu.memref_slice %arg10[%c2_i32_402, %c1_i32_403] : memref<3x2x!tpu.dma_semaphore, #tpu.memory_space<semaphore_mem>> -> memref<1x1x!tpu.dma_semaphore, #tpu.memory_space<semaphore_mem>>
    %591 = tpu.memref_squeeze %590 : memref<1x1x!tpu.dma_semaphore, #tpu.memory_space<semaphore_mem>> -> memref<!tpu.dma_semaphore, #tpu.memory_space<semaphore_mem>>
    tpu.wait_dma2 semaphore(%591 : memref<!tpu.dma_semaphore, #tpu.memory_space<semaphore_mem>>) src(%587 : memref<256x128xbf16, #tpu.memory_space<any>>) dst(%589 : memref<256x128xbf16, #tpu.memory_space<vmem>>)
    %c5 = arith.constant 5 : index
    %c0_408 = arith.constant 0 : index
    %c0_409 = arith.constant 0 : index
    %592 = vector.load %arg5[%c5, %c0_408, %c0_409] : memref<6x8x256xf32, #tpu.memory_space<vmem>>, vector<1x8x256xf32>
    %593 = vector.shape_cast %592 : vector<1x8x256xf32> to vector<8x256xf32>
    %594 = vector.extract_strided_slice %593 {offsets = [0, 0], sizes = [1, 128], strides = [1, 1]} : vector<8x256xf32> to vector<1x128xf32>
    %595 = vector.extract_strided_slice %593 {offsets = [1, 0], sizes = [1, 256], strides = [1, 1]} : vector<8x256xf32> to vector<1x256xf32>
    %596 = vector.extract_strided_slice %593 {offsets = [2, 0], sizes = [1, 128], strides = [1, 1]} : vector<8x256xf32> to vector<1x128xf32>
    %597 = vector.extract_strided_slice %593 {offsets = [3, 0], sizes = [1, 128], strides = [1, 1]} : vector<8x256xf32> to vector<1x128xf32>
    %598 = vector.extract_strided_slice %593 {offsets = [4, 0], sizes = [1, 128], strides = [1, 1]} : vector<8x256xf32> to vector<1x128xf32>
    %599 = vector.extract_strided_slice %593 {offsets = [5, 0], sizes = [1, 128], strides = [1, 1]} : vector<8x256xf32> to vector<1x128xf32>
    %600 = vector.extract_strided_slice %593 {offsets = [6, 0], sizes = [1, 128], strides = [1, 1]} : vector<8x256xf32> to vector<1x128xf32>
    %601 = arith.truncf %573 : vector<8x128xf32> to vector<8x128xbf16>
    %c1_410 = arith.constant 1 : index
    %c0_411 = arith.constant 0 : index
    %c0_412 = arith.constant 0 : index
    %602 = vector.load %arg7[%c1_410, %c0_411, %c0_412] : memref<2x128x128xbf16, #tpu.memory_space<vmem>>, vector<1x128x128xbf16>
    %603 = vector.shape_cast %602 : vector<1x128x128xbf16> to vector<128x128xbf16>
    %cst_413 = arith.constant dense<0.000000e+00> : vector<8x128xf32>
    %604 = tpu.matmul %601, %603, %cst_413 {dimension_numbers = #tpu.dot_dimension_numbers<[1], [0], [0], [1], [0, 0, 1, 1], [], []>} : vector<8x128xbf16>, vector<128x128xbf16>, vector<8x128xf32> -> vector<8x128xf32>
    %605 = vector.broadcast %594 : vector<1x128xf32> to vector<8x128xf32>
    %606 = arith.addf %604, %605 : vector<8x128xf32>
    %607 = arith.addf %573, %606 : vector<8x128xf32>
    %cst_414 = arith.constant dense<0.000000e+00> : vector<8xf32>
    %608 = vector.multi_reduction <add>, %607, %cst_414 [1] : vector<8x128xf32> to vector<8xf32>
    %609 = vector.shape_cast %608 : vector<8xf32> to vector<8x1xf32>
    %cst_415 = arith.constant 1.280000e+02 : f32
    %610 = vector.broadcast %cst_415 : f32 to vector<8x1xf32>
    %611 = arith.divf %609, %610 : vector<8x1xf32>
    %612 = vector.broadcast %611 : vector<8x1xf32> to vector<8x128xf32>
    %613 = arith.subf %607, %612 : vector<8x128xf32>
    %614 = arith.mulf %613, %613 : vector<8x128xf32>
    %cst_416 = arith.constant dense<0.000000e+00> : vector<8xf32>
    %615 = vector.multi_reduction <add>, %614, %cst_416 [1] : vector<8x128xf32> to vector<8xf32>
    %616 = vector.shape_cast %615 : vector<8xf32> to vector<8x1xf32>
    %cst_417 = arith.constant 1.280000e+02 : f32
    %617 = vector.broadcast %cst_417 : f32 to vector<8x1xf32>
    %618 = arith.divf %616, %617 : vector<8x1xf32>
    %619 = vector.broadcast %611 : vector<8x1xf32> to vector<8x128xf32>
    %620 = arith.subf %607, %619 : vector<8x128xf32>
    %cst_418 = arith.constant 9.99999974E-6 : f32
    %621 = vector.broadcast %cst_418 : f32 to vector<8x1xf32>
    %622 = arith.addf %618, %621 : vector<8x1xf32>
    %623 = math.rsqrt %622 : vector<8x1xf32>
    %624 = vector.broadcast %623 : vector<8x1xf32> to vector<8x128xf32>
    %625 = arith.mulf %620, %624 : vector<8x128xf32>
    %626 = vector.broadcast %597 : vector<1x128xf32> to vector<8x128xf32>
    %627 = arith.mulf %625, %626 : vector<8x128xf32>
    %628 = vector.broadcast %598 : vector<1x128xf32> to vector<8x128xf32>
    %629 = arith.addf %627, %628 : vector<8x128xf32>
    %630 = arith.truncf %629 : vector<8x128xf32> to vector<8x128xbf16>
    %c1_419 = arith.constant 1 : index
    %c0_420 = arith.constant 0 : index
    %c0_421 = arith.constant 0 : index
    %631 = vector.load %arg8[%c1_419, %c0_420, %c0_421] : memref<2x128x256xbf16, #tpu.memory_space<vmem>>, vector<1x128x256xbf16>
    %632 = vector.shape_cast %631 : vector<1x128x256xbf16> to vector<128x256xbf16>
    %cst_422 = arith.constant dense<0.000000e+00> : vector<8x256xf32>
    %633 = tpu.matmul %630, %632, %cst_422 {dimension_numbers = #tpu.dot_dimension_numbers<[1], [0], [0], [1], [0, 0, 1, 1], [], []>} : vector<8x128xbf16>, vector<128x256xbf16>, vector<8x256xf32> -> vector<8x256xf32>
    %634 = vector.broadcast %595 : vector<1x256xf32> to vector<8x256xf32>
    %635 = arith.addf %633, %634 : vector<8x256xf32>
    %cst_423 = arith.constant 0.000000e+00 : f32
    %636 = vector.broadcast %cst_423 : f32 to vector<8x256xf32>
    %637 = arith.maximumf %635, %636 : vector<8x256xf32>
    %638 = arith.truncf %637 : vector<8x256xf32> to vector<8x256xbf16>
    %c1_424 = arith.constant 1 : index
    %c0_425 = arith.constant 0 : index
    %c0_426 = arith.constant 0 : index
    %639 = vector.load %arg9[%c1_424, %c0_425, %c0_426] : memref<2x256x128xbf16, #tpu.memory_space<vmem>>, vector<1x256x128xbf16>
    %640 = vector.shape_cast %639 : vector<1x256x128xbf16> to vector<256x128xbf16>
    %cst_427 = arith.constant dense<0.000000e+00> : vector<8x128xf32>
    %641 = tpu.matmul %638, %640, %cst_427 {dimension_numbers = #tpu.dot_dimension_numbers<[1], [0], [0], [1], [0, 0, 1, 1], [], []>} : vector<8x256xbf16>, vector<256x128xbf16>, vector<8x128xf32> -> vector<8x128xf32>
    %642 = vector.broadcast %596 : vector<1x128xf32> to vector<8x128xf32>
    %643 = arith.addf %641, %642 : vector<8x128xf32>
    %644 = arith.addf %629, %643 : vector<8x128xf32>
    %cst_428 = arith.constant dense<0.000000e+00> : vector<8xf32>
    %645 = vector.multi_reduction <add>, %644, %cst_428 [1] : vector<8x128xf32> to vector<8xf32>
    %646 = vector.shape_cast %645 : vector<8xf32> to vector<8x1xf32>
    %cst_429 = arith.constant 1.280000e+02 : f32
    %647 = vector.broadcast %cst_429 : f32 to vector<8x1xf32>
    %648 = arith.divf %646, %647 : vector<8x1xf32>
    %649 = vector.broadcast %648 : vector<8x1xf32> to vector<8x128xf32>
    %650 = arith.subf %644, %649 : vector<8x128xf32>
    %651 = arith.mulf %650, %650 : vector<8x128xf32>
    %cst_430 = arith.constant dense<0.000000e+00> : vector<8xf32>
    %652 = vector.multi_reduction <add>, %651, %cst_430 [1] : vector<8x128xf32> to vector<8xf32>
    %653 = vector.shape_cast %652 : vector<8xf32> to vector<8x1xf32>
    %cst_431 = arith.constant 1.280000e+02 : f32
    %654 = vector.broadcast %cst_431 : f32 to vector<8x1xf32>
    %655 = arith.divf %653, %654 : vector<8x1xf32>
    %656 = vector.broadcast %648 : vector<8x1xf32> to vector<8x128xf32>
    %657 = arith.subf %644, %656 : vector<8x128xf32>
    %cst_432 = arith.constant 9.99999974E-6 : f32
    %658 = vector.broadcast %cst_432 : f32 to vector<8x1xf32>
    %659 = arith.addf %655, %658 : vector<8x1xf32>
    %660 = math.rsqrt %659 : vector<8x1xf32>
    %661 = vector.broadcast %660 : vector<8x1xf32> to vector<8x128xf32>
    %662 = arith.mulf %657, %661 : vector<8x128xf32>
    %663 = vector.broadcast %599 : vector<1x128xf32> to vector<8x128xf32>
    %664 = arith.mulf %662, %663 : vector<8x128xf32>
    %665 = vector.broadcast %600 : vector<1x128xf32> to vector<8x128xf32>
    %666 = arith.addf %664, %665 : vector<8x128xf32>
    %c0_433 = arith.constant 0 : index
    %c0_434 = arith.constant 0 : index
    %667 = vector.load %arg6[%c0_433, %c0_434] : memref<8x128xf32, #tpu.memory_space<vmem>>, vector<8x128xf32>
    tpu.vector_store %arg6[%c0_433, %c0_434], %666 {strides = array<i32>} : memref<8x128xf32, #tpu.memory_space<vmem>>, vector<8x128xf32>,
    return
  }
  func.func @transform_0(%arg0: i32) -> (i32, i32) {
    %c0_i32 = arith.constant 0 : i32
    %c0_i32_0 = arith.constant 0 : i32
    %c0_i32_1 = arith.constant 0 : i32
    return %c0_i32, %c0_i32_0 : i32, i32
  }
  func.func @transform_4(%arg0: i32) -> (i32, i32, i32) {
    %c0_i32 = arith.constant 0 : i32
    %c0_i32_0 = arith.constant 0 : i32
    %c0_i32_1 = arith.constant 0 : i32
    %c0_i32_2 = arith.constant 0 : i32
    return %c0_i32, %c0_i32_0, %c0_i32_1 : i32, i32, i32
  }
  func.func @transform_5(%arg0: i32) -> (i32, i32) {
    %c0_i32 = arith.constant 0 : i32
    %c0_i32_0 = arith.constant 0 : i32
    %c0_i32_1 = arith.constant 0 : i32
    return %c0_i32, %c0_i32_0 : i32, i32
  }
}

</mosaic_0001>

<llo_original>
// kernel: tpu_custom_call.1
$region0: #{tpu_custom_call.1}
  #allocation0 [shape = 'u32[]', space=smem, size = 0x4, offset = 0x4, fixed_abs, tag = 'smem constant byte address 0x4 - core index']
  #allocation1 [shape = 'u32[144,128]{1,0:T(1,128)}', space=vmem, size = 0x12000, scoped, tag = 'internal scratch']
  #allocation2 [shape = 'bf16[2,128,128]{2,1,0:T(16,128)(2,1)}', space=vmem, size = 0x10000, scoped, tag = 'scratch operand']
  #allocation3 [shape = 'bf16[2,128,256]{2,1,0:T(16,128)(2,1)}', space=vmem, size = 0x20000, scoped, tag = 'scratch operand']
  #allocation4 [shape = 'bf16[2,256,128]{2,1,0:T(16,128)(2,1)}', space=vmem, size = 0x20000, scoped, tag = 'scratch operand']
  #allocation5 [shape = 's32[6]{0}', space=sflag, size = 0x18, scoped, tag = 'scratch operand']
  #allocation12 [shape = 's32[]', space=sflag, size = 0x4, offset = 0, fixed_abs, tag = 'sflag constant byte address 0x0 - dummy sync flag']
  #allocation13 [shape = 's32[]', space=sflag, size = 0x4, offset = 0, fixed_abs, tag = 'sflag constant byte address 0x0 - dummy sync flag']
  #allocation14 [shape = 'u32[]', space=smem, size = 0x4, offset = 0x44, fixed_abs, tag = 'smem constant byte address 0x44 - assertion arg 0']
  #allocation15 [shape = 'u32[]', space=smem, size = 0x4, offset = 0x48, fixed_abs, tag = 'smem constant byte address 0x48 - assertion arg 1']
  #allocation16 [shape = 's32[]', space=sflag, size = 0x4, offset = 0, fixed_abs, tag = 'sflag constant byte address 0x0 - dummy sync flag']
  #allocation18 [shape = 's32[]', space=sflag, size = 0x4, offset = 0, fixed_abs, tag = 'sflag constant byte address 0x0 - dummy sync flag']
  #allocation19 [shape = 's32[]', space=sflag, size = 0x4, offset = 0, fixed_abs, tag = 'sflag constant byte address 0x0 - dummy sync flag']
  #allocation20 [shape = 's32[]', space=sflag, size = 0x4, offset = 0, fixed_abs, tag = 'sflag constant byte address 0x0 - dummy sync flag']
  #allocation21 [shape = 's32[]', space=sflag, size = 0x4, offset = 0, fixed_abs, tag = 'sflag constant byte address 0x0 - dummy sync flag']
  #allocation22 [shape = 's32[]', space=sflag, size = 0x4, offset = 0, fixed_abs, tag = 'sflag constant byte address 0x0 - dummy sync flag']
  #allocation24 [shape = 's32[]', space=sflag, size = 0x4, offset = 0, fixed_abs, tag = 'sflag constant byte address 0x0 - dummy sync flag']
  #allocation25 [shape = 's32[]', space=sflag, size = 0x4, offset = 0, fixed_abs, tag = 'sflag constant byte address 0x0 - dummy sync flag']
  #allocation26 [shape = 's32[]', space=sflag, size = 0x4, offset = 0, fixed_abs, tag = 'sflag constant byte address 0x0 - dummy sync flag']
  #allocation27 [shape = 's32[]', space=sflag, size = 0x4, offset = 0, fixed_abs, tag = 'sflag constant byte address 0x0 - dummy sync flag']
  #allocation28 [shape = 's32[]', space=sflag, size = 0x4, offset = 0, fixed_abs, tag = 'sflag constant byte address 0x0 - dummy sync flag']
  #allocation30 [shape = 's32[]', space=sflag, size = 0x4, offset = 0, fixed_abs, tag = 'sflag constant byte address 0x0 - dummy sync flag']
  #allocation31 [shape = 's32[]', space=sflag, size = 0x4, offset = 0, fixed_abs, tag = 'sflag constant byte address 0x0 - dummy sync flag']
  #allocation32 [shape = 's32[]', space=sflag, size = 0x4, offset = 0, fixed_abs, tag = 'sflag constant byte address 0x0 - dummy sync flag']
  #allocation33 [shape = 's32[]', space=sflag, size = 0x4, offset = 0, fixed_abs, tag = 'sflag constant byte address 0x0 - dummy sync flag']
  #allocation34 [shape = 's32[]', space=sflag, size = 0x4, offset = 0, fixed_abs, tag = 'sflag constant byte address 0x0 - dummy sync flag']
  #allocation36 [shape = 's32[]', space=sflag, size = 0x4, offset = 0, fixed_abs, tag = 'sflag constant byte address 0x0 - dummy sync flag']
  #allocation37 [shape = 's32[]', space=sflag, size = 0x4, offset = 0, fixed_abs, tag = 'sflag constant byte address 0x0 - dummy sync flag']
  #allocation38 [shape = 's32[]', space=sflag, size = 0x4, offset = 0, fixed_abs, tag = 'sflag constant byte address 0x0 - dummy sync flag']
  #allocation39 [shape = 's32[]', space=sflag, size = 0x4, offset = 0, fixed_abs, tag = 'sflag constant byte address 0x0 - dummy sync flag']
  #allocation40 [shape = 's32[]', space=sflag, size = 0x4, offset = 0, fixed_abs, tag = 'sflag constant byte address 0x0 - dummy sync flag']
  #allocation42 [shape = 's32[]', space=sflag, size = 0x4, offset = 0, fixed_abs, tag = 'sflag constant byte address 0x0 - dummy sync flag']
  #allocation43 [shape = 's32[]', space=sflag, size = 0x4, offset = 0, fixed_abs, tag = 'sflag constant byte address 0x0 - dummy sync flag']
  #allocation44 [shape = 's32[]', space=sflag, size = 0x4, offset = 0, fixed_abs, tag = 'sflag constant byte address 0x0 - dummy sync flag']
  #allocation45 [shape = 's32[]', space=sflag, size = 0x4, offset = 0, fixed_abs, tag = 'sflag constant byte address 0x0 - dummy sync flag']
  #allocation46 [shape = 's32[]', space=sflag, size = 0x4, offset = 0, fixed_abs, tag = 'sflag constant byte address 0x0 - dummy sync flag']
  #allocation48 [shape = 's32[]', space=sflag, size = 0x4, offset = 0, fixed_abs, tag = 'sflag constant byte address 0x0 - dummy sync flag']
  #allocation49 [shape = 's32[]', space=sflag, size = 0x4, offset = 0, fixed_abs, tag = 'sflag constant byte address 0x0 - dummy sync flag']
  %s0 = inlined_call_operand.hbm [shape: f32[8,128], index: 0, kind: input, shape index: {}]
  %s1 = inlined_call_operand.hbm [shape: bf16[6,128,128], index: 1, kind: input, shape index: {}]
  %s2 = inlined_call_operand.hbm [shape: bf16[6,128,256], index: 2, kind: input, shape index: {}]
  %s3 = inlined_call_operand.hbm [shape: bf16[6,256,128], index: 3, kind: input, shape index: {}]
  %s4 = inlined_call_operand.hbm [shape: f32[6,8,256], index: 4, kind: input, shape index: {}]
  %s5 = inlined_call_operand.hbm [shape: f32[8,128], index: 5, kind: output, shape index: {}]
  %s6 = sld [smem:[#allocation0]]
  $region74: #{tpu_custom_call.1} parent=0
    _
  %s8 = ssub.s32 1, %s6
  %s9 = scalar_select 0, %s8, %s6
  $region1: #{tpu_custom_call.1} parent=0
    #allocation6 [shape = 'u8[4096]{0}', space=vmem, size = 0x1000, scoped, tag = 'input window, operand 0, single buffered']
    #allocation7 [shape = 's32[1]{0}', space=sflag, size = 0x4, scoped, tag = 'scoped memory for tpu_custom_call.1']
    #allocation8 [shape = 's32[1]{0}', space=sflag, size = 0x4, scoped, tag = 'scoped memory for tpu_custom_call.1']
    #allocation9 [shape = 'u8[49152]{0}', space=vmem, size = 0xc000, scoped, tag = 'input window, operand 4, single buffered']
    #allocation10 [shape = 's32[1]{0}', space=sflag, size = 0x4, scoped, tag = 'scoped memory for tpu_custom_call.1']
    #allocation11 [shape = 'u8[4096]{0}', space=vmem, size = 0x1000, scoped, tag = 'output window, operand 0, single buffered']
    #allocation17 [shape = 'u32[9]{0}', space=smem, size = 0x24, scoped, tag = 'DMA stride descriptor']
    #allocation23 [shape = 'u32[9]{0}', space=smem, size = 0x24, scoped, tag = 'DMA stride descriptor']
    #allocation29 [shape = 'u32[9]{0}', space=smem, size = 0x24, scoped, tag = 'DMA stride descriptor']
    #allocation35 [shape = 'u32[9]{0}', space=smem, size = 0x24, scoped, tag = 'DMA stride descriptor']
    #allocation41 [shape = 'u32[9]{0}', space=smem, size = 0x24, scoped, tag = 'DMA stride descriptor']
    #allocation47 [shape = 'u32[9]{0}', space=smem, size = 0x24, scoped, tag = 'DMA stride descriptor']
    %10 = vsyncpa [#allocation7], 0
    %11 = vsyncpa [#allocation10], 0
    %12 = vsyncpa [#allocation8], 0
    // Predicated region
    $region2: #{tpu_custom_call.1} parent=1 // pred_check
      _
    $region3: #{tpu_custom_call.1} parent=1 // pred_check_branch
      %14 = sbr.rel (0) target = $region5
    $region4: #{tpu_custom_call.1} parent=1 // pred_region
      %s16 = ssub.s32 128, 128
      %17 = vsyncadd [#allocation7], %s16
      %s19 = sshll.u32 [#allocation6], 4
      %s20 = int_to_ptr.vmem [resolvable:$true] %s19
      %22 = dma.hbm_to_vmem [thread:$0]  %s0, 128, %s20, [#allocation7]
    $region5: #{tpu_custom_call.1} parent=1 // pred_fallthru
      _
    // Predicated region
    $region6: #{tpu_custom_call.1} parent=1 // pred_check
      _
    $region7: #{tpu_custom_call.1} parent=1 // pred_check_branch
      %24 = sbr.rel (0) target = $region9
    $region8: #{tpu_custom_call.1} parent=1 // pred_region
      %s26 = ssub.s32 1536, 1536
      %27 = vsyncadd [#allocation10], %s26
      %s28 = sshll.u32 [#allocation9], 4
      %s29 = int_to_ptr.vmem [resolvable:$true] %s28
      %34 = dma.hbm_to_vmem [thread:$0]  %s4, 1536, %s29, [#allocation10], 256, 256, 16
    $region9: #{tpu_custom_call.1} parent=1 // pred_fallthru
      _
    // Predicated region
    $region10: #{tpu_custom_call.1} parent=1 // pred_check
      _
    $region11: #{tpu_custom_call.1} parent=1 // pred_check_branch
      %36 = sbr.rel (0) target = $region13
    $region12: #{tpu_custom_call.1} parent=1 // pred_region
      %37 = dma.done [#allocation7], 128
    $region13: #{tpu_custom_call.1} parent=1 // pred_fallthru
      _
    // Predicated region
    $region14: #{tpu_custom_call.1} parent=1 // pred_check
      _
    $region15: #{tpu_custom_call.1} parent=1 // pred_check_branch
      %39 = sbr.rel (0) target = $region17
    $region16: #{tpu_custom_call.1} parent=1 // pred_region
      %40 = dma.done [#allocation10], 1536
    $region17: #{tpu_custom_call.1} parent=1 // pred_fallthru
      _
    // Predicated region
    $region18: #{tpu_custom_call.1} parent=1 // pred_check
      _
    $region19: #{tpu_custom_call.1} parent=1 // pred_check_branch
      %43 = sbr.rel target = $region21
    $region20: #{tpu_custom_call.1} parent=1 // pred_region
      %44 = sst [smem:[#allocation14]] [#allocation13]
      %45 = sst [smem:[#allocation15]] [#allocation12]
    $region21: #{tpu_custom_call.1} parent=1 // pred_fallthru
      _
    %47 = shalt.err (0)
    %s49 = sshll.u32 [#allocation2], 4
    %s50 = int_to_ptr.vmem [resolvable:$true] %s49
    %52 = dma.hbm_to_vmem [thread:$0]  %s1, 1024, %s50, [#allocation5]
    %s53 = scalar_lea.sflag [#allocation5], 2
    %s55 = sshll.u32 1, 14
    %s56 = sxor.u32 4294967295, %s55
    %s58 = sld [smem:[#allocation0]]
    %s59 = sadd.s32 2, %s58
    %s61 = sshll.u32 7, 26
    %s62 = sxor.u32 4294967295, %s61
    %s63 = sand.u32 0, %s62
    %s64 = sshll.u32 %s59, 26
    %s65 = sor.u32 %s63, %s64
    %s66 = sshll.u32 [#allocation3], 4
    %s67 = int_to_ptr.vmem [resolvable:$true] %s66
    %70 = sst [smem:[#allocation17]] 256
    %s71 = scalar_lea.smem [#allocation17], 1
    %72 = sst [smem:[%s71]] 256
    %s73 = scalar_lea.smem [#allocation17], 2
    %74 = sst [smem:[%s73]] 2
    %s75 = scalar_lea.smem [#allocation17], 3
    %76 = sst [smem:[%s75]] 64
    %s77 = scalar_lea.smem [#allocation17], 4
    %78 = sst [smem:[%s77]] 128
    %s79 = scalar_lea.smem [#allocation17], 5
    %80 = sst [smem:[%s79]] 2
    %s81 = scalar_lea.smem [#allocation17], 6
    %82 = sst [smem:[%s81]] 128
    %s83 = scalar_lea.smem [#allocation17], 7
    %84 = sst [smem:[%s83]] 64
    %s85 = scalar_lea.smem [#allocation17], 8
    %86 = sst [smem:[%s85]] 4
    %88 = dma.general %s2, 2048, %s67, %s53, [#allocation16], [#allocation17], %s65, 0
    %s89 = scalar_lea.sflag [#allocation5], 4
    // Predicated region
    $region22: #{tpu_custom_call.1} parent=1 // pred_check
      _
    $region23: #{tpu_custom_call.1} parent=1 // pred_check_branch
      %91 = sbr.rel target = $region25
    $region24: #{tpu_custom_call.1} parent=1 // pred_region
      %92 = sst [smem:[#allocation14]] [#allocation19]
      %93 = sst [smem:[#allocation15]] [#allocation18]
    $region25: #{tpu_custom_call.1} parent=1 // pred_fallthru
      _
    %95 = shalt.err (0)
    %s97 = sshll.u32 [#allocation4], 4
    %s98 = int_to_ptr.vmem [resolvable:$true] %s97
    %100 = dma.hbm_to_vmem [thread:$0]  %s3, 2048, %s98, %s89
    %v101 = vld [vmem:[#allocation6] sm:$0xff]
    %s102 = smul.u32 4, 16
    %s103 = smul.u32 %s102, 1
    %s104 = sshll.u32 %s103, 4
    %105 = dma.done [#allocation5], %s104
    %s106 = smul.u32 %s102, 2
    %s107 = sshll.u32 %s106, 4
    %108 = dma.done %s53, %s107
    %s109 = smul.u32 4, 32
    %s110 = smul.u32 %s109, 1
    %s111 = sshll.u32 %s110, 4
    %112 = dma.done %s89, %s111
    %s113 = scalar_lea.hbm %s1, 1024
    %s114 = scalar_lea.vmem [#allocation2], 64
    %s115 = scalar_lea.sflag [#allocation5], 1
    // Predicated region
    $region26: #{tpu_custom_call.1} parent=1 // pred_check
      _
    $region27: #{tpu_custom_call.1} parent=1 // pred_check_branch
      %117 = sbr.rel target = $region29
    $region28: #{tpu_custom_call.1} parent=1 // pred_region
      %118 = sst [smem:[#allocation14]] [#allocation21]
      %119 = sst [smem:[#allocation15]] [#allocation20]
    $region29: #{tpu_custom_call.1} parent=1 // pred_fallthru
      _
    %121 = shalt.err (0)
    %s123 = sshll.u32 %s114, 4
    %s124 = int_to_ptr.vmem [resolvable:$true] %s123
    %126 = dma.hbm_to_vmem [thread:$0]  %s113, 1024, %s124, %s115
    %s127 = scalar_lea.hbm %s2, 2048
    %s128 = scalar_lea.vmem [#allocation3], 128
    %s129 = scalar_lea.sflag [#allocation5], 3
    %s131 = sshll.u32 1, 14
    %s132 = sxor.u32 4294967295, %s131
    %s134 = sadd.s32 2, %s58
    %s136 = sshll.u32 7, 26
    %s137 = sxor.u32 4294967295, %s136
    %s138 = sand.u32 0, %s137
    %s139 = sshll.u32 %s134, 26
    %s140 = sor.u32 %s138, %s139
    %s141 = sshll.u32 %s128, 4
    %s142 = int_to_ptr.vmem [resolvable:$true] %s141
    %145 = sst [smem:[#allocation23]] 256
    %s146 = scalar_lea.smem [#allocation23], 1
    %147 = sst [smem:[%s146]] 256
    %s148 = scalar_lea.smem [#allocation23], 2
    %149 = sst [smem:[%s148]] 2
    %s150 = scalar_lea.smem [#allocation23], 3
    %151 = sst [smem:[%s150]] 64
    %s152 = scalar_lea.smem [#allocation23], 4
    %153 = sst [smem:[%s152]] 128
    %s154 = scalar_lea.smem [#allocation23], 5
    %155 = sst [smem:[%s154]] 2
    %s156 = scalar_lea.smem [#allocation23], 6
    %157 = sst [smem:[%s156]] 128
    %s158 = scalar_lea.smem [#allocation23], 7
    %159 = sst [smem:[%s158]] 64
    %s160 = scalar_lea.smem [#allocation23], 8
    %161 = sst [smem:[%s160]] 4
    %163 = dma.general %s127, 2048, %s142, %s129, [#allocation22], [#allocation23], %s140, 0
    %s164 = scalar_lea.hbm %s3, 2048
    %s165 = scalar_lea.vmem [#allocation4], 128
    %s166 = scalar_lea.sflag [#allocation5], 5
    // Predicated region
    $region30: #{tpu_custom_call.1} parent=1 // pred_check
      _
    $region31: #{tpu_custom_call.1} parent=1 // pred_check_branch
      %168 = sbr.rel target = $region33
    $region32: #{tpu_custom_call.1} parent=1 // pred_region
      %169 = sst [smem:[#allocation14]] [#allocation25]
      %170 = sst [smem:[#allocation15]] [#allocation24]
    $region33: #{tpu_custom_call.1} parent=1 // pred_fallthru
      _
    %172 = shalt.err (0)
    %s174 = sshll.u32 %s165, 4
    %s175 = int_to_ptr.vmem [resolvable:$true] %s174
    %177 = dma.hbm_to_vmem [thread:$0]  %s164, 2048, %s175, %s166
    %v178 = vld [vmem:[#allocation9] sm:$0xff]
    %v179 = vld [vmem:[#allocation9 + $0x8] sm:$0xff]
    %v180 = vpack.c.bf16 %v101, %v101
    %v181 = vld [vmem:[#allocation2] sm:$0xff]
    %v182 = vld [vmem:[#allocation2 + $0x8] sm:$0xff]
    %v183 = vld [vmem:[#allocation2 + $0x10] sm:$0xff]
    %v184 = vld [vmem:[#allocation2 + $0x18] sm:$0xff]
    %v185 = vld [vmem:[#allocation2 + $0x20] sm:$0xff]
    %v186 = vld [vmem:[#allocation2 + $0x28] sm:$0xff]
    %v187 = vld [vmem:[#allocation2 + $0x30] sm:$0xff]
    %v188 = vld [vmem:[#allocation2 + $0x38] sm:$0xff]
    %v189 = vlaneseq
    %v190 = vshrl.u32 %v189, 7
    %v191 = vsub.s32 0, %v190
    %v192 = vrot.slane %v178, %v191
    %193 = vmatprep.subr.bf16.mxu0 0
    %194 = vmatpush1.bf16.msra.mxu0 %v181
    %195 = vmatprep.subr.bf16.mxu0 0
    %196 = vmatpush1.bf16.msra.mxu0 %v182
    %197 = vmatprep.subr.bf16.mxu0 0
    %198 = vmatpush1.bf16.msra.mxu0 %v183
    %199 = vmatprep.subr.bf16.mxu0 0
    %200 = vmatpush1.bf16.msra.mxu0 %v184
    %201 = vmatprep.subr.bf16.mxu0 0
    %202 = vmatpush1.bf16.msra.mxu0 %v185
    %203 = vmatprep.subr.bf16.mxu0 0
    %204 = vmatpush1.bf16.msra.mxu0 %v186
    %205 = vmatprep.subr.bf16.mxu0 0
    %206 = vmatpush1.bf16.msra.mxu0 %v187
    %207 = vmatprep.subr.bf16.mxu0 0
    %208 = vmatpush1.bf16.msra.mxu0 %v188
    %209 = vmatprep.subr.bf16.mxu0 0
    %210 = vmatpush1.bf16.msra.mxu0 0
    %211 = vmatprep.subr.bf16.mxu0 0
    %212 = vmatpush1.bf16.msra.mxu0 0
    %213 = vmatprep.subr.bf16.mxu0 0
    %214 = vmatpush1.bf16.msra.mxu0 0
    %215 = vmatprep.subr.bf16.mxu0 0
    %216 = vmatpush1.bf16.msra.mxu0 0
    %217 = vmatprep.subr.bf16.mxu0 0
    %218 = vmatpush1.bf16.msra.mxu0 0
    %219 = vmatprep.subr.bf16.mxu0 0
    %220 = vmatpush1.bf16.msra.mxu0 0
    %221 = vmatprep.subr.bf16.mxu0 0
    %222 = vmatpush1.bf16.msra.mxu0 0
    %223 = vmatprep.subr.bf16.mxu0 0
    %224 = vmatpush1.bf16.msra.mxu0 0
    %225 = vmatprep.mubr.bf16.mxu0 0
    %226 = vmatmul.mubr.bf16.gmra.mrb[0].mxu0 %v180
    %v227 = vpop.f32.mrb[0].mxu0
    %v228 = vadd.f32 %v192, %v227
    %v229 = vpop.f32.mrb[0].mxu0
    %v230 = vpop.f32.mrb[0].mxu0
    %v231 = vpop.f32.mrb[0].mxu0
    %232 = vdwg.mxu0
    %v233 = vadd.f32 %v101, %v228
    %234 = vadd.xlane.f32.xlu0 %v233
    %v235 = vpop.xlane.xlu0 %234
    %v236 = vrcp.pop 128.0
    %v237 = vmul.f32 %v235, %v236
    %v238 = vsub.f32 %v233, %v237
    %v239 = vmul.f32 %v238, %v238
    %240 = vadd.xlane.f32.xlu0 %v239
    %v241 = vpop.xlane.xlu0 %240
    %v242 = vmul.f32 %v241, %v236
    %v243 = vadd.f32 %v242, 1e-05
    %v244 = vrsqrt.pop %v243
    %v245 = vmul.f32 %v238, %v244
    %v246 = vlaneseq
    %v247 = vshrl.u32 %v246, 7
    %v248 = vsub.s32 3, %v247
    %v249 = vrot.slane %v178, %v248
    %v250 = vmul.f32 %v245, %v249
    %v251 = vlaneseq
    %v252 = vshrl.u32 %v251, 7
    %v253 = vsub.s32 4, %v252
    %v254 = vrot.slane %v178, %v253
    %v255 = vadd.f32 %v250, %v254
    %v256 = vpack.c.bf16 %v255, %v255
    %v257 = vld [vmem:[#allocation3] sm:$0xff]
    %v258 = vld [vmem:[#allocation3 + $0x8] sm:$0xff]
    %v259 = vld [vmem:[#allocation3 + $0x10] sm:$0xff]
    %v260 = vld [vmem:[#allocation3 + $0x18] sm:$0xff]
    %v261 = vld [vmem:[#allocation3 + $0x20] sm:$0xff]
    %v262 = vld [vmem:[#allocation3 + $0x28] sm:$0xff]
    %v263 = vld [vmem:[#allocation3 + $0x30] sm:$0xff]
    %v264 = vld [vmem:[#allocation3 + $0x38] sm:$0xff]
    %v265 = vld [vmem:[#allocation3 + $0x40] sm:$0xff]
    %v266 = vld [vmem:[#allocation3 + $0x48] sm:$0xff]
    %v267 = vld [vmem:[#allocation3 + $0x50] sm:$0xff]
    %v268 = vld [vmem:[#allocation3 + $0x58] sm:$0xff]
    %v269 = vld [vmem:[#allocation3 + $0x60] sm:$0xff]
    %v270 = vld [vmem:[#allocation3 + $0x68] sm:$0xff]
    %v271 = vld [vmem:[#allocation3 + $0x70] sm:$0xff]
    %v272 = vld [vmem:[#allocation3 + $0x78] sm:$0xff]
    %v273 = vlaneseq
    %v274 = vshrl.u32 %v273, 7
    %v275 = vsub.s32 1, %v274
    %v276 = vrot.slane %v178, %v275
    %v277 = vlaneseq
    %v278 = vshrl.u32 %v277, 7
    %v279 = vsub.s32 1, %v278
    %v280 = vrot.slane %v179, %v279
    %281 = vmatprep.subr.bf16.mxu0 %v258
    %282 = vmatpush1.bf16.msra.mxu0 %v257
    %283 = vmatprep.subr.bf16.mxu0 %v260
    %284 = vmatpush1.bf16.msra.mxu0 %v259
    %285 = vmatprep.subr.bf16.mxu0 %v262
    %286 = vmatpush1.bf16.msra.mxu0 %v261
    %287 = vmatprep.subr.bf16.mxu0 %v264
    %288 = vmatpush1.bf16.msra.mxu0 %v263
    %289 = vmatprep.subr.bf16.mxu0 %v266
    %290 = vmatpush1.bf16.msra.mxu0 %v265
    %291 = vmatprep.subr.bf16.mxu0 %v268
    %292 = vmatpush1.bf16.msra.mxu0 %v267
    %293 = vmatprep.subr.bf16.mxu0 %v270
    %294 = vmatpush1.bf16.msra.mxu0 %v269
    %295 = vmatprep.subr.bf16.mxu0 %v272
    %296 = vmatpush1.bf16.msra.mxu0 %v271
    %297 = vmatprep.subr.bf16.mxu0 0
    %298 = vmatpush1.bf16.msra.mxu0 0
    %299 = vmatprep.subr.bf16.mxu0 0
    %300 = vmatpush1.bf16.msra.mxu0 0
    %301 = vmatprep.subr.bf16.mxu0 0
    %302 = vmatpush1.bf16.msra.mxu0 0
    %303 = vmatprep.subr.bf16.mxu0 0
    %304 = vmatpush1.bf16.msra.mxu0 0
    %305 = vmatprep.subr.bf16.mxu0 0
    %306 = vmatpush1.bf16.msra.mxu0 0
    %307 = vmatprep.subr.bf16.mxu0 0
    %308 = vmatpush1.bf16.msra.mxu0 0
    %309 = vmatprep.subr.bf16.mxu0 0
    %310 = vmatpush1.bf16.msra.mxu0 0
    %311 = vmatprep.subr.bf16.mxu0 0
    %312 = vmatpush1.bf16.msra.mxu0 0
    %313 = vmatprep.mubr.bf16.mxu0 0
    %314 = vmatmul.mubr.bf16.gmra.mrb[0].mxu0 %v256
    %v315 = vpop.f32.mrb[0].mxu0
    %v316 = vadd.f32 %v276, %v315
    %v317 = vpop.f32.mrb[0].mxu0
    %v318 = vadd.f32 %v280, %v317
    %v319 = vpop.f32.mrb[0].mxu0
    %v320 = vpop.f32.mrb[0].mxu0
    %321 = vdwg.mxu0
    %v322 = vmax.f32 %v316, 0.0
    %v323 = vmax.f32 %v318, 0.0
    %v324 = vpack.c.bf16 %v322, %v322
    %v325 = vpack.c.bf16 %v323, %v323
    %v326 = vld [vmem:[#allocation4] sm:$0xff]
    %v327 = vld [vmem:[#allocation4 + $0x8] sm:$0xff]
    %v328 = vld [vmem:[#allocation4 + $0x10] sm:$0xff]
    %v329 = vld [vmem:[#allocation4 + $0x18] sm:$0xff]
    %v330 = vld [vmem:[#allocation4 + $0x20] sm:$0xff]
    %v331 = vld [vmem:[#allocation4 + $0x28] sm:$0xff]
    %v332 = vld [vmem:[#allocation4 + $0x30] sm:$0xff]
    %v333 = vld [vmem:[#allocation4 + $0x38] sm:$0xff]
    %v334 = vld [vmem:[#allocation4 + $0x40] sm:$0xff]
    %v335 = vld [vmem:[#allocation4 + $0x48] sm:$0xff]
    %v336 = vld [vmem:[#allocation4 + $0x50] sm:$0xff]
    %v337 = vld [vmem:[#allocation4 + $0x58] sm:$0xff]
    %v338 = vld [vmem:[#allocation4 + $0x60] sm:$0xff]
    %v339 = vld [vmem:[#allocation4 + $0x68] sm:$0xff]
    %v340 = vld [vmem:[#allocation4 + $0x70] sm:$0xff]
    %v341 = vld [vmem:[#allocation4 + $0x78] sm:$0xff]
    %v342 = vlaneseq
    %v343 = vshrl.u32 %v342, 7
    %v344 = vsub.s32 2, %v343
    %v345 = vrot.slane %v178, %v344
    %346 = vmatprep.subr.bf16.mxu0 0
    %347 = vmatpush1.bf16.msra.mxu0 %v326
    %348 = vmatprep.subr.bf16.mxu0 0
    %349 = vmatpush1.bf16.msra.mxu0 %v327
    %350 = vmatprep.subr.bf16.mxu0 0
    %351 = vmatpush1.bf16.msra.mxu0 %v328
    %352 = vmatprep.subr.bf16.mxu0 0
    %353 = vmatpush1.bf16.msra.mxu0 %v329
    %354 = vmatprep.subr.bf16.mxu0 0
    %355 = vmatpush1.bf16.msra.mxu0 %v330
    %356 = vmatprep.subr.bf16.mxu0 0
    %357 = vmatpush1.bf16.msra.mxu0 %v331
    %358 = vmatprep.subr.bf16.mxu0 0
    %359 = vmatpush1.bf16.msra.mxu0 %v332
    %360 = vmatprep.subr.bf16.mxu0 0
    %361 = vmatpush1.bf16.msra.mxu0 %v333
    %362 = vmatprep.subr.bf16.mxu0 0
    %363 = vmatpush1.bf16.msra.mxu0 %v334
    %364 = vmatprep.subr.bf16.mxu0 0
    %365 = vmatpush1.bf16.msra.mxu0 %v335
    %366 = vmatprep.subr.bf16.mxu0 0
    %367 = vmatpush1.bf16.msra.mxu0 %v336
    %368 = vmatprep.subr.bf16.mxu0 0
    %369 = vmatpush1.bf16.msra.mxu0 %v337
    %370 = vmatprep.subr.bf16.mxu0 0
    %371 = vmatpush1.bf16.msra.mxu0 %v338
    %372 = vmatprep.subr.bf16.mxu0 0
    %373 = vmatpush1.bf16.msra.mxu0 %v339
    %374 = vmatprep.subr.bf16.mxu0 0
    %375 = vmatpush1.bf16.msra.mxu0 %v340
    %376 = vmatprep.subr.bf16.mxu0 0
    %377 = vmatpush1.bf16.msra.mxu0 %v341
    %378 = vmatprep.mubr.bf16.mxu0 %v325
    %379 = vmatmul.mubr.bf16.gmra.mrb[0].mxu0 %v324
    %v380 = vpop.f32.mrb[0].mxu0
    %v381 = vadd.f32 %v345, %v380
    %v382 = vpop.f32.mrb[0].mxu0
    %v383 = vpop.f32.mrb[0].mxu0
    %v384 = vpop.f32.mrb[0].mxu0
    %385 = vdwg.mxu0
    %v386 = vadd.f32 %v255, %v381
    %387 = vadd.xlane.f32.xlu0 %v386
    %v388 = vpop.xlane.xlu0 %387
    %v389 = vmul.f32 %v388, %v236
    %v390 = vsub.f32 %v386, %v389
    %v391 = vmul.f32 %v390, %v390
    %392 = vadd.xlane.f32.xlu0 %v391
    %v393 = vpop.xlane.xlu0 %392
    %v394 = vmul.f32 %v393, %v236
    %v395 = vadd.f32 %v394, 1e-05
    %v396 = vrsqrt.pop %v395
    %v397 = vmul.f32 %v390, %v396
    %v398 = vlaneseq
    %v399 = vshrl.u32 %v398, 7
    %v400 = vsub.s32 5, %v399
    %v401 = vrot.slane %v178, %v400
    %v402 = vmul.f32 %v397, %v401
    %v403 = vlaneseq
    %v404 = vshrl.u32 %v403, 7
    %v405 = vsub.s32 6, %v404
    %v406 = vrot.slane %v178, %v405
    %v407 = vadd.f32 %v402, %v406
    %s408 = sshll.u32 %s103, 4
    %409 = dma.done %s115, %s408
    %s410 = sshll.u32 %s106, 4
    %411 = dma.done %s129, %s410
    %s412 = sshll.u32 %s110, 4
    %413 = dma.done %s166, %s412
    %s414 = scalar_lea.hbm %s1, 2048
    // Predicated region
    $region34: #{tpu_custom_call.1} parent=1 // pred_check
      _
    $region35: #{tpu_custom_call.1} parent=1 // pred_check_branch
      %416 = sbr.rel target = $region37
    $region36: #{tpu_custom_call.1} parent=1 // pred_region
      %417 = sst [smem:[#allocation14]] [#allocation27]
      %418 = sst [smem:[#allocation15]] [#allocation26]
    $region37: #{tpu_custom_call.1} parent=1 // pred_fallthru
      _
    %420 = shalt.err (0)
    %s422 = sshll.u32 [#allocation2], 4
    %s423 = int_to_ptr.vmem [resolvable:$true] %s422
    %425 = dma.hbm_to_vmem [thread:$0]  %s414, 1024, %s423, [#allocation5]
    %s426 = scalar_lea.hbm %s2, 4096
    %s428 = sshll.u32 1, 14
    %s429 = sxor.u32 4294967295, %s428
    %s431 = sadd.s32 2, %s58
    %s433 = sshll.u32 7, 26
    %s434 = sxor.u32 4294967295, %s433
    %s435 = sand.u32 0, %s434
    %s436 = sshll.u32 %s431, 26
    %s437 = sor.u32 %s435, %s436
    %s438 = sshll.u32 [#allocation3], 4
    %s439 = int_to_ptr.vmem [resolvable:$true] %s438
    %442 = sst [smem:[#allocation29]] 256
    %s443 = scalar_lea.smem [#allocation29], 1
    %444 = sst [smem:[%s443]] 256
    %s445 = scalar_lea.smem [#allocation29], 2
    %446 = sst [smem:[%s445]] 2
    %s447 = scalar_lea.smem [#allocation29], 3
    %448 = sst [smem:[%s447]] 64
    %s449 = scalar_lea.smem [#allocation29], 4
    %450 = sst [smem:[%s449]] 128
    %s451 = scalar_lea.smem [#allocation29], 5
    %452 = sst [smem:[%s451]] 2
    %s453 = scalar_lea.smem [#allocation29], 6
    %454 = sst [smem:[%s453]] 128
    %s455 = scalar_lea.smem [#allocation29], 7
    %456 = sst [smem:[%s455]] 64
    %s457 = scalar_lea.smem [#allocation29], 8
    %458 = sst [smem:[%s457]] 4
    %460 = dma.general %s426, 2048, %s439, %s53, [#allocation28], [#allocation29], %s437, 0
    %s461 = scalar_lea.hbm %s3, 4096
    // Predicated region
    $region38: #{tpu_custom_call.1} parent=1 // pred_check
      _
    $region39: #{tpu_custom_call.1} parent=1 // pred_check_branch
      %463 = sbr.rel target = $region41
    $region40: #{tpu_custom_call.1} parent=1 // pred_region
      %464 = sst [smem:[#allocation14]] [#allocation31]
      %465 = sst [smem:[#allocation15]] [#allocation30]
    $region41: #{tpu_custom_call.1} parent=1 // pred_fallthru
      _
    %467 = shalt.err (0)
    %s469 = sshll.u32 [#allocation4], 4
    %s470 = int_to_ptr.vmem [resolvable:$true] %s469
    %472 = dma.hbm_to_vmem [thread:$0]  %s461, 2048, %s470, %s89
    %s473 = scalar_lea.vmem [#allocation9], 16
    %v474 = vld [vmem:[%s473] sm:$0xff]
    %v475 = vld [vmem:[%s473 + $0x8] sm:$0xff]
    %v476 = vpack.c.bf16 %v407, %v407
    %v477 = vld [vmem:[%s114] sm:$0xff]
    %v478 = vld [vmem:[%s114 + $0x8] sm:$0xff]
    %v479 = vld [vmem:[%s114 + $0x10] sm:$0xff]
    %v480 = vld [vmem:[%s114 + $0x18] sm:$0xff]
    %v481 = vld [vmem:[%s114 + $0x20] sm:$0xff]
    %v482 = vld [vmem:[%s114 + $0x28] sm:$0xff]
    %v483 = vld [vmem:[%s114 + $0x30] sm:$0xff]
    %v484 = vld [vmem:[%s114 + $0x38] sm:$0xff]
    %v485 = vlaneseq
    %v486 = vshrl.u32 %v485, 7
    %v487 = vsub.s32 0, %v486
    %v488 = vrot.slane %v474, %v487
    %489 = vmatprep.subr.bf16.mxu0 0
    %490 = vmatpush1.bf16.msra.mxu0 %v477
    %491 = vmatprep.subr.bf16.mxu0 0
    %492 = vmatpush1.bf16.msra.mxu0 %v478
    %493 = vmatprep.subr.bf16.mxu0 0
    %494 = vmatpush1.bf16.msra.mxu0 %v479
    %495 = vmatprep.subr.bf16.mxu0 0
    %496 = vmatpush1.bf16.msra.mxu0 %v480
    %497 = vmatprep.subr.bf16.mxu0 0
    %498 = vmatpush1.bf16.msra.mxu0 %v481
    %499 = vmatprep.subr.bf16.mxu0 0
    %500 = vmatpush1.bf16.msra.mxu0 %v482
    %501 = vmatprep.subr.bf16.mxu0 0
    %502 = vmatpush1.bf16.msra.mxu0 %v483
    %503 = vmatprep.subr.bf16.mxu0 0
    %504 = vmatpush1.bf16.msra.mxu0 %v484
    %505 = vmatprep.subr.bf16.mxu0 0
    %506 = vmatpush1.bf16.msra.mxu0 0
    %507 = vmatprep.subr.bf16.mxu0 0
    %508 = vmatpush1.bf16.msra.mxu0 0
    %509 = vmatprep.subr.bf16.mxu0 0
    %510 = vmatpush1.bf16.msra.mxu0 0
    %511 = vmatprep.subr.bf16.mxu0 0
    %512 = vmatpush1.bf16.msra.mxu0 0
    %513 = vmatprep.subr.bf16.mxu0 0
    %514 = vmatpush1.bf16.msra.mxu0 0
    %515 = vmatprep.subr.bf16.mxu0 0
    %516 = vmatpush1.bf16.msra.mxu0 0
    %517 = vmatprep.subr.bf16.mxu0 0
    %518 = vmatpush1.bf16.msra.mxu0 0
    %519 = vmatprep.subr.bf16.mxu0 0
    %520 = vmatpush1.bf16.msra.mxu0 0
    %521 = vmatprep.mubr.bf16.mxu0 0
    %522 = vmatmul.mubr.bf16.gmra.mrb[0].mxu0 %v476
    %v523 = vpop.f32.mrb[0].mxu0
    %v524 = vadd.f32 %v488, %v523
    %v525 = vpop.f32.mrb[0].mxu0
    %v526 = vpop.f32.mrb[0].mxu0
    %v527 = vpop.f32.mrb[0].mxu0
    %528 = vdwg.mxu0
    %v529 = vadd.f32 %v407, %v524
    %530 = vadd.xlane.f32.xlu0 %v529
    %v531 = vpop.xlane.xlu0 %530
    %v532 = vmul.f32 %v531, %v236
    %v533 = vsub.f32 %v529, %v532
    %v534 = vmul.f32 %v533, %v533
    %535 = vadd.xlane.f32.xlu0 %v534
    %v536 = vpop.xlane.xlu0 %535
    %v537 = vmul.f32 %v536, %v236
    %v538 = vadd.f32 %v537, 1e-05
    %v539 = vrsqrt.pop %v538
    %v540 = vmul.f32 %v533, %v539
    %v541 = vlaneseq
    %v542 = vshrl.u32 %v541, 7
    %v543 = vsub.s32 3, %v542
    %v544 = vrot.slane %v474, %v543
    %v545 = vmul.f32 %v540, %v544
    %v546 = vlaneseq
    %v547 = vshrl.u32 %v546, 7
    %v548 = vsub.s32 4, %v547
    %v549 = vrot.slane %v474, %v548
    %v550 = vadd.f32 %v545, %v549
    %v551 = vpack.c.bf16 %v550, %v550
    %v552 = vld [vmem:[%s128] sm:$0xff]
    %v553 = vld [vmem:[%s128 + $0x8] sm:$0xff]
    %v554 = vld [vmem:[%s128 + $0x10] sm:$0xff]
    %v555 = vld [vmem:[%s128 + $0x18] sm:$0xff]
    %v556 = vld [vmem:[%s128 + $0x20] sm:$0xff]
    %v557 = vld [vmem:[%s128 + $0x28] sm:$0xff]
    %v558 = vld [vmem:[%s128 + $0x30] sm:$0xff]
    %v559 = vld [vmem:[%s128 + $0x38] sm:$0xff]
    %v560 = vld [vmem:[%s128 + $0x40] sm:$0xff]
    %v561 = vld [vmem:[%s128 + $0x48] sm:$0xff]
    %v562 = vld [vmem:[%s128 + $0x50] sm:$0xff]
    %v563 = vld [vmem:[%s128 + $0x58] sm:$0xff]
    %v564 = vld [vmem:[%s128 + $0x60] sm:$0xff]
    %v565 = vld [vmem:[%s128 + $0x68] sm:$0xff]
    %v566 = vld [vmem:[%s128 + $0x70] sm:$0xff]
    %v567 = vld [vmem:[%s128 + $0x78] sm:$0xff]
    %v568 = vlaneseq
    %v569 = vshrl.u32 %v568, 7
    %v570 = vsub.s32 1, %v569
    %v571 = vrot.slane %v474, %v570
    %v572 = vlaneseq
    %v573 = vshrl.u32 %v572, 7
    %v574 = vsub.s32 1, %v573
    %v575 = vrot.slane %v475, %v574
    %576 = vmatprep.subr.bf16.mxu0 %v553
    %577 = vmatpush1.bf16.msra.mxu0 %v552
    %578 = vmatprep.subr.bf16.mxu0 %v555
    %579 = vmatpush1.bf16.msra.mxu0 %v554
    %580 = vmatprep.subr.bf16.mxu0 %v557
    %581 = vmatpush1.bf16.msra.mxu0 %v556
    %582 = vmatprep.subr.bf16.mxu0 %v559
    %583 = vmatpush1.bf16.msra.mxu0 %v558
    %584 = vmatprep.subr.bf16.mxu0 %v561
    %585 = vmatpush1.bf16.msra.mxu0 %v560
    %586 = vmatprep.subr.bf16.mxu0 %v563
    %587 = vmatpush1.bf16.msra.mxu0 %v562
    %588 = vmatprep.subr.bf16.mxu0 %v565
    %589 = vmatpush1.bf16.msra.mxu0 %v564
    %590 = vmatprep.subr.bf16.mxu0 %v567
    %591 = vmatpush1.bf16.msra.mxu0 %v566
    %592 = vmatprep.subr.bf16.mxu0 0
    %593 = vmatpush1.bf16.msra.mxu0 0
    %594 = vmatprep.subr.bf16.mxu0 0
    %595 = vmatpush1.bf16.msra.mxu0 0
    %596 = vmatprep.subr.bf16.mxu0 0
    %597 = vmatpush1.bf16.msra.mxu0 0
    %598 = vmatprep.subr.bf16.mxu0 0
    %599 = vmatpush1.bf16.msra.mxu0 0
    %600 = vmatprep.subr.bf16.mxu0 0
    %601 = vmatpush1.bf16.msra.mxu0 0
    %602 = vmatprep.subr.bf16.mxu0 0
    %603 = vmatpush1.bf16.msra.mxu0 0
    %604 = vmatprep.subr.bf16.mxu0 0
    %605 = vmatpush1.bf16.msra.mxu0 0
    %606 = vmatprep.subr.bf16.mxu0 0
    %607 = vmatpush1.bf16.msra.mxu0 0
    %608 = vmatprep.mubr.bf16.mxu0 0
    %609 = vmatmul.mubr.bf16.gmra.mrb[0].mxu0 %v551
    %v610 = vpop.f32.mrb[0].mxu0
    %v611 = vadd.f32 %v571, %v610
    %v612 = vpop.f32.mrb[0].mxu0
    %v613 = vadd.f32 %v575, %v612
    %v614 = vpop.f32.mrb[0].mxu0
    %v615 = vpop.f32.mrb[0].mxu0
    %616 = vdwg.mxu0
    %v617 = vmax.f32 %v611, 0.0
    %v618 = vmax.f32 %v613, 0.0
    %v619 = vpack.c.bf16 %v617, %v617
    %v620 = vpack.c.bf16 %v618, %v618
    %v621 = vld [vmem:[%s165] sm:$0xff]
    %v622 = vld [vmem:[%s165 + $0x8] sm:$0xff]
    %v623 = vld [vmem:[%s165 + $0x10] sm:$0xff]
    %v624 = vld [vmem:[%s165 + $0x18] sm:$0xff]
    %v625 = vld [vmem:[%s165 + $0x20] sm:$0xff]
    %v626 = vld [vmem:[%s165 + $0x28] sm:$0xff]
    %v627 = vld [vmem:[%s165 + $0x30] sm:$0xff]
    %v628 = vld [vmem:[%s165 + $0x38] sm:$0xff]
    %v629 = vld [vmem:[%s165 + $0x40] sm:$0xff]
    %v630 = vld [vmem:[%s165 + $0x48] sm:$0xff]
    %v631 = vld [vmem:[%s165 + $0x50] sm:$0xff]
    %v632 = vld [vmem:[%s165 + $0x58] sm:$0xff]
    %v633 = vld [vmem:[%s165 + $0x60] sm:$0xff]
    %v634 = vld [vmem:[%s165 + $0x68] sm:$0xff]
    %v635 = vld [vmem:[%s165 + $0x70] sm:$0xff]
    %v636 = vld [vmem:[%s165 + $0x78] sm:$0xff]
    %v637 = vlaneseq
    %v638 = vshrl.u32 %v637, 7
    %v639 = vsub.s32 2, %v638
    %v640 = vrot.slane %v474, %v639
    %641 = vmatprep.subr.bf16.mxu0 0
    %642 = vmatpush1.bf16.msra.mxu0 %v621
    %643 = vmatprep.subr.bf16.mxu0 0
    %644 = vmatpush1.bf16.msra.mxu0 %v622
    %645 = vmatprep.subr.bf16.mxu0 0
    %646 = vmatpush1.bf16.msra.mxu0 %v623
    %647 = vmatprep.subr.bf16.mxu0 0
    %648 = vmatpush1.bf16.msra.mxu0 %v624
    %649 = vmatprep.subr.bf16.mxu0 0
    %650 = vmatpush1.bf16.msra.mxu0 %v625
    %651 = vmatprep.subr.bf16.mxu0 0
    %652 = vmatpush1.bf16.msra.mxu0 %v626
    %653 = vmatprep.subr.bf16.mxu0 0
    %654 = vmatpush1.bf16.msra.mxu0 %v627
    %655 = vmatprep.subr.bf16.mxu0 0
    %656 = vmatpush1.bf16.msra.mxu0 %v628
    %657 = vmatprep.subr.bf16.mxu0 0
    %658 = vmatpush1.bf16.msra.mxu0 %v629
    %659 = vmatprep.subr.bf16.mxu0 0
    %660 = vmatpush1.bf16.msra.mxu0 %v630
    %661 = vmatprep.subr.bf16.mxu0 0
    %662 = vmatpush1.bf16.msra.mxu0 %v631
    %663 = vmatprep.subr.bf16.mxu0 0
    %664 = vmatpush1.bf16.msra.mxu0 %v632
    %665 = vmatprep.subr.bf16.mxu0 0
    %666 = vmatpush1.bf16.msra.mxu0 %v633
    %667 = vmatprep.subr.bf16.mxu0 0
    %668 = vmatpush1.bf16.msra.mxu0 %v634
    %669 = vmatprep.subr.bf16.mxu0 0
    %670 = vmatpush1.bf16.msra.mxu0 %v635
    %671 = vmatprep.subr.bf16.mxu0 0
    %672 = vmatpush1.bf16.msra.mxu0 %v636
    %673 = vmatprep.mubr.bf16.mxu0 %v620
    %674 = vmatmul.mubr.bf16.gmra.mrb[0].mxu0 %v619
    %v675 = vpop.f32.mrb[0].mxu0
    %v676 = vadd.f32 %v640, %v675
    %v677 = vpop.f32.mrb[0].mxu0
    %v678 = vpop.f32.mrb[0].mxu0
    %v679 = vpop.f32.mrb[0].mxu0
    %680 = vdwg.mxu0
    %v681 = vadd.f32 %v550, %v676
    %682 = vadd.xlane.f32.xlu0 %v681
    %v683 = vpop.xlane.xlu0 %682
    %v684 = vmul.f32 %v683, %v236
    %v685 = vsub.f32 %v681, %v684
    %v686 = vmul.f32 %v685, %v685
    %687 = vadd.xlane.f32.xlu0 %v686
    %v688 = vpop.xlane.xlu0 %687
    %v689 = vmul.f32 %v688, %v236
    %v690 = vadd.f32 %v689, 1e-05
    %v691 = vrsqrt.pop %v690
    %v692 = vmul.f32 %v685, %v691
    %v693 = vlaneseq
    %v694 = vshrl.u32 %v693, 7
    %v695 = vsub.s32 5, %v694
    %v696 = vrot.slane %v474, %v695
    %v697 = vmul.f32 %v692, %v696
    %v698 = vlaneseq
    %v699 = vshrl.u32 %v698, 7
    %v700 = vsub.s32 6, %v699
    %v701 = vrot.slane %v474, %v700
    %v702 = vadd.f32 %v697, %v701
    %s703 = sshll.u32 %s103, 4
    %704 = dma.done [#allocation5], %s703
    %s705 = sshll.u32 %s106, 4
    %706 = dma.done %s53, %s705
    %s707 = sshll.u32 %s110, 4
    %708 = dma.done %s89, %s707
    %s709 = scalar_lea.hbm %s1, 3072
    // Predicated region
    $region42: #{tpu_custom_call.1} parent=1 // pred_check
      _
    $region43: #{tpu_custom_call.1} parent=1 // pred_check_branch
      %711 = sbr.rel target = $region45
    $region44: #{tpu_custom_call.1} parent=1 // pred_region
      %712 = sst [smem:[#allocation14]] [#allocation33]
      %713 = sst [smem:[#allocation15]] [#allocation32]
    $region45: #{tpu_custom_call.1} parent=1 // pred_fallthru
      _
    %715 = shalt.err (0)
    %s717 = sshll.u32 %s114, 4
    %s718 = int_to_ptr.vmem [resolvable:$true] %s717
    %720 = dma.hbm_to_vmem [thread:$0]  %s709, 1024, %s718, %s115
    %s721 = scalar_lea.hbm %s2, 6144
    %s723 = sshll.u32 1, 14
    %s724 = sxor.u32 4294967295, %s723
    %s726 = sadd.s32 2, %s58
    %s728 = sshll.u32 7, 26
    %s729 = sxor.u32 4294967295, %s728
    %s730 = sand.u32 0, %s729
    %s731 = sshll.u32 %s726, 26
    %s732 = sor.u32 %s730, %s731
    %s733 = sshll.u32 %s128, 4
    %s734 = int_to_ptr.vmem [resolvable:$true] %s733
    %737 = sst [smem:[#allocation35]] 256
    %s738 = scalar_lea.smem [#allocation35], 1
    %739 = sst [smem:[%s738]] 256
    %s740 = scalar_lea.smem [#allocation35], 2
    %741 = sst [smem:[%s740]] 2
    %s742 = scalar_lea.smem [#allocation35], 3
    %743 = sst [smem:[%s742]] 64
    %s744 = scalar_lea.smem [#allocation35], 4
    %745 = sst [smem:[%s744]] 128
    %s746 = scalar_lea.smem [#allocation35], 5
    %747 = sst [smem:[%s746]] 2
    %s748 = scalar_lea.smem [#allocation35], 6
    %749 = sst [smem:[%s748]] 128
    %s750 = scalar_lea.smem [#allocation35], 7
    %751 = sst [smem:[%s750]] 64
    %s752 = scalar_lea.smem [#allocation35], 8
    %753 = sst [smem:[%s752]] 4
    %755 = dma.general %s721, 2048, %s734, %s129, [#allocation34], [#allocation35], %s732, 0
    %s756 = scalar_lea.hbm %s3, 6144
    // Predicated region
    $region46: #{tpu_custom_call.1} parent=1 // pred_check
      _
    $region47: #{tpu_custom_call.1} parent=1 // pred_check_branch
      %758 = sbr.rel target = $region49
    $region48: #{tpu_custom_call.1} parent=1 // pred_region
      %759 = sst [smem:[#allocation14]] [#allocation37]
      %760 = sst [smem:[#allocation15]] [#allocation36]
    $region49: #{tpu_custom_call.1} parent=1 // pred_fallthru
      _
    %762 = shalt.err (0)
    %s764 = sshll.u32 %s165, 4
    %s765 = int_to_ptr.vmem [resolvable:$true] %s764
    %767 = dma.hbm_to_vmem [thread:$0]  %s756, 2048, %s765, %s166
    %s768 = scalar_lea.vmem [#allocation9], 32
    %v769 = vld [vmem:[%s768] sm:$0xff]
    %v770 = vld [vmem:[%s768 + $0x8] sm:$0xff]
    %v771 = vpack.c.bf16 %v702, %v702
    %v772 = vld [vmem:[#allocation2] sm:$0xff]
    %v773 = vld [vmem:[#allocation2 + $0x8] sm:$0xff]
    %v774 = vld [vmem:[#allocation2 + $0x10] sm:$0xff]
    %v775 = vld [vmem:[#allocation2 + $0x18] sm:$0xff]
    %v776 = vld [vmem:[#allocation2 + $0x20] sm:$0xff]
    %v777 = vld [vmem:[#allocation2 + $0x28] sm:$0xff]
    %v778 = vld [vmem:[#allocation2 + $0x30] sm:$0xff]
    %v779 = vld [vmem:[#allocation2 + $0x38] sm:$0xff]
    %v780 = vlaneseq
    %v781 = vshrl.u32 %v780, 7
    %v782 = vsub.s32 0, %v781
    %v783 = vrot.slane %v769, %v782
    %784 = vmatprep.subr.bf16.mxu0 0
    %785 = vmatpush1.bf16.msra.mxu0 %v772
    %786 = vmatprep.subr.bf16.mxu0 0
    %787 = vmatpush1.bf16.msra.mxu0 %v773
    %788 = vmatprep.subr.bf16.mxu0 0
    %789 = vmatpush1.bf16.msra.mxu0 %v774
    %790 = vmatprep.subr.bf16.mxu0 0
    %791 = vmatpush1.bf16.msra.mxu0 %v775
    %792 = vmatprep.subr.bf16.mxu0 0
    %793 = vmatpush1.bf16.msra.mxu0 %v776
    %794 = vmatprep.subr.bf16.mxu0 0
    %795 = vmatpush1.bf16.msra.mxu0 %v777
    %796 = vmatprep.subr.bf16.mxu0 0
    %797 = vmatpush1.bf16.msra.mxu0 %v778
    %798 = vmatprep.subr.bf16.mxu0 0
    %799 = vmatpush1.bf16.msra.mxu0 %v779
    %800 = vmatprep.subr.bf16.mxu0 0
    %801 = vmatpush1.bf16.msra.mxu0 0
    %802 = vmatprep.subr.bf16.mxu0 0
    %803 = vmatpush1.bf16.msra.mxu0 0
    %804 = vmatprep.subr.bf16.mxu0 0
    %805 = vmatpush1.bf16.msra.mxu0 0
    %806 = vmatprep.subr.bf16.mxu0 0
    %807 = vmatpush1.bf16.msra.mxu0 0
    %808 = vmatprep.subr.bf16.mxu0 0
    %809 = vmatpush1.bf16.msra.mxu0 0
    %810 = vmatprep.subr.bf16.mxu0 0
    %811 = vmatpush1.bf16.msra.mxu0 0
    %812 = vmatprep.subr.bf16.mxu0 0
    %813 = vmatpush1.bf16.msra.mxu0 0
    %814 = vmatprep.subr.bf16.mxu0 0
    %815 = vmatpush1.bf16.msra.mxu0 0
    %816 = vmatprep.mubr.bf16.mxu0 0
    %817 = vmatmul.mubr.bf16.gmra.mrb[0].mxu0 %v771
    %v818 = vpop.f32.mrb[0].mxu0
    %v819 = vadd.f32 %v783, %v818
    %v820 = vpop.f32.mrb[0].mxu0
    %v821 = vpop.f32.mrb[0].mxu0
    %v822 = vpop.f32.mrb[0].mxu0
    %823 = vdwg.mxu0
    %v824 = vadd.f32 %v702, %v819
    %825 = vadd.xlane.f32.xlu0 %v824
    %v826 = vpop.xlane.xlu0 %825
    %v827 = vmul.f32 %v826, %v236
    %v828 = vsub.f32 %v824, %v827
    %v829 = vmul.f32 %v828, %v828
    %830 = vadd.xlane.f32.xlu0 %v829
    %v831 = vpop.xlane.xlu0 %830
    %v832 = vmul.f32 %v831, %v236
    %v833 = vadd.f32 %v832, 1e-05
    %v834 = vrsqrt.pop %v833
    %v835 = vmul.f32 %v828, %v834
    %v836 = vlaneseq
    %v837 = vshrl.u32 %v836, 7
    %v838 = vsub.s32 3, %v837
    %v839 = vrot.slane %v769, %v838
    %v840 = vmul.f32 %v835, %v839
    %v841 = vlaneseq
    %v842 = vshrl.u32 %v841, 7
    %v843 = vsub.s32 4, %v842
    %v844 = vrot.slane %v769, %v843
    %v845 = vadd.f32 %v840, %v844
    %v846 = vpack.c.bf16 %v845, %v845
    %v847 = vld [vmem:[#allocation3] sm:$0xff]
    %v848 = vld [vmem:[#allocation3 + $0x8] sm:$0xff]
    %v849 = vld [vmem:[#allocation3 + $0x10] sm:$0xff]
    %v850 = vld [vmem:[#allocation3 + $0x18] sm:$0xff]
    %v851 = vld [vmem:[#allocation3 + $0x20] sm:$0xff]
    %v852 = vld [vmem:[#allocation3 + $0x28] sm:$0xff]
    %v853 = vld [vmem:[#allocation3 + $0x30] sm:$0xff]
    %v854 = vld [vmem:[#allocation3 + $0x38] sm:$0xff]
    %v855 = vld [vmem:[#allocation3 + $0x40] sm:$0xff]
    %v856 = vld [vmem:[#allocation3 + $0x48] sm:$0xff]
    %v857 = vld [vmem:[#allocation3 + $0x50] sm:$0xff]
    %v858 = vld [vmem:[#allocation3 + $0x58] sm:$0xff]
    %v859 = vld [vmem:[#allocation3 + $0x60] sm:$0xff]
    %v860 = vld [vmem:[#allocation3 + $0x68] sm:$0xff]
    %v861 = vld [vmem:[#allocation3 + $0x70] sm:$0xff]
    %v862 = vld [vmem:[#allocation3 + $0x78] sm:$0xff]
    %v863 = vlaneseq
    %v864 = vshrl.u32 %v863, 7
    %v865 = vsub.s32 1, %v864
    %v866 = vrot.slane %v769, %v865
    %v867 = vlaneseq
    %v868 = vshrl.u32 %v867, 7
    %v869 = vsub.s32 1, %v868
    %v870 = vrot.slane %v770, %v869
    %871 = vmatprep.subr.bf16.mxu0 %v848
    %872 = vmatpush1.bf16.msra.mxu0 %v847
    %873 = vmatprep.subr.bf16.mxu0 %v850
    %874 = vmatpush1.bf16.msra.mxu0 %v849
    %875 = vmatprep.subr.bf16.mxu0 %v852
    %876 = vmatpush1.bf16.msra.mxu0 %v851
    %877 = vmatprep.subr.bf16.mxu0 %v854
    %878 = vmatpush1.bf16.msra.mxu0 %v853
    %879 = vmatprep.subr.bf16.mxu0 %v856
    %880 = vmatpush1.bf16.msra.mxu0 %v855
    %881 = vmatprep.subr.bf16.mxu0 %v858
    %882 = vmatpush1.bf16.msra.mxu0 %v857
    %883 = vmatprep.subr.bf16.mxu0 %v860
    %884 = vmatpush1.bf16.msra.mxu0 %v859
    %885 = vmatprep.subr.bf16.mxu0 %v862
    %886 = vmatpush1.bf16.msra.mxu0 %v861
    %887 = vmatprep.subr.bf16.mxu0 0
    %888 = vmatpush1.bf16.msra.mxu0 0
    %889 = vmatprep.subr.bf16.mxu0 0
    %890 = vmatpush1.bf16.msra.mxu0 0
    %891 = vmatprep.subr.bf16.mxu0 0
    %892 = vmatpush1.bf16.msra.mxu0 0
    %893 = vmatprep.subr.bf16.mxu0 0
    %894 = vmatpush1.bf16.msra.mxu0 0
    %895 = vmatprep.subr.bf16.mxu0 0
    %896 = vmatpush1.bf16.msra.mxu0 0
    %897 = vmatprep.subr.bf16.mxu0 0
    %898 = vmatpush1.bf16.msra.mxu0 0
    %899 = vmatprep.subr.bf16.mxu0 0
    %900 = vmatpush1.bf16.msra.mxu0 0
    %901 = vmatprep.subr.bf16.mxu0 0
    %902 = vmatpush1.bf16.msra.mxu0 0
    %903 = vmatprep.mubr.bf16.mxu0 0
    %904 = vmatmul.mubr.bf16.gmra.mrb[0].mxu0 %v846
    %v905 = vpop.f32.mrb[0].mxu0
    %v906 = vadd.f32 %v866, %v905
    %v907 = vpop.f32.mrb[0].mxu0
    %v908 = vadd.f32 %v870, %v907
    %v909 = vpop.f32.mrb[0].mxu0
    %v910 = vpop.f32.mrb[0].mxu0
    %911 = vdwg.mxu0
    %v912 = vmax.f32 %v906, 0.0
    %v913 = vmax.f32 %v908, 0.0
    %v914 = vpack.c.bf16 %v912, %v912
    %v915 = vpack.c.bf16 %v913, %v913
    %v916 = vld [vmem:[#allocation4] sm:$0xff]
    %v917 = vld [vmem:[#allocation4 + $0x8] sm:$0xff]
    %v918 = vld [vmem:[#allocation4 + $0x10] sm:$0xff]
    %v919 = vld [vmem:[#allocation4 + $0x18] sm:$0xff]
    %v920 = vld [vmem:[#allocation4 + $0x20] sm:$0xff]
    %v921 = vld [vmem:[#allocation4 + $0x28] sm:$0xff]
    %v922 = vld [vmem:[#allocation4 + $0x30] sm:$0xff]
    %v923 = vld [vmem:[#allocation4 + $0x38] sm:$0xff]
    %v924 = vld [vmem:[#allocation4 + $0x40] sm:$0xff]
    %v925 = vld [vmem:[#allocation4 + $0x48] sm:$0xff]
    %v926 = vld [vmem:[#allocation4 + $0x50] sm:$0xff]
    %v927 = vld [vmem:[#allocation4 + $0x58] sm:$0xff]
    %v928 = vld [vmem:[#allocation4 + $0x60] sm:$0xff]
    %v929 = vld [vmem:[#allocation4 + $0x68] sm:$0xff]
    %v930 = vld [vmem:[#allocation4 + $0x70] sm:$0xff]
    %v931 = vld [vmem:[#allocation4 + $0x78] sm:$0xff]
    %v932 = vlaneseq
    %v933 = vshrl.u32 %v932, 7
    %v934 = vsub.s32 2, %v933
    %v935 = vrot.slane %v769, %v934
    %936 = vmatprep.subr.bf16.mxu0 0
    %937 = vmatpush1.bf16.msra.mxu0 %v916
    %938 = vmatprep.subr.bf16.mxu0 0
    %939 = vmatpush1.bf16.msra.mxu0 %v917
    %940 = vmatprep.subr.bf16.mxu0 0
    %941 = vmatpush1.bf16.msra.mxu0 %v918
    %942 = vmatprep.subr.bf16.mxu0 0
    %943 = vmatpush1.bf16.msra.mxu0 %v919
    %944 = vmatprep.subr.bf16.mxu0 0
    %945 = vmatpush1.bf16.msra.mxu0 %v920
    %946 = vmatprep.subr.bf16.mxu0 0
    %947 = vmatpush1.bf16.msra.mxu0 %v921
    %948 = vmatprep.subr.bf16.mxu0 0
    %949 = vmatpush1.bf16.msra.mxu0 %v922
    %950 = vmatprep.subr.bf16.mxu0 0
    %951 = vmatpush1.bf16.msra.mxu0 %v923
    %952 = vmatprep.subr.bf16.mxu0 0
    %953 = vmatpush1.bf16.msra.mxu0 %v924
    %954 = vmatprep.subr.bf16.mxu0 0
    %955 = vmatpush1.bf16.msra.mxu0 %v925
    %956 = vmatprep.subr.bf16.mxu0 0
    %957 = vmatpush1.bf16.msra.mxu0 %v926
    %958 = vmatprep.subr.bf16.mxu0 0
    %959 = vmatpush1.bf16.msra.mxu0 %v927
    %960 = vmatprep.subr.bf16.mxu0 0
    %961 = vmatpush1.bf16.msra.mxu0 %v928
    %962 = vmatprep.subr.bf16.mxu0 0
    %963 = vmatpush1.bf16.msra.mxu0 %v929
    %964 = vmatprep.subr.bf16.mxu0 0
    %965 = vmatpush1.bf16.msra.mxu0 %v930
    %966 = vmatprep.subr.bf16.mxu0 0
    %967 = vmatpush1.bf16.msra.mxu0 %v931
    %968 = vmatprep.mubr.bf16.mxu0 %v915
    %969 = vmatmul.mubr.bf16.gmra.mrb[0].mxu0 %v914
    %v970 = vpop.f32.mrb[0].mxu0
    %v971 = vadd.f32 %v935, %v970
    %v972 = vpop.f32.mrb[0].mxu0
    %v973 = vpop.f32.mrb[0].mxu0
    %v974 = vpop.f32.mrb[0].mxu0
    %975 = vdwg.mxu0
    %v976 = vadd.f32 %v845, %v971
    %977 = vadd.xlane.f32.xlu0 %v976
    %v978 = vpop.xlane.xlu0 %977
    %v979 = vmul.f32 %v978, %v236
    %v980 = vsub.f32 %v976, %v979
    %v981 = vmul.f32 %v980, %v980
    %982 = vadd.xlane.f32.xlu0 %v981
    %v983 = vpop.xlane.xlu0 %982
    %v984 = vmul.f32 %v983, %v236
    %v985 = vadd.f32 %v984, 1e-05
    %v986 = vrsqrt.pop %v985
    %v987 = vmul.f32 %v980, %v986
    %v988 = vlaneseq
    %v989 = vshrl.u32 %v988, 7
    %v990 = vsub.s32 5, %v989
    %v991 = vrot.slane %v769, %v990
    %v992 = vmul.f32 %v987, %v991
    %v993 = vlaneseq
    %v994 = vshrl.u32 %v993, 7
    %v995 = vsub.s32 6, %v994
    %v996 = vrot.slane %v769, %v995
    %v997 = vadd.f32 %v992, %v996
    %s998 = sshll.u32 %s103, 4
    %999 = dma.done %s115, %s998
    %s1000 = sshll.u32 %s106, 4
    %1001 = dma.done %s129, %s1000
    %s1002 = sshll.u32 %s110, 4
    %1003 = dma.done %s166, %s1002
    %s1004 = scalar_lea.hbm %s1, 4096
    // Predicated region
    $region50: #{tpu_custom_call.1} parent=1 // pred_check
      _
    $region51: #{tpu_custom_call.1} parent=1 // pred_check_branch
      %1006 = sbr.rel target = $region53
    $region52: #{tpu_custom_call.1} parent=1 // pred_region
      %1007 = sst [smem:[#allocation14]] [#allocation39]
      %1008 = sst [smem:[#allocation15]] [#allocation38]
    $region53: #{tpu_custom_call.1} parent=1 // pred_fallthru
      _
    %1010 = shalt.err (0)
    %s1012 = sshll.u32 [#allocation2], 4
    %s1013 = int_to_ptr.vmem [resolvable:$true] %s1012
    %1015 = dma.hbm_to_vmem [thread:$0]  %s1004, 1024, %s1013, [#allocation5]
    %s1016 = scalar_lea.hbm %s2, 8192
    %s1018 = sshll.u32 1, 14
    %s1019 = sxor.u32 4294967295, %s1018
    %s1021 = sadd.s32 2, %s58
    %s1023 = sshll.u32 7, 26
    %s1024 = sxor.u32 4294967295, %s1023
    %s1025 = sand.u32 0, %s1024
    %s1026 = sshll.u32 %s1021, 26
    %s1027 = sor.u32 %s1025, %s1026
    %s1028 = sshll.u32 [#allocation3], 4
    %s1029 = int_to_ptr.vmem [resolvable:$true] %s1028
    %1032 = sst [smem:[#allocation41]] 256
    %s1033 = scalar_lea.smem [#allocation41], 1
    %1034 = sst [smem:[%s1033]] 256
    %s1035 = scalar_lea.smem [#allocation41], 2
    %1036 = sst [smem:[%s1035]] 2
    %s1037 = scalar_lea.smem [#allocation41], 3
    %1038 = sst [smem:[%s1037]] 64
    %s1039 = scalar_lea.smem [#allocation41], 4
    %1040 = sst [smem:[%s1039]] 128
    %s1041 = scalar_lea.smem [#allocation41], 5
    %1042 = sst [smem:[%s1041]] 2
    %s1043 = scalar_lea.smem [#allocation41], 6
    %1044 = sst [smem:[%s1043]] 128
    %s1045 = scalar_lea.smem [#allocation41], 7
    %1046 = sst [smem:[%s1045]] 64
    %s1047 = scalar_lea.smem [#allocation41], 8
    %1048 = sst [smem:[%s1047]] 4
    %1050 = dma.general %s1016, 2048, %s1029, %s53, [#allocation40], [#allocation41], %s1027, 0
    %s1051 = scalar_lea.hbm %s3, 8192
    // Predicated region
    $region54: #{tpu_custom_call.1} parent=1 // pred_check
      _
    $region55: #{tpu_custom_call.1} parent=1 // pred_check_branch
      %1053 = sbr.rel target = $region57
    $region56: #{tpu_custom_call.1} parent=1 // pred_region
      %1054 = sst [smem:[#allocation14]] [#allocation43]
      %1055 = sst [smem:[#allocation15]] [#allocation42]
    $region57: #{tpu_custom_call.1} parent=1 // pred_fallthru
      _
    %1057 = shalt.err (0)
    %s1059 = sshll.u32 [#allocation4], 4
    %s1060 = int_to_ptr.vmem [resolvable:$true] %s1059
    %1062 = dma.hbm_to_vmem [thread:$0]  %s1051, 2048, %s1060, %s89
    %s1063 = scalar_lea.vmem [#allocation9], 48
    %v1064 = vld [vmem:[%s1063] sm:$0xff]
    %v1065 = vld [vmem:[%s1063 + $0x8] sm:$0xff]
    %v1066 = vpack.c.bf16 %v997, %v997
    %v1067 = vld [vmem:[%s114] sm:$0xff]
    %v1068 = vld [vmem:[%s114 + $0x8] sm:$0xff]
    %v1069 = vld [vmem:[%s114 + $0x10] sm:$0xff]
    %v1070 = vld [vmem:[%s114 + $0x18] sm:$0xff]
    %v1071 = vld [vmem:[%s114 + $0x20] sm:$0xff]
    %v1072 = vld [vmem:[%s114 + $0x28] sm:$0xff]
    %v1073 = vld [vmem:[%s114 + $0x30] sm:$0xff]
    %v1074 = vld [vmem:[%s114 + $0x38] sm:$0xff]
    %v1075 = vlaneseq
    %v1076 = vshrl.u32 %v1075, 7
    %v1077 = vsub.s32 0, %v1076
    %v1078 = vrot.slane %v1064, %v1077
    %1079 = vmatprep.subr.bf16.mxu0 0
    %1080 = vmatpush1.bf16.msra.mxu0 %v1067
    %1081 = vmatprep.subr.bf16.mxu0 0
    %1082 = vmatpush1.bf16.msra.mxu0 %v1068
    %1083 = vmatprep.subr.bf16.mxu0 0
    %1084 = vmatpush1.bf16.msra.mxu0 %v1069
    %1085 = vmatprep.subr.bf16.mxu0 0
    %1086 = vmatpush1.bf16.msra.mxu0 %v1070
    %1087 = vmatprep.subr.bf16.mxu0 0
    %1088 = vmatpush1.bf16.msra.mxu0 %v1071
    %1089 = vmatprep.subr.bf16.mxu0 0
    %1090 = vmatpush1.bf16.msra.mxu0 %v1072
    %1091 = vmatprep.subr.bf16.mxu0 0
    %1092 = vmatpush1.bf16.msra.mxu0 %v1073
    %1093 = vmatprep.subr.bf16.mxu0 0
    %1094 = vmatpush1.bf16.msra.mxu0 %v1074
    %1095 = vmatprep.subr.bf16.mxu0 0
    %1096 = vmatpush1.bf16.msra.mxu0 0
    %1097 = vmatprep.subr.bf16.mxu0 0
    %1098 = vmatpush1.bf16.msra.mxu0 0
    %1099 = vmatprep.subr.bf16.mxu0 0
    %1100 = vmatpush1.bf16.msra.mxu0 0
    %1101 = vmatprep.subr.bf16.mxu0 0
    %1102 = vmatpush1.bf16.msra.mxu0 0
    %1103 = vmatprep.subr.bf16.mxu0 0
    %1104 = vmatpush1.bf16.msra.mxu0 0
    %1105 = vmatprep.subr.bf16.mxu0 0
    %1106 = vmatpush1.bf16.msra.mxu0 0
    %1107 = vmatprep.subr.bf16.mxu0 0
    %1108 = vmatpush1.bf16.msra.mxu0 0
    %1109 = vmatprep.subr.bf16.mxu0 0
    %1110 = vmatpush1.bf16.msra.mxu0 0
    %1111 = vmatprep.mubr.bf16.mxu0 0
    %1112 = vmatmul.mubr.bf16.gmra.mrb[0].mxu0 %v1066
    %v1113 = vpop.f32.mrb[0].mxu0
    %v1114 = vadd.f32 %v1078, %v1113
    %v1115 = vpop.f32.mrb[0].mxu0
    %v1116 = vpop.f32.mrb[0].mxu0
    %v1117 = vpop.f32.mrb[0].mxu0
    %1118 = vdwg.mxu0
    %v1119 = vadd.f32 %v997, %v1114
    %1120 = vadd.xlane.f32.xlu0 %v1119
    %v1121 = vpop.xlane.xlu0 %1120
    %v1122 = vmul.f32 %v1121, %v236
    %v1123 = vsub.f32 %v1119, %v1122
    %v1124 = vmul.f32 %v1123, %v1123
    %1125 = vadd.xlane.f32.xlu0 %v1124
    %v1126 = vpop.xlane.xlu0 %1125
    %v1127 = vmul.f32 %v1126, %v236
    %v1128 = vadd.f32 %v1127, 1e-05
    %v1129 = vrsqrt.pop %v1128
    %v1130 = vmul.f32 %v1123, %v1129
    %v1131 = vlaneseq
    %v1132 = vshrl.u32 %v1131, 7
    %v1133 = vsub.s32 3, %v1132
    %v1134 = vrot.slane %v1064, %v1133
    %v1135 = vmul.f32 %v1130, %v1134
    %v1136 = vlaneseq
    %v1137 = vshrl.u32 %v1136, 7
    %v1138 = vsub.s32 4, %v1137
    %v1139 = vrot.slane %v1064, %v1138
    %v1140 = vadd.f32 %v1135, %v1139
    %v1141 = vpack.c.bf16 %v1140, %v1140
    %v1142 = vld [vmem:[%s128] sm:$0xff]
    %v1143 = vld [vmem:[%s128 + $0x8] sm:$0xff]
    %v1144 = vld [vmem:[%s128 + $0x10] sm:$0xff]
    %v1145 = vld [vmem:[%s128 + $0x18] sm:$0xff]
    %v1146 = vld [vmem:[%s128 + $0x20] sm:$0xff]
    %v1147 = vld [vmem:[%s128 + $0x28] sm:$0xff]
    %v1148 = vld [vmem:[%s128 + $0x30] sm:$0xff]
    %v1149 = vld [vmem:[%s128 + $0x38] sm:$0xff]
    %v1150 = vld [vmem:[%s128 + $0x40] sm:$0xff]
    %v1151 = vld [vmem:[%s128 + $0x48] sm:$0xff]
    %v1152 = vld [vmem:[%s128 + $0x50] sm:$0xff]
    %v1153 = vld [vmem:[%s128 + $0x58] sm:$0xff]
    %v1154 = vld [vmem:[%s128 + $0x60] sm:$0xff]
    %v1155 = vld [vmem:[%s128 + $0x68] sm:$0xff]
    %v1156 = vld [vmem:[%s128 + $0x70] sm:$0xff]
    %v1157 = vld [vmem:[%s128 + $0x78] sm:$0xff]
    %v1158 = vlaneseq
    %v1159 = vshrl.u32 %v1158, 7
    %v1160 = vsub.s32 1, %v1159
    %v1161 = vrot.slane %v1064, %v1160
    %v1162 = vlaneseq
    %v1163 = vshrl.u32 %v1162, 7
    %v1164 = vsub.s32 1, %v1163
    %v1165 = vrot.slane %v1065, %v1164
    %1166 = vmatprep.subr.bf16.mxu0 %v1143
    %1167 = vmatpush1.bf16.msra.mxu0 %v1142
    %1168 = vmatprep.subr.bf16.mxu0 %v1145
    %1169 = vmatpush1.bf16.msra.mxu0 %v1144
    %1170 = vmatprep.subr.bf16.mxu0 %v1147
    %1171 = vmatpush1.bf16.msra.mxu0 %v1146
    %1172 = vmatprep.subr.bf16.mxu0 %v1149
    %1173 = vmatpush1.bf16.msra.mxu0 %v1148
    %1174 = vmatprep.subr.bf16.mxu0 %v1151
    %1175 = vmatpush1.bf16.msra.mxu0 %v1150
    %1176 = vmatprep.subr.bf16.mxu0 %v1153
    %1177 = vmatpush1.bf16.msra.mxu0 %v1152
    %1178 = vmatprep.subr.bf16.mxu0 %v1155
    %1179 = vmatpush1.bf16.msra.mxu0 %v1154
    %1180 = vmatprep.subr.bf16.mxu0 %v1157
    %1181 = vmatpush1.bf16.msra.mxu0 %v1156
    %1182 = vmatprep.subr.bf16.mxu0 0
    %1183 = vmatpush1.bf16.msra.mxu0 0
    %1184 = vmatprep.subr.bf16.mxu0 0
    %1185 = vmatpush1.bf16.msra.mxu0 0
    %1186 = vmatprep.subr.bf16.mxu0 0
    %1187 = vmatpush1.bf16.msra.mxu0 0
    %1188 = vmatprep.subr.bf16.mxu0 0
    %1189 = vmatpush1.bf16.msra.mxu0 0
    %1190 = vmatprep.subr.bf16.mxu0 0
    %1191 = vmatpush1.bf16.msra.mxu0 0
    %1192 = vmatprep.subr.bf16.mxu0 0
    %1193 = vmatpush1.bf16.msra.mxu0 0
    %1194 = vmatprep.subr.bf16.mxu0 0
    %1195 = vmatpush1.bf16.msra.mxu0 0
    %1196 = vmatprep.subr.bf16.mxu0 0
    %1197 = vmatpush1.bf16.msra.mxu0 0
    %1198 = vmatprep.mubr.bf16.mxu0 0
    %1199 = vmatmul.mubr.bf16.gmra.mrb[0].mxu0 %v1141
    %v1200 = vpop.f32.mrb[0].mxu0
    %v1201 = vadd.f32 %v1161, %v1200
    %v1202 = vpop.f32.mrb[0].mxu0
    %v1203 = vadd.f32 %v1165, %v1202
    %v1204 = vpop.f32.mrb[0].mxu0
    %v1205 = vpop.f32.mrb[0].mxu0
    %1206 = vdwg.mxu0
    %v1207 = vmax.f32 %v1201, 0.0
    %v1208 = vmax.f32 %v1203, 0.0
    %v1209 = vpack.c.bf16 %v1207, %v1207
    %v1210 = vpack.c.bf16 %v1208, %v1208
    %v1211 = vld [vmem:[%s165] sm:$0xff]
    %v1212 = vld [vmem:[%s165 + $0x8] sm:$0xff]
    %v1213 = vld [vmem:[%s165 + $0x10] sm:$0xff]
    %v1214 = vld [vmem:[%s165 + $0x18] sm:$0xff]
    %v1215 = vld [vmem:[%s165 + $0x20] sm:$0xff]
    %v1216 = vld [vmem:[%s165 + $0x28] sm:$0xff]
    %v1217 = vld [vmem:[%s165 + $0x30] sm:$0xff]
    %v1218 = vld [vmem:[%s165 + $0x38] sm:$0xff]
    %v1219 = vld [vmem:[%s165 + $0x40] sm:$0xff]
    %v1220 = vld [vmem:[%s165 + $0x48] sm:$0xff]
    %v1221 = vld [vmem:[%s165 + $0x50] sm:$0xff]
    %v1222 = vld [vmem:[%s165 + $0x58] sm:$0xff]
    %v1223 = vld [vmem:[%s165 + $0x60] sm:$0xff]
    %v1224 = vld [vmem:[%s165 + $0x68] sm:$0xff]
    %v1225 = vld [vmem:[%s165 + $0x70] sm:$0xff]
    %v1226 = vld [vmem:[%s165 + $0x78] sm:$0xff]
    %v1227 = vlaneseq
    %v1228 = vshrl.u32 %v1227, 7
    %v1229 = vsub.s32 2, %v1228
    %v1230 = vrot.slane %v1064, %v1229
    %1231 = vmatprep.subr.bf16.mxu0 0
    %1232 = vmatpush1.bf16.msra.mxu0 %v1211
    %1233 = vmatprep.subr.bf16.mxu0 0
    %1234 = vmatpush1.bf16.msra.mxu0 %v1212
    %1235 = vmatprep.subr.bf16.mxu0 0
    %1236 = vmatpush1.bf16.msra.mxu0 %v1213
    %1237 = vmatprep.subr.bf16.mxu0 0
    %1238 = vmatpush1.bf16.msra.mxu0 %v1214
    %1239 = vmatprep.subr.bf16.mxu0 0
    %1240 = vmatpush1.bf16.msra.mxu0 %v1215
    %1241 = vmatprep.subr.bf16.mxu0 0
    %1242 = vmatpush1.bf16.msra.mxu0 %v1216
    %1243 = vmatprep.subr.bf16.mxu0 0
    %1244 = vmatpush1.bf16.msra.mxu0 %v1217
    %1245 = vmatprep.subr.bf16.mxu0 0
    %1246 = vmatpush1.bf16.msra.mxu0 %v1218
    %1247 = vmatprep.subr.bf16.mxu0 0
    %1248 = vmatpush1.bf16.msra.mxu0 %v1219
    %1249 = vmatprep.subr.bf16.mxu0 0
    %1250 = vmatpush1.bf16.msra.mxu0 %v1220
    %1251 = vmatprep.subr.bf16.mxu0 0
    %1252 = vmatpush1.bf16.msra.mxu0 %v1221
    %1253 = vmatprep.subr.bf16.mxu0 0
    %1254 = vmatpush1.bf16.msra.mxu0 %v1222
    %1255 = vmatprep.subr.bf16.mxu0 0
    %1256 = vmatpush1.bf16.msra.mxu0 %v1223
    %1257 = vmatprep.subr.bf16.mxu0 0
    %1258 = vmatpush1.bf16.msra.mxu0 %v1224
    %1259 = vmatprep.subr.bf16.mxu0 0
    %1260 = vmatpush1.bf16.msra.mxu0 %v1225
    %1261 = vmatprep.subr.bf16.mxu0 0
    %1262 = vmatpush1.bf16.msra.mxu0 %v1226
    %1263 = vmatprep.mubr.bf16.mxu0 %v1210
    %1264 = vmatmul.mubr.bf16.gmra.mrb[0].mxu0 %v1209
    %v1265 = vpop.f32.mrb[0].mxu0
    %v1266 = vadd.f32 %v1230, %v1265
    %v1267 = vpop.f32.mrb[0].mxu0
    %v1268 = vpop.f32.mrb[0].mxu0
    %v1269 = vpop.f32.mrb[0].mxu0
    %1270 = vdwg.mxu0
    %v1271 = vadd.f32 %v1140, %v1266
    %1272 = vadd.xlane.f32.xlu0 %v1271
    %v1273 = vpop.xlane.xlu0 %1272
    %v1274 = vmul.f32 %v1273, %v236
    %v1275 = vsub.f32 %v1271, %v1274
    %v1276 = vmul.f32 %v1275, %v1275
    %1277 = vadd.xlane.f32.xlu0 %v1276
    %v1278 = vpop.xlane.xlu0 %1277
    %v1279 = vmul.f32 %v1278, %v236
    %v1280 = vadd.f32 %v1279, 1e-05
    %v1281 = vrsqrt.pop %v1280
    %v1282 = vmul.f32 %v1275, %v1281
    %v1283 = vlaneseq
    %v1284 = vshrl.u32 %v1283, 7
    %v1285 = vsub.s32 5, %v1284
    %v1286 = vrot.slane %v1064, %v1285
    %v1287 = vmul.f32 %v1282, %v1286
    %v1288 = vlaneseq
    %v1289 = vshrl.u32 %v1288, 7
    %v1290 = vsub.s32 6, %v1289
    %v1291 = vrot.slane %v1064, %v1290
    %v1292 = vadd.f32 %v1287, %v1291
    %s1293 = sshll.u32 %s103, 4
    %1294 = dma.done [#allocation5], %s1293
    %s1295 = sshll.u32 %s106, 4
    %1296 = dma.done %s53, %s1295
    %s1297 = sshll.u32 %s110, 4
    %1298 = dma.done %s89, %s1297
    %s1299 = scalar_lea.hbm %s1, 5120
    // Predicated region
    $region58: #{tpu_custom_call.1} parent=1 // pred_check
      _
    $region59: #{tpu_custom_call.1} parent=1 // pred_check_branch
      %1301 = sbr.rel target = $region61
    $region60: #{tpu_custom_call.1} parent=1 // pred_region
      %1302 = sst [smem:[#allocation14]] [#allocation45]
      %1303 = sst [smem:[#allocation15]] [#allocation44]
    $region61: #{tpu_custom_call.1} parent=1 // pred_fallthru
      _
    %1305 = shalt.err (0)
    %s1307 = sshll.u32 %s114, 4
    %s1308 = int_to_ptr.vmem [resolvable:$true] %s1307
    %1310 = dma.hbm_to_vmem [thread:$0]  %s1299, 1024, %s1308, %s115
    %s1311 = scalar_lea.hbm %s2, 10240
    %s1313 = sshll.u32 1, 14
    %s1314 = sxor.u32 4294967295, %s1313
    %s1316 = sadd.s32 2, %s58
    %s1318 = sshll.u32 7, 26
    %s1319 = sxor.u32 4294967295, %s1318
    %s1320 = sand.u32 0, %s1319
    %s1321 = sshll.u32 %s1316, 26
    %s1322 = sor.u32 %s1320, %s1321
    %s1323 = sshll.u32 %s128, 4
    %s1324 = int_to_ptr.vmem [resolvable:$true] %s1323
    %1327 = sst [smem:[#allocation47]] 256
    %s1328 = scalar_lea.smem [#allocation47], 1
    %1329 = sst [smem:[%s1328]] 256
    %s1330 = scalar_lea.smem [#allocation47], 2
    %1331 = sst [smem:[%s1330]] 2
    %s1332 = scalar_lea.smem [#allocation47], 3
    %1333 = sst [smem:[%s1332]] 64
    %s1334 = scalar_lea.smem [#allocation47], 4
    %1335 = sst [smem:[%s1334]] 128
    %s1336 = scalar_lea.smem [#allocation47], 5
    %1337 = sst [smem:[%s1336]] 2
    %s1338 = scalar_lea.smem [#allocation47], 6
    %1339 = sst [smem:[%s1338]] 128
    %s1340 = scalar_lea.smem [#allocation47], 7
    %1341 = sst [smem:[%s1340]] 64
    %s1342 = scalar_lea.smem [#allocation47], 8
    %1343 = sst [smem:[%s1342]] 4
    %1345 = dma.general %s1311, 2048, %s1324, %s129, [#allocation46], [#allocation47], %s1322, 0
    %s1346 = scalar_lea.hbm %s3, 10240
    // Predicated region
    $region62: #{tpu_custom_call.1} parent=1 // pred_check
      _
    $region63: #{tpu_custom_call.1} parent=1 // pred_check_branch
      %1348 = sbr.rel target = $region65
    $region64: #{tpu_custom_call.1} parent=1 // pred_region
      %1349 = sst [smem:[#allocation14]] [#allocation49]
      %1350 = sst [smem:[#allocation15]] [#allocation48]
    $region65: #{tpu_custom_call.1} parent=1 // pred_fallthru
      _
    %1352 = shalt.err (0)
    %s1354 = sshll.u32 %s165, 4
    %s1355 = int_to_ptr.vmem [resolvable:$true] %s1354
    %1357 = dma.hbm_to_vmem [thread:$0]  %s1346, 2048, %s1355, %s166
    %s1358 = scalar_lea.vmem [#allocation9], 64
    %v1359 = vld [vmem:[%s1358] sm:$0xff]
    %v1360 = vld [vmem:[%s1358 + $0x8] sm:$0xff]
    %v1361 = vpack.c.bf16 %v1292, %v1292
    %v1362 = vld [vmem:[#allocation2] sm:$0xff]
    %v1363 = vld [vmem:[#allocation2 + $0x8] sm:$0xff]
    %v1364 = vld [vmem:[#allocation2 + $0x10] sm:$0xff]
    %v1365 = vld [vmem:[#allocation2 + $0x18] sm:$0xff]
    %v1366 = vld [vmem:[#allocation2 + $0x20] sm:$0xff]
    %v1367 = vld [vmem:[#allocation2 + $0x28] sm:$0xff]
    %v1368 = vld [vmem:[#allocation2 + $0x30] sm:$0xff]
    %v1369 = vld [vmem:[#allocation2 + $0x38] sm:$0xff]
    %v1370 = vlaneseq
    %v1371 = vshrl.u32 %v1370, 7
    %v1372 = vsub.s32 0, %v1371
    %v1373 = vrot.slane %v1359, %v1372
    %1374 = vmatprep.subr.bf16.mxu0 0
    %1375 = vmatpush1.bf16.msra.mxu0 %v1362
    %1376 = vmatprep.subr.bf16.mxu0 0
    %1377 = vmatpush1.bf16.msra.mxu0 %v1363
    %1378 = vmatprep.subr.bf16.mxu0 0
    %1379 = vmatpush1.bf16.msra.mxu0 %v1364
    %1380 = vmatprep.subr.bf16.mxu0 0
    %1381 = vmatpush1.bf16.msra.mxu0 %v1365
    %1382 = vmatprep.subr.bf16.mxu0 0
    %1383 = vmatpush1.bf16.msra.mxu0 %v1366
    %1384 = vmatprep.subr.bf16.mxu0 0
    %1385 = vmatpush1.bf16.msra.mxu0 %v1367
    %1386 = vmatprep.subr.bf16.mxu0 0
    %1387 = vmatpush1.bf16.msra.mxu0 %v1368
    %1388 = vmatprep.subr.bf16.mxu0 0
    %1389 = vmatpush1.bf16.msra.mxu0 %v1369
    %1390 = vmatprep.subr.bf16.mxu0 0
    %1391 = vmatpush1.bf16.msra.mxu0 0
    %1392 = vmatprep.subr.bf16.mxu0 0
    %1393 = vmatpush1.bf16.msra.mxu0 0
    %1394 = vmatprep.subr.bf16.mxu0 0
    %1395 = vmatpush1.bf16.msra.mxu0 0
    %1396 = vmatprep.subr.bf16.mxu0 0
    %1397 = vmatpush1.bf16.msra.mxu0 0
    %1398 = vmatprep.subr.bf16.mxu0 0
    %1399 = vmatpush1.bf16.msra.mxu0 0
    %1400 = vmatprep.subr.bf16.mxu0 0
    %1401 = vmatpush1.bf16.msra.mxu0 0
    %1402 = vmatprep.subr.bf16.mxu0 0
    %1403 = vmatpush1.bf16.msra.mxu0 0
    %1404 = vmatprep.subr.bf16.mxu0 0
    %1405 = vmatpush1.bf16.msra.mxu0 0
    %1406 = vmatprep.mubr.bf16.mxu0 0
    %1407 = vmatmul.mubr.bf16.gmra.mrb[0].mxu0 %v1361
    %v1408 = vpop.f32.mrb[0].mxu0
    %v1409 = vadd.f32 %v1373, %v1408
    %v1410 = vpop.f32.mrb[0].mxu0
    %v1411 = vpop.f32.mrb[0].mxu0
    %v1412 = vpop.f32.mrb[0].mxu0
    %1413 = vdwg.mxu0
    %v1414 = vadd.f32 %v1292, %v1409
    %1415 = vadd.xlane.f32.xlu0 %v1414
    %v1416 = vpop.xlane.xlu0 %1415
    %v1417 = vmul.f32 %v1416, %v236
    %v1418 = vsub.f32 %v1414, %v1417
    %v1419 = vmul.f32 %v1418, %v1418
    %1420 = vadd.xlane.f32.xlu0 %v1419
    %v1421 = vpop.xlane.xlu0 %1420
    %v1422 = vmul.f32 %v1421, %v236
    %v1423 = vadd.f32 %v1422, 1e-05
    %v1424 = vrsqrt.pop %v1423
    %v1425 = vmul.f32 %v1418, %v1424
    %v1426 = vlaneseq
    %v1427 = vshrl.u32 %v1426, 7
    %v1428 = vsub.s32 3, %v1427
    %v1429 = vrot.slane %v1359, %v1428
    %v1430 = vmul.f32 %v1425, %v1429
    %v1431 = vlaneseq
    %v1432 = vshrl.u32 %v1431, 7
    %v1433 = vsub.s32 4, %v1432
    %v1434 = vrot.slane %v1359, %v1433
    %v1435 = vadd.f32 %v1430, %v1434
    %v1436 = vpack.c.bf16 %v1435, %v1435
    %v1437 = vld [vmem:[#allocation3] sm:$0xff]
    %v1438 = vld [vmem:[#allocation3 + $0x8] sm:$0xff]
    %v1439 = vld [vmem:[#allocation3 + $0x10] sm:$0xff]
    %v1440 = vld [vmem:[#allocation3 + $0x18] sm:$0xff]
    %v1441 = vld [vmem:[#allocation3 + $0x20] sm:$0xff]
    %v1442 = vld [vmem:[#allocation3 + $0x28] sm:$0xff]
    %v1443 = vld [vmem:[#allocation3 + $0x30] sm:$0xff]
    %v1444 = vld [vmem:[#allocation3 + $0x38] sm:$0xff]
    %v1445 = vld [vmem:[#allocation3 + $0x40] sm:$0xff]
    %v1446 = vld [vmem:[#allocation3 + $0x48] sm:$0xff]
    %v1447 = vld [vmem:[#allocation3 + $0x50] sm:$0xff]
    %v1448 = vld [vmem:[#allocation3 + $0x58] sm:$0xff]
    %v1449 = vld [vmem:[#allocation3 + $0x60] sm:$0xff]
    %v1450 = vld [vmem:[#allocation3 + $0x68] sm:$0xff]
    %v1451 = vld [vmem:[#allocation3 + $0x70] sm:$0xff]
    %v1452 = vld [vmem:[#allocation3 + $0x78] sm:$0xff]
    %v1453 = vlaneseq
    %v1454 = vshrl.u32 %v1453, 7
    %v1455 = vsub.s32 1, %v1454
    %v1456 = vrot.slane %v1359, %v1455
    %v1457 = vlaneseq
    %v1458 = vshrl.u32 %v1457, 7
    %v1459 = vsub.s32 1, %v1458
    %v1460 = vrot.slane %v1360, %v1459
    %1461 = vmatprep.subr.bf16.mxu0 %v1438
    %1462 = vmatpush1.bf16.msra.mxu0 %v1437
    %1463 = vmatprep.subr.bf16.mxu0 %v1440
    %1464 = vmatpush1.bf16.msra.mxu0 %v1439
    %1465 = vmatprep.subr.bf16.mxu0 %v1442
    %1466 = vmatpush1.bf16.msra.mxu0 %v1441
    %1467 = vmatprep.subr.bf16.mxu0 %v1444
    %1468 = vmatpush1.bf16.msra.mxu0 %v1443
    %1469 = vmatprep.subr.bf16.mxu0 %v1446
    %1470 = vmatpush1.bf16.msra.mxu0 %v1445
    %1471 = vmatprep.subr.bf16.mxu0 %v1448
    %1472 = vmatpush1.bf16.msra.mxu0 %v1447
    %1473 = vmatprep.subr.bf16.mxu0 %v1450
    %1474 = vmatpush1.bf16.msra.mxu0 %v1449
    %1475 = vmatprep.subr.bf16.mxu0 %v1452
    %1476 = vmatpush1.bf16.msra.mxu0 %v1451
    %1477 = vmatprep.subr.bf16.mxu0 0
    %1478 = vmatpush1.bf16.msra.mxu0 0
    %1479 = vmatprep.subr.bf16.mxu0 0
    %1480 = vmatpush1.bf16.msra.mxu0 0
    %1481 = vmatprep.subr.bf16.mxu0 0
    %1482 = vmatpush1.bf16.msra.mxu0 0
    %1483 = vmatprep.subr.bf16.mxu0 0
    %1484 = vmatpush1.bf16.msra.mxu0 0
    %1485 = vmatprep.subr.bf16.mxu0 0
    %1486 = vmatpush1.bf16.msra.mxu0 0
    %1487 = vmatprep.subr.bf16.mxu0 0
    %1488 = vmatpush1.bf16.msra.mxu0 0
    %1489 = vmatprep.subr.bf16.mxu0 0
    %1490 = vmatpush1.bf16.msra.mxu0 0
    %1491 = vmatprep.subr.bf16.mxu0 0
    %1492 = vmatpush1.bf16.msra.mxu0 0
    %1493 = vmatprep.mubr.bf16.mxu0 0
    %1494 = vmatmul.mubr.bf16.gmra.mrb[0].mxu0 %v1436
    %v1495 = vpop.f32.mrb[0].mxu0
    %v1496 = vadd.f32 %v1456, %v1495
    %v1497 = vpop.f32.mrb[0].mxu0
    %v1498 = vadd.f32 %v1460, %v1497
    %v1499 = vpop.f32.mrb[0].mxu0
    %v1500 = vpop.f32.mrb[0].mxu0
    %1501 = vdwg.mxu0
    %v1502 = vmax.f32 %v1496, 0.0
    %v1503 = vmax.f32 %v1498, 0.0
    %v1504 = vpack.c.bf16 %v1502, %v1502
    %v1505 = vpack.c.bf16 %v1503, %v1503
    %v1506 = vld [vmem:[#allocation4] sm:$0xff]
    %v1507 = vld [vmem:[#allocation4 + $0x8] sm:$0xff]
    %v1508 = vld [vmem:[#allocation4 + $0x10] sm:$0xff]
    %v1509 = vld [vmem:[#allocation4 + $0x18] sm:$0xff]
    %v1510 = vld [vmem:[#allocation4 + $0x20] sm:$0xff]
    %v1511 = vld [vmem:[#allocation4 + $0x28] sm:$0xff]
    %v1512 = vld [vmem:[#allocation4 + $0x30] sm:$0xff]
    %v1513 = vld [vmem:[#allocation4 + $0x38] sm:$0xff]
    %v1514 = vld [vmem:[#allocation4 + $0x40] sm:$0xff]
    %v1515 = vld [vmem:[#allocation4 + $0x48] sm:$0xff]
    %v1516 = vld [vmem:[#allocation4 + $0x50] sm:$0xff]
    %v1517 = vld [vmem:[#allocation4 + $0x58] sm:$0xff]
    %v1518 = vld [vmem:[#allocation4 + $0x60] sm:$0xff]
    %v1519 = vld [vmem:[#allocation4 + $0x68] sm:$0xff]
    %v1520 = vld [vmem:[#allocation4 + $0x70] sm:$0xff]
    %v1521 = vld [vmem:[#allocation4 + $0x78] sm:$0xff]
    %v1522 = vlaneseq
    %v1523 = vshrl.u32 %v1522, 7
    %v1524 = vsub.s32 2, %v1523
    %v1525 = vrot.slane %v1359, %v1524
    %1526 = vmatprep.subr.bf16.mxu0 0
    %1527 = vmatpush1.bf16.msra.mxu0 %v1506
    %1528 = vmatprep.subr.bf16.mxu0 0
    %1529 = vmatpush1.bf16.msra.mxu0 %v1507
    %1530 = vmatprep.subr.bf16.mxu0 0
    %1531 = vmatpush1.bf16.msra.mxu0 %v1508
    %1532 = vmatprep.subr.bf16.mxu0 0
    %1533 = vmatpush1.bf16.msra.mxu0 %v1509
    %1534 = vmatprep.subr.bf16.mxu0 0
    %1535 = vmatpush1.bf16.msra.mxu0 %v1510
    %1536 = vmatprep.subr.bf16.mxu0 0
    %1537 = vmatpush1.bf16.msra.mxu0 %v1511
    %1538 = vmatprep.subr.bf16.mxu0 0
    %1539 = vmatpush1.bf16.msra.mxu0 %v1512
    %1540 = vmatprep.subr.bf16.mxu0 0
    %1541 = vmatpush1.bf16.msra.mxu0 %v1513
    %1542 = vmatprep.subr.bf16.mxu0 0
    %1543 = vmatpush1.bf16.msra.mxu0 %v1514
    %1544 = vmatprep.subr.bf16.mxu0 0
    %1545 = vmatpush1.bf16.msra.mxu0 %v1515
    %1546 = vmatprep.subr.bf16.mxu0 0
    %1547 = vmatpush1.bf16.msra.mxu0 %v1516
    %1548 = vmatprep.subr.bf16.mxu0 0
    %1549 = vmatpush1.bf16.msra.mxu0 %v1517
    %1550 = vmatprep.subr.bf16.mxu0 0
    %1551 = vmatpush1.bf16.msra.mxu0 %v1518
    %1552 = vmatprep.subr.bf16.mxu0 0
    %1553 = vmatpush1.bf16.msra.mxu0 %v1519
    %1554 = vmatprep.subr.bf16.mxu0 0
    %1555 = vmatpush1.bf16.msra.mxu0 %v1520
    %1556 = vmatprep.subr.bf16.mxu0 0
    %1557 = vmatpush1.bf16.msra.mxu0 %v1521
    %1558 = vmatprep.mubr.bf16.mxu0 %v1505
    %1559 = vmatmul.mubr.bf16.gmra.mrb[0].mxu0 %v1504
    %v1560 = vpop.f32.mrb[0].mxu0
    %v1561 = vadd.f32 %v1525, %v1560
    %v1562 = vpop.f32.mrb[0].mxu0
    %v1563 = vpop.f32.mrb[0].mxu0
    %v1564 = vpop.f32.mrb[0].mxu0
    %1565 = vdwg.mxu0
    %v1566 = vadd.f32 %v1435, %v1561
    %1567 = vadd.xlane.f32.xlu0 %v1566
    %v1568 = vpop.xlane.xlu0 %1567
    %v1569 = vmul.f32 %v1568, %v236
    %v1570 = vsub.f32 %v1566, %v1569
    %v1571 = vmul.f32 %v1570, %v1570
    %1572 = vadd.xlane.f32.xlu0 %v1571
    %v1573 = vpop.xlane.xlu0 %1572
    %v1574 = vmul.f32 %v1573, %v236
    %v1575 = vadd.f32 %v1574, 1e-05
    %v1576 = vrsqrt.pop %v1575
    %v1577 = vmul.f32 %v1570, %v1576
    %v1578 = vlaneseq
    %v1579 = vshrl.u32 %v1578, 7
    %v1580 = vsub.s32 5, %v1579
    %v1581 = vrot.slane %v1359, %v1580
    %v1582 = vmul.f32 %v1577, %v1581
    %v1583 = vlaneseq
    %v1584 = vshrl.u32 %v1583, 7
    %v1585 = vsub.s32 6, %v1584
    %v1586 = vrot.slane %v1359, %v1585
    %v1587 = vadd.f32 %v1582, %v1586
    %s1588 = sshll.u32 %s103, 4
    %1589 = dma.done %s115, %s1588
    %s1590 = sshll.u32 %s106, 4
    %1591 = dma.done %s129, %s1590
    %s1592 = sshll.u32 %s110, 4
    %1593 = dma.done %s166, %s1592
    %s1594 = scalar_lea.vmem [#allocation9], 80
    %v1595 = vld [vmem:[%s1594] sm:$0xff]
    %v1596 = vld [vmem:[%s1594 + $0x8] sm:$0xff]
    %v1597 = vpack.c.bf16 %v1587, %v1587
    %v1598 = vld [vmem:[%s114] sm:$0xff]
    %v1599 = vld [vmem:[%s114 + $0x8] sm:$0xff]
    %v1600 = vld [vmem:[%s114 + $0x10] sm:$0xff]
    %v1601 = vld [vmem:[%s114 + $0x18] sm:$0xff]
    %v1602 = vld [vmem:[%s114 + $0x20] sm:$0xff]
    %v1603 = vld [vmem:[%s114 + $0x28] sm:$0xff]
    %v1604 = vld [vmem:[%s114 + $0x30] sm:$0xff]
    %v1605 = vld [vmem:[%s114 + $0x38] sm:$0xff]
    %v1606 = vlaneseq
    %v1607 = vshrl.u32 %v1606, 7
    %v1608 = vsub.s32 0, %v1607
    %v1609 = vrot.slane %v1595, %v1608
    %1610 = vmatprep.subr.bf16.mxu0 0
    %1611 = vmatpush1.bf16.msra.mxu0 %v1598
    %1612 = vmatprep.subr.bf16.mxu0 0
    %1613 = vmatpush1.bf16.msra.mxu0 %v1599
    %1614 = vmatprep.subr.bf16.mxu0 0
    %1615 = vmatpush1.bf16.msra.mxu0 %v1600
    %1616 = vmatprep.subr.bf16.mxu0 0
    %1617 = vmatpush1.bf16.msra.mxu0 %v1601
    %1618 = vmatprep.subr.bf16.mxu0 0
    %1619 = vmatpush1.bf16.msra.mxu0 %v1602
    %1620 = vmatprep.subr.bf16.mxu0 0
    %1621 = vmatpush1.bf16.msra.mxu0 %v1603
    %1622 = vmatprep.subr.bf16.mxu0 0
    %1623 = vmatpush1.bf16.msra.mxu0 %v1604
    %1624 = vmatprep.subr.bf16.mxu0 0
    %1625 = vmatpush1.bf16.msra.mxu0 %v1605
    %1626 = vmatprep.subr.bf16.mxu0 0
    %1627 = vmatpush1.bf16.msra.mxu0 0
    %1628 = vmatprep.subr.bf16.mxu0 0
    %1629 = vmatpush1.bf16.msra.mxu0 0
    %1630 = vmatprep.subr.bf16.mxu0 0
    %1631 = vmatpush1.bf16.msra.mxu0 0
    %1632 = vmatprep.subr.bf16.mxu0 0
    %1633 = vmatpush1.bf16.msra.mxu0 0
    %1634 = vmatprep.subr.bf16.mxu0 0
    %1635 = vmatpush1.bf16.msra.mxu0 0
    %1636 = vmatprep.subr.bf16.mxu0 0
    %1637 = vmatpush1.bf16.msra.mxu0 0
    %1638 = vmatprep.subr.bf16.mxu0 0
    %1639 = vmatpush1.bf16.msra.mxu0 0
    %1640 = vmatprep.subr.bf16.mxu0 0
    %1641 = vmatpush1.bf16.msra.mxu0 0
    %1642 = vmatprep.mubr.bf16.mxu0 0
    %1643 = vmatmul.mubr.bf16.gmra.mrb[0].mxu0 %v1597
    %v1644 = vpop.f32.mrb[0].mxu0
    %v1645 = vadd.f32 %v1609, %v1644
    %v1646 = vpop.f32.mrb[0].mxu0
    %v1647 = vpop.f32.mrb[0].mxu0
    %v1648 = vpop.f32.mrb[0].mxu0
    %1649 = vdwg.mxu0
    %v1650 = vadd.f32 %v1587, %v1645
    %1651 = vadd.xlane.f32.xlu0 %v1650
    %v1652 = vpop.xlane.xlu0 %1651
    %v1653 = vmul.f32 %v1652, %v236
    %v1654 = vsub.f32 %v1650, %v1653
    %v1655 = vmul.f32 %v1654, %v1654
    %1656 = vadd.xlane.f32.xlu0 %v1655
    %v1657 = vpop.xlane.xlu0 %1656
    %v1658 = vmul.f32 %v1657, %v236
    %v1659 = vadd.f32 %v1658, 1e-05
    %v1660 = vrsqrt.pop %v1659
    %v1661 = vmul.f32 %v1654, %v1660
    %v1662 = vlaneseq
    %v1663 = vshrl.u32 %v1662, 7
    %v1664 = vsub.s32 3, %v1663
    %v1665 = vrot.slane %v1595, %v1664
    %v1666 = vmul.f32 %v1661, %v1665
    %v1667 = vlaneseq
    %v1668 = vshrl.u32 %v1667, 7
    %v1669 = vsub.s32 4, %v1668
    %v1670 = vrot.slane %v1595, %v1669
    %v1671 = vadd.f32 %v1666, %v1670
    %v1672 = vpack.c.bf16 %v1671, %v1671
    %v1673 = vld [vmem:[%s128] sm:$0xff]
    %v1674 = vld [vmem:[%s128 + $0x8] sm:$0xff]
    %v1675 = vld [vmem:[%s128 + $0x10] sm:$0xff]
    %v1676 = vld [vmem:[%s128 + $0x18] sm:$0xff]
    %v1677 = vld [vmem:[%s128 + $0x20] sm:$0xff]
    %v1678 = vld [vmem:[%s128 + $0x28] sm:$0xff]
    %v1679 = vld [vmem:[%s128 + $0x30] sm:$0xff]
    %v1680 = vld [vmem:[%s128 + $0x38] sm:$0xff]
    %v1681 = vld [vmem:[%s128 + $0x40] sm:$0xff]
    %v1682 = vld [vmem:[%s128 + $0x48] sm:$0xff]
    %v1683 = vld [vmem:[%s128 + $0x50] sm:$0xff]
    %v1684 = vld [vmem:[%s128 + $0x58] sm:$0xff]
    %v1685 = vld [vmem:[%s128 + $0x60] sm:$0xff]
    %v1686 = vld [vmem:[%s128 + $0x68] sm:$0xff]
    %v1687 = vld [vmem:[%s128 + $0x70] sm:$0xff]
    %v1688 = vld [vmem:[%s128 + $0x78] sm:$0xff]
    %v1689 = vlaneseq
    %v1690 = vshrl.u32 %v1689, 7
    %v1691 = vsub.s32 1, %v1690
    %v1692 = vrot.slane %v1595, %v1691
    %v1693 = vlaneseq
    %v1694 = vshrl.u32 %v1693, 7
    %v1695 = vsub.s32 1, %v1694
    %v1696 = vrot.slane %v1596, %v1695
    %1697 = vmatprep.subr.bf16.mxu0 %v1674
    %1698 = vmatpush1.bf16.msra.mxu0 %v1673
    %1699 = vmatprep.subr.bf16.mxu0 %v1676
    %1700 = vmatpush1.bf16.msra.mxu0 %v1675
    %1701 = vmatprep.subr.bf16.mxu0 %v1678
    %1702 = vmatpush1.bf16.msra.mxu0 %v1677
    %1703 = vmatprep.subr.bf16.mxu0 %v1680
    %1704 = vmatpush1.bf16.msra.mxu0 %v1679
    %1705 = vmatprep.subr.bf16.mxu0 %v1682
    %1706 = vmatpush1.bf16.msra.mxu0 %v1681
    %1707 = vmatprep.subr.bf16.mxu0 %v1684
    %1708 = vmatpush1.bf16.msra.mxu0 %v1683
    %1709 = vmatprep.subr.bf16.mxu0 %v1686
    %1710 = vmatpush1.bf16.msra.mxu0 %v1685
    %1711 = vmatprep.subr.bf16.mxu0 %v1688
    %1712 = vmatpush1.bf16.msra.mxu0 %v1687
    %1713 = vmatprep.subr.bf16.mxu0 0
    %1714 = vmatpush1.bf16.msra.mxu0 0
    %1715 = vmatprep.subr.bf16.mxu0 0
    %1716 = vmatpush1.bf16.msra.mxu0 0
    %1717 = vmatprep.subr.bf16.mxu0 0
    %1718 = vmatpush1.bf16.msra.mxu0 0
    %1719 = vmatprep.subr.bf16.mxu0 0
    %1720 = vmatpush1.bf16.msra.mxu0 0
    %1721 = vmatprep.subr.bf16.mxu0 0
    %1722 = vmatpush1.bf16.msra.mxu0 0
    %1723 = vmatprep.subr.bf16.mxu0 0
    %1724 = vmatpush1.bf16.msra.mxu0 0
    %1725 = vmatprep.subr.bf16.mxu0 0
    %1726 = vmatpush1.bf16.msra.mxu0 0
    %1727 = vmatprep.subr.bf16.mxu0 0
    %1728 = vmatpush1.bf16.msra.mxu0 0
    %1729 = vmatprep.mubr.bf16.mxu0 0
    %1730 = vmatmul.mubr.bf16.gmra.mrb[0].mxu0 %v1672
    %v1731 = vpop.f32.mrb[0].mxu0
    %v1732 = vadd.f32 %v1692, %v1731
    %v1733 = vpop.f32.mrb[0].mxu0
    %v1734 = vadd.f32 %v1696, %v1733
    %v1735 = vpop.f32.mrb[0].mxu0
    %v1736 = vpop.f32.mrb[0].mxu0
    %1737 = vdwg.mxu0
    %v1738 = vmax.f32 %v1732, 0.0
    %v1739 = vmax.f32 %v1734, 0.0
    %v1740 = vpack.c.bf16 %v1738, %v1738
    %v1741 = vpack.c.bf16 %v1739, %v1739
    %v1742 = vld [vmem:[%s165] sm:$0xff]
    %v1743 = vld [vmem:[%s165 + $0x8] sm:$0xff]
    %v1744 = vld [vmem:[%s165 + $0x10] sm:$0xff]
    %v1745 = vld [vmem:[%s165 + $0x18] sm:$0xff]
    %v1746 = vld [vmem:[%s165 + $0x20] sm:$0xff]
    %v1747 = vld [vmem:[%s165 + $0x28] sm:$0xff]
    %v1748 = vld [vmem:[%s165 + $0x30] sm:$0xff]
    %v1749 = vld [vmem:[%s165 + $0x38] sm:$0xff]
    %v1750 = vld [vmem:[%s165 + $0x40] sm:$0xff]
    %v1751 = vld [vmem:[%s165 + $0x48] sm:$0xff]
    %v1752 = vld [vmem:[%s165 + $0x50] sm:$0xff]
    %v1753 = vld [vmem:[%s165 + $0x58] sm:$0xff]
    %v1754 = vld [vmem:[%s165 + $0x60] sm:$0xff]
    %v1755 = vld [vmem:[%s165 + $0x68] sm:$0xff]
    %v1756 = vld [vmem:[%s165 + $0x70] sm:$0xff]
    %v1757 = vld [vmem:[%s165 + $0x78] sm:$0xff]
    %v1758 = vlaneseq
    %v1759 = vshrl.u32 %v1758, 7
    %v1760 = vsub.s32 2, %v1759
    %v1761 = vrot.slane %v1595, %v1760
    %1762 = vmatprep.subr.bf16.mxu0 0
    %1763 = vmatpush1.bf16.msra.mxu0 %v1742
    %1764 = vmatprep.subr.bf16.mxu0 0
    %1765 = vmatpush1.bf16.msra.mxu0 %v1743
    %1766 = vmatprep.subr.bf16.mxu0 0
    %1767 = vmatpush1.bf16.msra.mxu0 %v1744
    %1768 = vmatprep.subr.bf16.mxu0 0
    %1769 = vmatpush1.bf16.msra.mxu0 %v1745
    %1770 = vmatprep.subr.bf16.mxu0 0
    %1771 = vmatpush1.bf16.msra.mxu0 %v1746
    %1772 = vmatprep.subr.bf16.mxu0 0
    %1773 = vmatpush1.bf16.msra.mxu0 %v1747
    %1774 = vmatprep.subr.bf16.mxu0 0
    %1775 = vmatpush1.bf16.msra.mxu0 %v1748
    %1776 = vmatprep.subr.bf16.mxu0 0
    %1777 = vmatpush1.bf16.msra.mxu0 %v1749
    %1778 = vmatprep.subr.bf16.mxu0 0
    %1779 = vmatpush1.bf16.msra.mxu0 %v1750
    %1780 = vmatprep.subr.bf16.mxu0 0
    %1781 = vmatpush1.bf16.msra.mxu0 %v1751
    %1782 = vmatprep.subr.bf16.mxu0 0
    %1783 = vmatpush1.bf16.msra.mxu0 %v1752
    %1784 = vmatprep.subr.bf16.mxu0 0
    %1785 = vmatpush1.bf16.msra.mxu0 %v1753
    %1786 = vmatprep.subr.bf16.mxu0 0
    %1787 = vmatpush1.bf16.msra.mxu0 %v1754
    %1788 = vmatprep.subr.bf16.mxu0 0
    %1789 = vmatpush1.bf16.msra.mxu0 %v1755
    %1790 = vmatprep.subr.bf16.mxu0 0
    %1791 = vmatpush1.bf16.msra.mxu0 %v1756
    %1792 = vmatprep.subr.bf16.mxu0 0
    %1793 = vmatpush1.bf16.msra.mxu0 %v1757
    %1794 = vmatprep.mubr.bf16.mxu0 %v1741
    %1795 = vmatmul.mubr.bf16.gmra.mrb[0].mxu0 %v1740
    %v1796 = vpop.f32.mrb[0].mxu0
    %v1797 = vadd.f32 %v1761, %v1796
    %v1798 = vpop.f32.mrb[0].mxu0
    %v1799 = vpop.f32.mrb[0].mxu0
    %v1800 = vpop.f32.mrb[0].mxu0
    %1801 = vdwg.mxu0
    %v1802 = vadd.f32 %v1671, %v1797
    %1803 = vadd.xlane.f32.xlu0 %v1802
    %v1804 = vpop.xlane.xlu0 %1803
    %v1805 = vmul.f32 %v1804, %v236
    %v1806 = vsub.f32 %v1802, %v1805
    %v1807 = vmul.f32 %v1806, %v1806
    %1808 = vadd.xlane.f32.xlu0 %v1807
    %v1809 = vpop.xlane.xlu0 %1808
    %v1810 = vmul.f32 %v1809, %v236
    %v1811 = vadd.f32 %v1810, 1e-05
    %v1812 = vrsqrt.pop %v1811
    %v1813 = vmul.f32 %v1806, %v1812
    %v1814 = vlaneseq
    %v1815 = vshrl.u32 %v1814, 7
    %v1816 = vsub.s32 5, %v1815
    %v1817 = vrot.slane %v1595, %v1816
    %v1818 = vmul.f32 %v1813, %v1817
    %v1819 = vlaneseq
    %v1820 = vshrl.u32 %v1819, 7
    %v1821 = vsub.s32 6, %v1820
    %v1822 = vrot.slane %v1595, %v1821
    %v1823 = vadd.f32 %v1818, %v1822
    %1824 = vst [vmem:[#allocation11] sm:$0xff] %v1823
    // Predicated region
    $region66: #{tpu_custom_call.1} parent=1 // pred_check
      _
    $region67: #{tpu_custom_call.1} parent=1 // pred_check_branch
      %1826 = sbr.rel (0) target = $region69
    $region68: #{tpu_custom_call.1} parent=1 // pred_region
      %s1828 = ssub.s32 128, 128
      %1829 = vsyncadd [#allocation8], %s1828
      %s1831 = sshll.u32 [#allocation11], 4
      %s1832 = int_to_ptr.vmem [resolvable:$true] %s1831
      %1834 = dma.vmem_to_hbm [thread:$0]  %s1832, 128, %s5, [#allocation8]
    $region69: #{tpu_custom_call.1} parent=1 // pred_fallthru
      _
    // Predicated region
    $region70: #{tpu_custom_call.1} parent=1 // pred_check
      _
    $region71: #{tpu_custom_call.1} parent=1 // pred_check_branch
      %1836 = sbr.rel (0) target = $region73
    $region72: #{tpu_custom_call.1} parent=1 // pred_region
      %1837 = dma.done [#allocation8], 128
    $region73: #{tpu_custom_call.1} parent=1 // pred_fallthru
      _
    %1838 = vsyncpa [#allocation7], 1
    %1839 = vsyncpa [#allocation10], 1
    %1840 = vsyncpa [#allocation8], 1
  %1841 = vsyncmov [#allocation5]
  %s1842 = vpop.sfrf %1841
  %p1843 = scmp.eq.s32.totalorder %s1842, 0
  %p1844 = pneg %p1843
  %1846 = shalt.err (%p1844)
  %s1847 = scalar_lea.sflag [#allocation5], 1
  %1848 = vsyncmov %s1847
  %s1849 = vpop.sfrf %1848
  %p1850 = scmp.eq.s32.totalorder %s1849, 0
  %p1851 = pneg %p1850
  %1853 = shalt.err (%p1851)
  %s1854 = scalar_lea.sflag [#allocation5], 2
  %1855 = vsyncmov %s1854
  %s1856 = vpop.sfrf %1855
  %p1857 = scmp.eq.s32.totalorder %s1856, 0
  %p1858 = pneg %p1857
  %1860 = shalt.err (%p1858)
  %s1861 = scalar_lea.sflag [#allocation5], 3
  %1862 = vsyncmov %s1861
  %s1863 = vpop.sfrf %1862
  %p1864 = scmp.eq.s32.totalorder %s1863, 0
  %p1865 = pneg %p1864
  %1867 = shalt.err (%p1865)
  %s1868 = scalar_lea.sflag [#allocation5], 4
  %1869 = vsyncmov %s1868
  %s1870 = vpop.sfrf %1869
  %p1871 = scmp.eq.s32.totalorder %s1870, 0
  %p1872 = pneg %p1871
  %1874 = shalt.err (%p1872)
  %s1875 = scalar_lea.sflag [#allocation5], 5
  %1876 = vsyncmov %s1875
  %s1877 = vpop.sfrf %1876
  %p1878 = scmp.eq.s32.totalorder %s1877, 0
  %p1879 = pneg %p1878
  %1881 = shalt.err (%p1879)

</llo_original>
